<compile_context>
chip_gen: v5e
topology: v5e:2x2
jax: 0.10.0
libtpu: 0.0.40
codegen_flags: <defaults>
</compile_context>

<pallas_src>
import numpy as np
import jax
import jax.numpy as jnp
from jax.experimental import pallas as pl
from jax.experimental.pallas import tpu as pltpu


# ----------------------------------------------------------------------------
# Synthetic SAM-lite dimensions
# ----------------------------------------------------------------------------
PATCH = 8                      # patch-embed "conv" stride/kernel
C_EMB = 32                     # embedding channels
N_SPARSE = 2                   # sparse prompt tokens derived from the audio embedding
IMG = 32                       # input image H = W
HE = IMG // PATCH              # embedding spatial size (4)
HW = HE * HE                   # flattened embedding spatial (16)
A_DIM = 64                     # audio embedding dim
OUT = 16                       # original_size (postprocessed mask H = W)
K_PATCH = 3 * PATCH * PATCH    # 192
N_TOK = 2 + N_SPARSE           # iou token + mask token + sparse audio tokens
STATS_LANES = 128              # trailing lane-dense scalar slab: lane0 = iou, lane1 = loss
SLAB = OUT * OUT + STATS_LANES # 384 = 3 x 128 lanes, one store per block
SCALE = float(1.0 / np.sqrt(C_EMB))

FB = 16                        # frames per grid step (patch-embed M = FB*HW = 256 rows)


# ----------------------------------------------------------------------------
# Host-side constant: bilinear resize folded into a single [HW, OUT*OUT] matrix
# ----------------------------------------------------------------------------
def bilinear_matrix(out_size, in_size):
    # F.interpolate(..., mode="bilinear", align_corners=False) as a matrix
    i = np.arange(out_size, dtype=np.float64)
    s = np.clip((i + 0.5) * in_size / out_size - 0.5, 0.0, in_size - 1)
    i0 = np.floor(s).astype(np.int64)
    i1 = np.minimum(i0 + 1, in_size - 1)
    f = s - i0
    m = np.zeros((out_size, in_size), np.float32)
    m[np.arange(out_size), i0] += (1.0 - f).astype(np.float32)
    m[np.arange(out_size), i1] += f.astype(np.float32)
    return m


_U_H = bilinear_matrix(OUT, HE)
_U_W = bilinear_matrix(OUT, HE)
# 2-D bilinear resize of a flattened [HW] low-res mask == right-multiply by kron(Uh,Uw)^T
_K_UP = jnp.asarray(np.kron(_U_H, _U_W).T.astype(np.float32))   # [HW, OUT*OUT] = [16, 256]


# ----------------------------------------------------------------------------
# Parameters
# ----------------------------------------------------------------------------
def init_params(key):
    ks = jax.random.split(key, 7)
    s = 0.02
    return {
        "w_patch": jax.random.normal(ks[0], (K_PATCH, C_EMB), jnp.float32) * s,
        "w_sparse": jax.random.normal(ks[1], (A_DIM, N_SPARSE * C_EMB), jnp.float32) * s,
        "no_mask_embed": jax.random.normal(ks[2], (C_EMB,), jnp.float32) * s,
        "dense_pe": jax.random.normal(ks[3], (C_EMB, HE, HE), jnp.float32) * s,
        "iou_token": jax.random.normal(ks[4], (1, C_EMB), jnp.float32) * s,
        "mask_token": jax.random.normal(ks[5], (1, C_EMB), jnp.float32) * s,
        "w_iou": jax.random.normal(ks[6], (C_EMB, 1), jnp.float32) * s,
        "b_iou": jnp.zeros((1, 1), jnp.float32),
    }


def add_gaussian_noise(x, key):
    # Mirrors the PyTorch helper exactly: std = torch.std(x.view(-1)) per record
    # (unbiased, ddof=1), and it returns ONLY randn_like(x) * std.  The original
    # forward then REPLACES the audio embedding with this noise during training;
    # that (arguably buggy) behavior is preserved as-is.
    std = jnp.std(x.reshape(x.shape[0], -1), axis=1, ddof=1, keepdims=True)
    return jax.random.normal(key, x.shape, x.dtype) * std


# ----------------------------------------------------------------------------
# Fused Pallas kernel: one grid step == FB frames, end to end
# ----------------------------------------------------------------------------
def _fused_avsm_kernel(patches_ref, tokens_ref, tgt_ref,
                       w_patch_ref, no_mask_ref, pe_ref, w_iou_ref, k_up_ref,
                       slab_ref,
                       src_scr, rows_scr, iout_scr):
    f32 = jnp.float32

    # --- image encoder for all FB frames at once: [FB*HW, 192] @ [192, 32] (MXU) ------
    emb = jnp.dot(patches_ref[...], w_patch_ref[...], preferred_element_type=f32)
    # prompt encoder "no mask" dense embedding added once for the whole block
    src_scr[...] = emb + no_mask_ref[...]                       # [FB*HW, C] in VMEM

    pe = pe_ref[...]                                            # [HW, C]

    # --- per-frame two-way-lite mask decoder, statically unrolled over frames ---------
    # (frames are independent; the unroll lets the scheduler interleave their MXU
    #  pushes and hide FIFO latency)
    for f in range(FB):
        tok = tokens_ref[f]                                     # [N_TOK, C]

        # token self-attention
        sa = jax.lax.dot_general(tok, tok, (((1,), (1,)), ((), ())),
                                 preferred_element_type=f32) * SCALE
        sa = jnp.exp(sa - jnp.max(sa, axis=-1, keepdims=True))
        sa = sa * pl.reciprocal(jnp.sum(sa, axis=-1, keepdims=True), approx=True)
        tok = tok + jnp.dot(sa, tok, preferred_element_type=f32)

        # token -> image cross-attention; contraction on the shared C axis (no transposes)
        src_f = src_scr[f * HW:(f + 1) * HW, :]                 # [HW, C], aligned slice
        key_f = src_f + pe
        attn = jax.lax.dot_general(tok, key_f, (((1,), (1,)), ((), ())),
                                   preferred_element_type=f32) * SCALE
        attn = jnp.exp(attn - jnp.max(attn, axis=-1, keepdims=True))
        attn = attn * pl.reciprocal(jnp.sum(attn, axis=-1, keepdims=True), approx=True)
        upd = jnp.dot(attn, src_f, preferred_element_type=f32)  # [N_TOK, C]

        iout_scr[f:f + 1, :] = upd[0:1, :]                      # iou token row
        rows_scr[f:f + 1, :] = jax.lax.dot_general(             # low-res mask row [1, HW]
            upd[1:2, :], src_f, (((1,), (1,)), ((), ())),
            preferred_element_type=f32)

    # --- frame-batched tail: bilinear upsample, IoU head, BCE loss, one lane-dense store
    up = jnp.dot(rows_scr[...], k_up_ref[...], preferred_element_type=f32)   # [FB, OUT*OUT]
    iou_vec = jnp.sum(iout_scr[...] * w_iou_ref[...], axis=-1, keepdims=True)  # [FB, 1]

    t = tgt_ref[...]                                                         # [FB, OUT*OUT]
    bce = jnp.maximum(up, 0.0) - up * t + jnp.log(1.0 + jnp.exp(-jnp.abs(up)))
    loss_vec = jnp.mean(bce, axis=-1, keepdims=True)                         # [FB, 1]

    lane = jax.lax.broadcasted_iota(jnp.int32, (FB, STATS_LANES), 1)
    stats = (iou_vec * (lane == 0).astype(f32) +
             loss_vec * (lane == 1).astype(f32))                             # [FB, 128]
    slab_ref[...] = jnp.concatenate([up, stats], axis=-1)                    # [FB, 384]


def _avsm_batched_impl(params, images, audios, targets_flat):
    """images [F,3,IMG,IMG], audios [F,A_DIM], targets_flat [F,OUT*OUT] -> (masks, iou, loss)."""
    nf = images.shape[0]
    nf_pad = ((nf + FB - 1) // FB) * FB

    # Patch unfold (layout glue; fused by XLA under jit). Row order is frame-major then
    # h-major, matching the [FB*HW, C] layout the decoder / upsample matrices expect.
    x = images.reshape(nf, 3, HE, PATCH, HE, PATCH)
    patches = jnp.transpose(x, (0, 2, 4, 1, 3, 5)).reshape(nf * HW, K_PATCH)

    # Audio -> sparse prompt tokens hoisted out of the kernel (one XLA matmul for the clip).
    sparse = audios @ params["w_sparse"]                                      # [F, N_SPARSE*C]
    fixed = jnp.concatenate([params["iou_token"], params["mask_token"]], axis=0)
    tokens = jnp.concatenate(
        [jnp.broadcast_to(fixed[None], (nf, 2, C_EMB)),
         sparse.reshape(nf, N_SPARSE, C_EMB)], axis=1)                        # [F, N_TOK, C]

    targets = targets_flat.reshape(nf, OUT * OUT)

    # Pad the frame axis to a multiple of FB (padded frames are computed on zeros and
    # dropped after the call).
    pad = nf_pad - nf
    if pad:
        patches = jnp.pad(patches, ((0, pad * HW), (0, 0)))
        tokens = jnp.pad(tokens, ((0, pad), (0, 0), (0, 0)))
        targets = jnp.pad(targets, ((0, pad), (0, 0)))

    # Constant operands pre-shaped on the host (no in-kernel transposes).
    pe = params["dense_pe"].reshape(C_EMB, HW).T                              # [HW, C]
    no_mask = params["no_mask_embed"].reshape(1, C_EMB)                       # [1, C]
    w_iou_row = params["w_iou"].T                                             # [1, C]

    slab = pl.pallas_call(
        _fused_avsm_kernel,
        out_shape=jax.ShapeDtypeStruct((nf_pad, SLAB), jnp.float32),
        grid=(nf_pad // FB,),
        in_specs=[
            # frame-batched, 2-D-flattened per-frame inputs (one contiguous DMA each)
            pl.BlockSpec((FB * HW, K_PATCH), lambda g: (g, 0)),
            pl.BlockSpec((FB, N_TOK, C_EMB), lambda g: (g, 0, 0)),
            pl.BlockSpec((FB, OUT * OUT), lambda g: (g, 0)),
            # shared weights / constants (same block every grid step)
            pl.BlockSpec((K_PATCH, C_EMB), lambda g: (0, 0)),
            pl.BlockSpec((1, C_EMB), lambda g: (0, 0)),
            pl.BlockSpec((HW, C_EMB), lambda g: (0, 0)),
            pl.BlockSpec((1, C_EMB), lambda g: (0, 0)),
            pl.BlockSpec((HW, OUT * OUT), lambda g: (0, 0)),
        ],
        out_specs=pl.BlockSpec((FB, SLAB), lambda g: (g, 0)),
        scratch_shapes=[
            pltpu.VMEM((FB * HW, C_EMB), jnp.float32),   # src (image embed + no_mask)
            pltpu.VMEM((FB, HW), jnp.float32),           # per-frame low-res mask rows
            pltpu.VMEM((FB, C_EMB), jnp.float32),        # per-frame iou tokens
        ],
        compiler_params=pltpu.CompilerParams(dimension_semantics=("parallel",)),
    )(patches, tokens, targets, params["w_patch"], no_mask, pe, w_iou_row, _K_UP)

    slab = slab[:nf]
    upscaled = slab[:, :OUT * OUT].reshape(nf, 1, OUT, OUT)
    iou = slab[:, OUT * OUT] + params["b_iou"][0, 0]     # iou bias folded in on the host
    loss = slab[:, OUT * OUT + 1]
    return upscaled, iou, loss


_avsm_batched = jax.jit(_avsm_batched_impl)


# ----------------------------------------------------------------------------
# AVSM forward (same interface as the PyTorch module's forward)
# ----------------------------------------------------------------------------
def avsm_forward(params, config, batch_data, training=False, noise_key=None):
    img_recs, mask_recs, vid, category, _, _ = batch_data
    nf = len(img_recs)

    audios = jnp.concatenate([r["audio"] for r in img_recs], axis=0)          # [F, A_DIM]
    if training:
        # Original module replaces the audio embedding with scaled Gaussian noise.
        audios = add_gaussian_noise(audios, noise_key)

    if config["tune_v"] < 12:
        images = jnp.concatenate([r["image"] for r in img_recs], axis=0)      # [F, 3, IMG, IMG]
    else:
        # TODO(synk): tune_v >= 12 reuses a cached image_embed in the original; that
        # external SAM state is not reproducible here, so frames are re-encoded anyway.
        images = jnp.concatenate([r["image"] for r in img_recs], axis=0)

    targets = jnp.concatenate(
        [jnp.reshape(m, (1, OUT * OUT)) for m in mask_recs], axis=0).astype(jnp.float32)

    upscaled, iou, loss = _avsm_batched(params, images, audios, targets)
    jax.block_until_ready((upscaled, iou, loss))          # single host sync for the whole clip

    vid_preds = [upscaled[f:f + 1] for f in range(nf)]    # each [1, 1, OUT, OUT]
    loss_vid = [loss[f] for f in range(nf)]
    scores = [float(f"{float(s):.2f}") for s in np.asarray(iou)]
    return vid_preds, scores, loss_vid


# ----------------------------------------------------------------------------
# Pure-JAX reference of the same SAM-lite (for correctness validation)
# ----------------------------------------------------------------------------
def reference_forward(params, images, audios, targets_flat):
    nf = images.shape[0]
    x = images.reshape(nf, 3, HE, PATCH, HE, PATCH)
    patches = jnp.transpose(x, (0, 2, 4, 1, 3, 5)).reshape(nf, HW, K_PATCH)
    emb = patches @ params["w_patch"]
    src = emb + params["no_mask_embed"].reshape(1, 1, C_EMB)
    sparse = audios @ params["w_sparse"]
    fixed = jnp.concatenate([params["iou_token"], params["mask_token"]], axis=0)
    tokens = jnp.concatenate(
        [jnp.broadcast_to(fixed[None], (nf, 2, C_EMB)),
         sparse[:, None, :C_EMB], sparse[:, None, C_EMB:]], axis=1)
    sa = jax.nn.softmax(jnp.einsum('ftc,fsc->fts', tokens, tokens) * SCALE, axis=-1)
    tokens = tokens + jnp.einsum('fts,fsc->ftc', sa, tokens)
    pe = params["dense_pe"].reshape(C_EMB, HW).T
    key = src + pe[None]
    attn = jax.nn.softmax(jnp.einsum('ftc,fpc->ftp', tokens, key) * SCALE, axis=-1)
    upd = jnp.einsum('ftp,fpc->ftc', attn, src)
    iou = upd[:, 0, :] @ params["w_iou"][:, 0] + params["b_iou"][0, 0]
    mask_row = jnp.einsum('fc,fpc->fp', upd[:, 1, :], src)
    up = mask_row @ _K_UP
    t = targets_flat.reshape(nf, -1)
    loss = jnp.mean(jnp.maximum(up, 0.0) - up * t + jnp.log(1.0 + jnp.exp(-jnp.abs(up))),
                    axis=1)
    return up.reshape(nf, 1, OUT, OUT), iou, loss


# ----------------------------------------------------------------------------
# Main
# ----------------------------------------------------------------------------
if __name__ == "__main__":
    params = init_params(jax.random.PRNGKey(42))
    key = jax.random.PRNGKey(0)
    k_img, k_aud, k_msk = jax.random.split(key, 3)

    n_frames = 20   # exercises the pad-to-FB path (pads to 32 -> grid length 2)
    img_recs, mask_recs = [], []
    for f in range(n_frames):
        img_recs.append({
            "image": jax.random.normal(jax.random.fold_in(k_img, f), (1, 3, IMG, IMG), jnp.float32),
            "audio": jax.random.normal(jax.random.fold_in(k_aud, f), (1, A_DIM), jnp.float32),
            "input_size": (OUT, OUT),
            "original_size": (OUT, OUT),
        })
        mask_recs.append(
            (jax.random.uniform(jax.random.fold_in(k_msk, f), (1, 1, OUT, OUT)) > 0.5)
            .astype(jnp.float32))

    config = {"tune_v": 0, "device": None, "loss": "bce_with_logits"}
    batch_data = (img_recs, mask_recs, "vid_0", "category_0", None, None)

    vid_preds, scores, loss_vid = avsm_forward(params, config, batch_data, training=False)
    jax.block_until_ready(list(vid_preds) + list(loss_vid))

    # Correctness check against the pure-JAX reference (approx reciprocal -> loose tol).
    images = jnp.concatenate([r["image"] for r in img_recs], axis=0)
    audios = jnp.concatenate([r["audio"] for r in img_recs], axis=0)
    targets = jnp.concatenate([m.reshape(1, OUT * OUT) for m in mask_recs], axis=0)
    ref_masks, ref_iou, ref_loss = reference_forward(params, images, audios, targets)

    got_masks = jnp.concatenate(vid_preds, axis=0)
    np.testing.assert_allclose(np.asarray(got_masks), np.asarray(ref_masks), atol=1e-2, rtol=1e-2)
    np.testing.assert_allclose(np.asarray(jnp.stack(loss_vid)), np.asarray(ref_loss),
                               atol=1e-2, rtol=1e-2)
    np.testing.assert_allclose(np.array(scores, dtype=np.float32), np.asarray(ref_iou), atol=0.02)

    assert len(vid_preds) == n_frames and vid_preds[0].shape == (1, 1, OUT, OUT)
    assert len(scores) == n_frames and len(loss_vid) == n_frames
    print("KERNEL_OK")
</pallas_src>

<mosaic_0001>
module attributes {stable_mosaic.version = 11 : i64} {
  func.func @_fused_avsm_kernel(%arg0: i32, %arg1: memref<256x192xf32, #tpu.memory_space<vmem>>, %arg2: memref<16x4x32xf32, #tpu.memory_space<vmem>>, %arg3: memref<16x256xf32, #tpu.memory_space<vmem>>, %arg4: memref<192x32xf32, #tpu.memory_space<vmem>>, %arg5: memref<1x32xf32, #tpu.memory_space<vmem>>, %arg6: memref<16x32xf32, #tpu.memory_space<vmem>>, %arg7: memref<1x32xf32, #tpu.memory_space<vmem>>, %arg8: memref<16x256xf32, #tpu.memory_space<vmem>>, %arg9: memref<16x384xf32, #tpu.memory_space<vmem>>, %arg10: memref<256x32xf32, #tpu.memory_space<vmem>>, %arg11: memref<16x16xf32, #tpu.memory_space<vmem>>, %arg12: memref<16x32xf32, #tpu.memory_space<vmem>>) attributes {dimension_semantics = [#tpu.dimension_semantics<parallel>], iteration_bounds = array<i64: 2>, scalar_prefetch = 0 : i64, scratch_operands = 3 : i64, tpu.core_type = #tpu.core_type<tc>, window_params = [{transform_indices = @transform_0, window_bounds = array<i64: 256, 192>}, {transform_indices = @transform_1, window_bounds = array<i64: 16, 4, 32>}, {transform_indices = @transform_2, window_bounds = array<i64: 16, 256>}, {pipeline_mode = #tpu.pipeline_mode<synchronous>, transform_indices = @transform_3, window_bounds = array<i64: 192, 32>}, {pipeline_mode = #tpu.pipeline_mode<synchronous>, transform_indices = @transform_4, window_bounds = array<i64: 1, 32>}, {pipeline_mode = #tpu.pipeline_mode<synchronous>, transform_indices = @transform_5, window_bounds = array<i64: 16, 32>}, {pipeline_mode = #tpu.pipeline_mode<synchronous>, transform_indices = @transform_6, window_bounds = array<i64: 1, 32>}, {pipeline_mode = #tpu.pipeline_mode<synchronous>, transform_indices = @transform_7, window_bounds = array<i64: 16, 256>}, {transform_indices = @transform_8, window_bounds = array<i64: 16, 384>}]} {
    %c0 = arith.constant 0 : index
    %c0_0 = arith.constant 0 : index
    %0 = vector.load %arg1[%c0, %c0_0] : memref<256x192xf32, #tpu.memory_space<vmem>>, vector<256x192xf32>
    %c0_1 = arith.constant 0 : index
    %c0_2 = arith.constant 0 : index
    %1 = vector.load %arg4[%c0_1, %c0_2] : memref<192x32xf32, #tpu.memory_space<vmem>>, vector<192x32xf32>
    %cst = arith.constant dense<0.000000e+00> : vector<256x32xf32>
    %2 = tpu.matmul %0, %1, %cst {dimension_numbers = #tpu.dot_dimension_numbers<[1], [0], [0], [1], [0, 0, 1, 1], [], []>} : vector<256x192xf32>, vector<192x32xf32>, vector<256x32xf32> -> vector<256x32xf32>
    %c0_3 = arith.constant 0 : index
    %c0_4 = arith.constant 0 : index
    %3 = vector.load %arg5[%c0_3, %c0_4] : memref<1x32xf32, #tpu.memory_space<vmem>>, vector<1x32xf32>
    %4 = vector.broadcast %3 : vector<1x32xf32> to vector<256x32xf32>
    %5 = arith.addf %2, %4 : vector<256x32xf32>
    %c0_5 = arith.constant 0 : index
    %c0_6 = arith.constant 0 : index
    %6 = vector.load %arg10[%c0_5, %c0_6] : memref<256x32xf32, #tpu.memory_space<vmem>>, vector<256x32xf32>
    tpu.vector_store %arg10[%c0_5, %c0_6], %5 {strides = array<i32>} : memref<256x32xf32, #tpu.memory_space<vmem>>, vector<256x32xf32>,
    %c0_7 = arith.constant 0 : index
    %c0_8 = arith.constant 0 : index
    %7 = vector.load %arg6[%c0_7, %c0_8] : memref<16x32xf32, #tpu.memory_space<vmem>>, vector<16x32xf32>
    %c0_9 = arith.constant 0 : index
    %c0_10 = arith.constant 0 : index
    %c0_11 = arith.constant 0 : index
    %8 = vector.load %arg2[%c0_9, %c0_10, %c0_11] : memref<16x4x32xf32, #tpu.memory_space<vmem>>, vector<1x4x32xf32>
    %9 = vector.shape_cast %8 : vector<1x4x32xf32> to vector<4x32xf32>
    %cst_12 = arith.constant dense<0.000000e+00> : vector<4x4xf32>
    %10 = tpu.matmul %9, %9, %cst_12 {dimension_numbers = #tpu.dot_dimension_numbers<[1], [1], [0], [0], [0, 0, 1, 0], [], []>} : vector<4x32xf32>, vector<4x32xf32>, vector<4x4xf32> -> vector<4x4xf32>
    %cst_13 = arith.constant 0.176776692 : f32
    %11 = vector.broadcast %cst_13 : f32 to vector<4x4xf32>
    %12 = arith.mulf %10, %11 : vector<4x4xf32>
    %cst_14 = arith.constant dense<0xFF800000> : vector<4xf32>
    %13 = vector.multi_reduction <maximumf>, %12, %cst_14 [1] : vector<4x4xf32> to vector<4xf32>
    %14 = vector.shape_cast %13 : vector<4xf32> to vector<4x1xf32>
    %15 = vector.broadcast %14 : vector<4x1xf32> to vector<4x4xf32>
    %16 = arith.subf %12, %15 : vector<4x4xf32>
    %17 = math.exp %16 : vector<4x4xf32>
    %cst_15 = arith.constant dense<0.000000e+00> : vector<4xf32>
    %18 = vector.multi_reduction <add>, %17, %cst_15 [1] : vector<4x4xf32> to vector<4xf32>
    %19 = vector.shape_cast %18 : vector<4xf32> to vector<4x1xf32>
    %20 = tpu.reciprocal %19 {approx = true} : vector<4x1xf32> -> vector<4x1xf32>
    %21 = vector.broadcast %20 : vector<4x1xf32> to vector<4x4xf32>
    %22 = arith.mulf %17, %21 : vector<4x4xf32>
    %cst_16 = arith.constant dense<0.000000e+00> : vector<4x32xf32>
    %23 = tpu.matmul %22, %9, %cst_16 {dimension_numbers = #tpu.dot_dimension_numbers<[1], [0], [0], [1], [0, 0, 1, 1], [], []>} : vector<4x4xf32>, vector<4x32xf32>, vector<4x32xf32> -> vector<4x32xf32>
    %24 = arith.addf %9, %23 : vector<4x32xf32>
    %c0_17 = arith.constant 0 : index
    %c0_18 = arith.constant 0 : index
    %25 = vector.load %arg10[%c0_17, %c0_18] : memref<256x32xf32, #tpu.memory_space<vmem>>, vector<16x32xf32>
    %26 = arith.addf %25, %7 : vector<16x32xf32>
    %cst_19 = arith.constant dense<0.000000e+00> : vector<4x16xf32>
    %27 = tpu.matmul %24, %26, %cst_19 {dimension_numbers = #tpu.dot_dimension_numbers<[1], [1], [0], [0], [0, 0, 1, 0], [], []>} : vector<4x32xf32>, vector<16x32xf32>, vector<4x16xf32> -> vector<4x16xf32>
    %cst_20 = arith.constant 0.176776692 : f32
    %28 = vector.broadcast %cst_20 : f32 to vector<4x16xf32>
    %29 = arith.mulf %27, %28 : vector<4x16xf32>
    %cst_21 = arith.constant dense<0xFF800000> : vector<4xf32>
    %30 = vector.multi_reduction <maximumf>, %29, %cst_21 [1] : vector<4x16xf32> to vector<4xf32>
    %31 = vector.shape_cast %30 : vector<4xf32> to vector<4x1xf32>
    %32 = vector.broadcast %31 : vector<4x1xf32> to vector<4x16xf32>
    %33 = arith.subf %29, %32 : vector<4x16xf32>
    %34 = math.exp %33 : vector<4x16xf32>
    %cst_22 = arith.constant dense<0.000000e+00> : vector<4xf32>
    %35 = vector.multi_reduction <add>, %34, %cst_22 [1] : vector<4x16xf32> to vector<4xf32>
    %36 = vector.shape_cast %35 : vector<4xf32> to vector<4x1xf32>
    %37 = tpu.reciprocal %36 {approx = true} : vector<4x1xf32> -> vector<4x1xf32>
    %38 = vector.broadcast %37 : vector<4x1xf32> to vector<4x16xf32>
    %39 = arith.mulf %34, %38 : vector<4x16xf32>
    %cst_23 = arith.constant dense<0.000000e+00> : vector<4x32xf32>
    %40 = tpu.matmul %39, %25, %cst_23 {dimension_numbers = #tpu.dot_dimension_numbers<[1], [0], [0], [1], [0, 0, 1, 1], [], []>} : vector<4x16xf32>, vector<16x32xf32>, vector<4x32xf32> -> vector<4x32xf32>
    %41 = vector.extract_strided_slice %40 {offsets = [0, 0], sizes = [1, 32], strides = [1, 1]} : vector<4x32xf32> to vector<1x32xf32>
    %c0_24 = arith.constant 0 : index
    %c0_25 = arith.constant 0 : index
    %42 = vector.load %arg12[%c0_24, %c0_25] : memref<16x32xf32, #tpu.memory_space<vmem>>, vector<1x32xf32>
    tpu.vector_store %arg12[%c0_24, %c0_25], %41 {strides = array<i32>} : memref<16x32xf32, #tpu.memory_space<vmem>>, vector<1x32xf32>,
    %43 = vector.extract_strided_slice %40 {offsets = [1, 0], sizes = [1, 32], strides = [1, 1]} : vector<4x32xf32> to vector<1x32xf32>
    %cst_26 = arith.constant dense<0.000000e+00> : vector<1x16xf32>
    %44 = tpu.matmul %43, %25, %cst_26 {dimension_numbers = #tpu.dot_dimension_numbers<[1], [1], [0], [0], [0, 0, 1, 0], [], []>} : vector<1x32xf32>, vector<16x32xf32>, vector<1x16xf32> -> vector<1x16xf32>
    %c0_27 = arith.constant 0 : index
    %c0_28 = arith.constant 0 : index
    %45 = vector.load %arg11[%c0_27, %c0_28] : memref<16x16xf32, #tpu.memory_space<vmem>>, vector<1x16xf32>
    tpu.vector_store %arg11[%c0_27, %c0_28], %44 {strides = array<i32>} : memref<16x16xf32, #tpu.memory_space<vmem>>, vector<1x16xf32>,
    %c1 = arith.constant 1 : index
    %c0_29 = arith.constant 0 : index
    %c0_30 = arith.constant 0 : index
    %46 = vector.load %arg2[%c1, %c0_29, %c0_30] : memref<16x4x32xf32, #tpu.memory_space<vmem>>, vector<1x4x32xf32>
    %47 = vector.shape_cast %46 : vector<1x4x32xf32> to vector<4x32xf32>
    %cst_31 = arith.constant dense<0.000000e+00> : vector<4x4xf32>
    %48 = tpu.matmul %47, %47, %cst_31 {dimension_numbers = #tpu.dot_dimension_numbers<[1], [1], [0], [0], [0, 0, 1, 0], [], []>} : vector<4x32xf32>, vector<4x32xf32>, vector<4x4xf32> -> vector<4x4xf32>
    %cst_32 = arith.constant 0.176776692 : f32
    %49 = vector.broadcast %cst_32 : f32 to vector<4x4xf32>
    %50 = arith.mulf %48, %49 : vector<4x4xf32>
    %cst_33 = arith.constant dense<0xFF800000> : vector<4xf32>
    %51 = vector.multi_reduction <maximumf>, %50, %cst_33 [1] : vector<4x4xf32> to vector<4xf32>
    %52 = vector.shape_cast %51 : vector<4xf32> to vector<4x1xf32>
    %53 = vector.broadcast %52 : vector<4x1xf32> to vector<4x4xf32>
    %54 = arith.subf %50, %53 : vector<4x4xf32>
    %55 = math.exp %54 : vector<4x4xf32>
    %cst_34 = arith.constant dense<0.000000e+00> : vector<4xf32>
    %56 = vector.multi_reduction <add>, %55, %cst_34 [1] : vector<4x4xf32> to vector<4xf32>
    %57 = vector.shape_cast %56 : vector<4xf32> to vector<4x1xf32>
    %58 = tpu.reciprocal %57 {approx = true} : vector<4x1xf32> -> vector<4x1xf32>
    %59 = vector.broadcast %58 : vector<4x1xf32> to vector<4x4xf32>
    %60 = arith.mulf %55, %59 : vector<4x4xf32>
    %cst_35 = arith.constant dense<0.000000e+00> : vector<4x32xf32>
    %61 = tpu.matmul %60, %47, %cst_35 {dimension_numbers = #tpu.dot_dimension_numbers<[1], [0], [0], [1], [0, 0, 1, 1], [], []>} : vector<4x4xf32>, vector<4x32xf32>, vector<4x32xf32> -> vector<4x32xf32>
    %62 = arith.addf %47, %61 : vector<4x32xf32>
    %c16 = arith.constant 16 : index
    %c0_36 = arith.constant 0 : index
    %63 = vector.load %arg10[%c16, %c0_36] : memref<256x32xf32, #tpu.memory_space<vmem>>, vector<16x32xf32>
    %64 = arith.addf %63, %7 : vector<16x32xf32>
    %cst_37 = arith.constant dense<0.000000e+00> : vector<4x16xf32>
    %65 = tpu.matmul %62, %64, %cst_37 {dimension_numbers = #tpu.dot_dimension_numbers<[1], [1], [0], [0], [0, 0, 1, 0], [], []>} : vector<4x32xf32>, vector<16x32xf32>, vector<4x16xf32> -> vector<4x16xf32>
    %cst_38 = arith.constant 0.176776692 : f32
    %66 = vector.broadcast %cst_38 : f32 to vector<4x16xf32>
    %67 = arith.mulf %65, %66 : vector<4x16xf32>
    %cst_39 = arith.constant dense<0xFF800000> : vector<4xf32>
    %68 = vector.multi_reduction <maximumf>, %67, %cst_39 [1] : vector<4x16xf32> to vector<4xf32>
    %69 = vector.shape_cast %68 : vector<4xf32> to vector<4x1xf32>
    %70 = vector.broadcast %69 : vector<4x1xf32> to vector<4x16xf32>
    %71 = arith.subf %67, %70 : vector<4x16xf32>
    %72 = math.exp %71 : vector<4x16xf32>
    %cst_40 = arith.constant dense<0.000000e+00> : vector<4xf32>
    %73 = vector.multi_reduction <add>, %72, %cst_40 [1] : vector<4x16xf32> to vector<4xf32>
    %74 = vector.shape_cast %73 : vector<4xf32> to vector<4x1xf32>
    %75 = tpu.reciprocal %74 {approx = true} : vector<4x1xf32> -> vector<4x1xf32>
    %76 = vector.broadcast %75 : vector<4x1xf32> to vector<4x16xf32>
    %77 = arith.mulf %72, %76 : vector<4x16xf32>
    %cst_41 = arith.constant dense<0.000000e+00> : vector<4x32xf32>
    %78 = tpu.matmul %77, %63, %cst_41 {dimension_numbers = #tpu.dot_dimension_numbers<[1], [0], [0], [1], [0, 0, 1, 1], [], []>} : vector<4x16xf32>, vector<16x32xf32>, vector<4x32xf32> -> vector<4x32xf32>
    %79 = vector.extract_strided_slice %78 {offsets = [0, 0], sizes = [1, 32], strides = [1, 1]} : vector<4x32xf32> to vector<1x32xf32>
    %c1_42 = arith.constant 1 : index
    %c0_43 = arith.constant 0 : index
    %80 = vector.load %arg12[%c1_42, %c0_43] : memref<16x32xf32, #tpu.memory_space<vmem>>, vector<1x32xf32>
    tpu.vector_store %arg12[%c1_42, %c0_43], %79 {strides = array<i32>} : memref<16x32xf32, #tpu.memory_space<vmem>>, vector<1x32xf32>,
    %81 = vector.extract_strided_slice %78 {offsets = [1, 0], sizes = [1, 32], strides = [1, 1]} : vector<4x32xf32> to vector<1x32xf32>
    %cst_44 = arith.constant dense<0.000000e+00> : vector<1x16xf32>
    %82 = tpu.matmul %81, %63, %cst_44 {dimension_numbers = #tpu.dot_dimension_numbers<[1], [1], [0], [0], [0, 0, 1, 0], [], []>} : vector<1x32xf32>, vector<16x32xf32>, vector<1x16xf32> -> vector<1x16xf32>
    %c1_45 = arith.constant 1 : index
    %c0_46 = arith.constant 0 : index
    %83 = vector.load %arg11[%c1_45, %c0_46] : memref<16x16xf32, #tpu.memory_space<vmem>>, vector<1x16xf32>
    tpu.vector_store %arg11[%c1_45, %c0_46], %82 {strides = array<i32>} : memref<16x16xf32, #tpu.memory_space<vmem>>, vector<1x16xf32>,
    %c2 = arith.constant 2 : index
    %c0_47 = arith.constant 0 : index
    %c0_48 = arith.constant 0 : index
    %84 = vector.load %arg2[%c2, %c0_47, %c0_48] : memref<16x4x32xf32, #tpu.memory_space<vmem>>, vector<1x4x32xf32>
    %85 = vector.shape_cast %84 : vector<1x4x32xf32> to vector<4x32xf32>
    %cst_49 = arith.constant dense<0.000000e+00> : vector<4x4xf32>
    %86 = tpu.matmul %85, %85, %cst_49 {dimension_numbers = #tpu.dot_dimension_numbers<[1], [1], [0], [0], [0, 0, 1, 0], [], []>} : vector<4x32xf32>, vector<4x32xf32>, vector<4x4xf32> -> vector<4x4xf32>
    %cst_50 = arith.constant 0.176776692 : f32
    %87 = vector.broadcast %cst_50 : f32 to vector<4x4xf32>
    %88 = arith.mulf %86, %87 : vector<4x4xf32>
    %cst_51 = arith.constant dense<0xFF800000> : vector<4xf32>
    %89 = vector.multi_reduction <maximumf>, %88, %cst_51 [1] : vector<4x4xf32> to vector<4xf32>
    %90 = vector.shape_cast %89 : vector<4xf32> to vector<4x1xf32>
    %91 = vector.broadcast %90 : vector<4x1xf32> to vector<4x4xf32>
    %92 = arith.subf %88, %91 : vector<4x4xf32>
    %93 = math.exp %92 : vector<4x4xf32>
    %cst_52 = arith.constant dense<0.000000e+00> : vector<4xf32>
    %94 = vector.multi_reduction <add>, %93, %cst_52 [1] : vector<4x4xf32> to vector<4xf32>
    %95 = vector.shape_cast %94 : vector<4xf32> to vector<4x1xf32>
    %96 = tpu.reciprocal %95 {approx = true} : vector<4x1xf32> -> vector<4x1xf32>
    %97 = vector.broadcast %96 : vector<4x1xf32> to vector<4x4xf32>
    %98 = arith.mulf %93, %97 : vector<4x4xf32>
    %cst_53 = arith.constant dense<0.000000e+00> : vector<4x32xf32>
    %99 = tpu.matmul %98, %85, %cst_53 {dimension_numbers = #tpu.dot_dimension_numbers<[1], [0], [0], [1], [0, 0, 1, 1], [], []>} : vector<4x4xf32>, vector<4x32xf32>, vector<4x32xf32> -> vector<4x32xf32>
    %100 = arith.addf %85, %99 : vector<4x32xf32>
    %c32 = arith.constant 32 : index
    %c0_54 = arith.constant 0 : index
    %101 = vector.load %arg10[%c32, %c0_54] : memref<256x32xf32, #tpu.memory_space<vmem>>, vector<16x32xf32>
    %102 = arith.addf %101, %7 : vector<16x32xf32>
    %cst_55 = arith.constant dense<0.000000e+00> : vector<4x16xf32>
    %103 = tpu.matmul %100, %102, %cst_55 {dimension_numbers = #tpu.dot_dimension_numbers<[1], [1], [0], [0], [0, 0, 1, 0], [], []>} : vector<4x32xf32>, vector<16x32xf32>, vector<4x16xf32> -> vector<4x16xf32>
    %cst_56 = arith.constant 0.176776692 : f32
    %104 = vector.broadcast %cst_56 : f32 to vector<4x16xf32>
    %105 = arith.mulf %103, %104 : vector<4x16xf32>
    %cst_57 = arith.constant dense<0xFF800000> : vector<4xf32>
    %106 = vector.multi_reduction <maximumf>, %105, %cst_57 [1] : vector<4x16xf32> to vector<4xf32>
    %107 = vector.shape_cast %106 : vector<4xf32> to vector<4x1xf32>
    %108 = vector.broadcast %107 : vector<4x1xf32> to vector<4x16xf32>
    %109 = arith.subf %105, %108 : vector<4x16xf32>
    %110 = math.exp %109 : vector<4x16xf32>
    %cst_58 = arith.constant dense<0.000000e+00> : vector<4xf32>
    %111 = vector.multi_reduction <add>, %110, %cst_58 [1] : vector<4x16xf32> to vector<4xf32>
    %112 = vector.shape_cast %111 : vector<4xf32> to vector<4x1xf32>
    %113 = tpu.reciprocal %112 {approx = true} : vector<4x1xf32> -> vector<4x1xf32>
    %114 = vector.broadcast %113 : vector<4x1xf32> to vector<4x16xf32>
    %115 = arith.mulf %110, %114 : vector<4x16xf32>
    %cst_59 = arith.constant dense<0.000000e+00> : vector<4x32xf32>
    %116 = tpu.matmul %115, %101, %cst_59 {dimension_numbers = #tpu.dot_dimension_numbers<[1], [0], [0], [1], [0, 0, 1, 1], [], []>} : vector<4x16xf32>, vector<16x32xf32>, vector<4x32xf32> -> vector<4x32xf32>
    %117 = vector.extract_strided_slice %116 {offsets = [0, 0], sizes = [1, 32], strides = [1, 1]} : vector<4x32xf32> to vector<1x32xf32>
    %c2_60 = arith.constant 2 : index
    %c0_61 = arith.constant 0 : index
    %118 = vector.load %arg12[%c2_60, %c0_61] : memref<16x32xf32, #tpu.memory_space<vmem>>, vector<1x32xf32>
    tpu.vector_store %arg12[%c2_60, %c0_61], %117 {strides = array<i32>} : memref<16x32xf32, #tpu.memory_space<vmem>>, vector<1x32xf32>,
    %119 = vector.extract_strided_slice %116 {offsets = [1, 0], sizes = [1, 32], strides = [1, 1]} : vector<4x32xf32> to vector<1x32xf32>
    %cst_62 = arith.constant dense<0.000000e+00> : vector<1x16xf32>
    %120 = tpu.matmul %119, %101, %cst_62 {dimension_numbers = #tpu.dot_dimension_numbers<[1], [1], [0], [0], [0, 0, 1, 0], [], []>} : vector<1x32xf32>, vector<16x32xf32>, vector<1x16xf32> -> vector<1x16xf32>
    %c2_63 = arith.constant 2 : index
    %c0_64 = arith.constant 0 : index
    %121 = vector.load %arg11[%c2_63, %c0_64] : memref<16x16xf32, #tpu.memory_space<vmem>>, vector<1x16xf32>
    tpu.vector_store %arg11[%c2_63, %c0_64], %120 {strides = array<i32>} : memref<16x16xf32, #tpu.memory_space<vmem>>, vector<1x16xf32>,
    %c3 = arith.constant 3 : index
    %c0_65 = arith.constant 0 : index
    %c0_66 = arith.constant 0 : index
    %122 = vector.load %arg2[%c3, %c0_65, %c0_66] : memref<16x4x32xf32, #tpu.memory_space<vmem>>, vector<1x4x32xf32>
    %123 = vector.shape_cast %122 : vector<1x4x32xf32> to vector<4x32xf32>
    %cst_67 = arith.constant dense<0.000000e+00> : vector<4x4xf32>
    %124 = tpu.matmul %123, %123, %cst_67 {dimension_numbers = #tpu.dot_dimension_numbers<[1], [1], [0], [0], [0, 0, 1, 0], [], []>} : vector<4x32xf32>, vector<4x32xf32>, vector<4x4xf32> -> vector<4x4xf32>
    %cst_68 = arith.constant 0.176776692 : f32
    %125 = vector.broadcast %cst_68 : f32 to vector<4x4xf32>
    %126 = arith.mulf %124, %125 : vector<4x4xf32>
    %cst_69 = arith.constant dense<0xFF800000> : vector<4xf32>
    %127 = vector.multi_reduction <maximumf>, %126, %cst_69 [1] : vector<4x4xf32> to vector<4xf32>
    %128 = vector.shape_cast %127 : vector<4xf32> to vector<4x1xf32>
    %129 = vector.broadcast %128 : vector<4x1xf32> to vector<4x4xf32>
    %130 = arith.subf %126, %129 : vector<4x4xf32>
    %131 = math.exp %130 : vector<4x4xf32>
    %cst_70 = arith.constant dense<0.000000e+00> : vector<4xf32>
    %132 = vector.multi_reduction <add>, %131, %cst_70 [1] : vector<4x4xf32> to vector<4xf32>
    %133 = vector.shape_cast %132 : vector<4xf32> to vector<4x1xf32>
    %134 = tpu.reciprocal %133 {approx = true} : vector<4x1xf32> -> vector<4x1xf32>
    %135 = vector.broadcast %134 : vector<4x1xf32> to vector<4x4xf32>
    %136 = arith.mulf %131, %135 : vector<4x4xf32>
    %cst_71 = arith.constant dense<0.000000e+00> : vector<4x32xf32>
    %137 = tpu.matmul %136, %123, %cst_71 {dimension_numbers = #tpu.dot_dimension_numbers<[1], [0], [0], [1], [0, 0, 1, 1], [], []>} : vector<4x4xf32>, vector<4x32xf32>, vector<4x32xf32> -> vector<4x32xf32>
    %138 = arith.addf %123, %137 : vector<4x32xf32>
    %c48 = arith.constant 48 : index
    %c0_72 = arith.constant 0 : index
    %139 = vector.load %arg10[%c48, %c0_72] : memref<256x32xf32, #tpu.memory_space<vmem>>, vector<16x32xf32>
    %140 = arith.addf %139, %7 : vector<16x32xf32>
    %cst_73 = arith.constant dense<0.000000e+00> : vector<4x16xf32>
    %141 = tpu.matmul %138, %140, %cst_73 {dimension_numbers = #tpu.dot_dimension_numbers<[1], [1], [0], [0], [0, 0, 1, 0], [], []>} : vector<4x32xf32>, vector<16x32xf32>, vector<4x16xf32> -> vector<4x16xf32>
    %cst_74 = arith.constant 0.176776692 : f32
    %142 = vector.broadcast %cst_74 : f32 to vector<4x16xf32>
    %143 = arith.mulf %141, %142 : vector<4x16xf32>
    %cst_75 = arith.constant dense<0xFF800000> : vector<4xf32>
    %144 = vector.multi_reduction <maximumf>, %143, %cst_75 [1] : vector<4x16xf32> to vector<4xf32>
    %145 = vector.shape_cast %144 : vector<4xf32> to vector<4x1xf32>
    %146 = vector.broadcast %145 : vector<4x1xf32> to vector<4x16xf32>
    %147 = arith.subf %143, %146 : vector<4x16xf32>
    %148 = math.exp %147 : vector<4x16xf32>
    %cst_76 = arith.constant dense<0.000000e+00> : vector<4xf32>
    %149 = vector.multi_reduction <add>, %148, %cst_76 [1] : vector<4x16xf32> to vector<4xf32>
    %150 = vector.shape_cast %149 : vector<4xf32> to vector<4x1xf32>
    %151 = tpu.reciprocal %150 {approx = true} : vector<4x1xf32> -> vector<4x1xf32>
    %152 = vector.broadcast %151 : vector<4x1xf32> to vector<4x16xf32>
    %153 = arith.mulf %148, %152 : vector<4x16xf32>
    %cst_77 = arith.constant dense<0.000000e+00> : vector<4x32xf32>
    %154 = tpu.matmul %153, %139, %cst_77 {dimension_numbers = #tpu.dot_dimension_numbers<[1], [0], [0], [1], [0, 0, 1, 1], [], []>} : vector<4x16xf32>, vector<16x32xf32>, vector<4x32xf32> -> vector<4x32xf32>
    %155 = vector.extract_strided_slice %154 {offsets = [0, 0], sizes = [1, 32], strides = [1, 1]} : vector<4x32xf32> to vector<1x32xf32>
    %c3_78 = arith.constant 3 : index
    %c0_79 = arith.constant 0 : index
    %156 = vector.load %arg12[%c3_78, %c0_79] : memref<16x32xf32, #tpu.memory_space<vmem>>, vector<1x32xf32>
    tpu.vector_store %arg12[%c3_78, %c0_79], %155 {strides = array<i32>} : memref<16x32xf32, #tpu.memory_space<vmem>>, vector<1x32xf32>,
    %157 = vector.extract_strided_slice %154 {offsets = [1, 0], sizes = [1, 32], strides = [1, 1]} : vector<4x32xf32> to vector<1x32xf32>
    %cst_80 = arith.constant dense<0.000000e+00> : vector<1x16xf32>
    %158 = tpu.matmul %157, %139, %cst_80 {dimension_numbers = #tpu.dot_dimension_numbers<[1], [1], [0], [0], [0, 0, 1, 0], [], []>} : vector<1x32xf32>, vector<16x32xf32>, vector<1x16xf32> -> vector<1x16xf32>
    %c3_81 = arith.constant 3 : index
    %c0_82 = arith.constant 0 : index
    %159 = vector.load %arg11[%c3_81, %c0_82] : memref<16x16xf32, #tpu.memory_space<vmem>>, vector<1x16xf32>
    tpu.vector_store %arg11[%c3_81, %c0_82], %158 {strides = array<i32>} : memref<16x16xf32, #tpu.memory_space<vmem>>, vector<1x16xf32>,
    %c4 = arith.constant 4 : index
    %c0_83 = arith.constant 0 : index
    %c0_84 = arith.constant 0 : index
    %160 = vector.load %arg2[%c4, %c0_83, %c0_84] : memref<16x4x32xf32, #tpu.memory_space<vmem>>, vector<1x4x32xf32>
    %161 = vector.shape_cast %160 : vector<1x4x32xf32> to vector<4x32xf32>
    %cst_85 = arith.constant dense<0.000000e+00> : vector<4x4xf32>
    %162 = tpu.matmul %161, %161, %cst_85 {dimension_numbers = #tpu.dot_dimension_numbers<[1], [1], [0], [0], [0, 0, 1, 0], [], []>} : vector<4x32xf32>, vector<4x32xf32>, vector<4x4xf32> -> vector<4x4xf32>
    %cst_86 = arith.constant 0.176776692 : f32
    %163 = vector.broadcast %cst_86 : f32 to vector<4x4xf32>
    %164 = arith.mulf %162, %163 : vector<4x4xf32>
    %cst_87 = arith.constant dense<0xFF800000> : vector<4xf32>
    %165 = vector.multi_reduction <maximumf>, %164, %cst_87 [1] : vector<4x4xf32> to vector<4xf32>
    %166 = vector.shape_cast %165 : vector<4xf32> to vector<4x1xf32>
    %167 = vector.broadcast %166 : vector<4x1xf32> to vector<4x4xf32>
    %168 = arith.subf %164, %167 : vector<4x4xf32>
    %169 = math.exp %168 : vector<4x4xf32>
    %cst_88 = arith.constant dense<0.000000e+00> : vector<4xf32>
    %170 = vector.multi_reduction <add>, %169, %cst_88 [1] : vector<4x4xf32> to vector<4xf32>
    %171 = vector.shape_cast %170 : vector<4xf32> to vector<4x1xf32>
    %172 = tpu.reciprocal %171 {approx = true} : vector<4x1xf32> -> vector<4x1xf32>
    %173 = vector.broadcast %172 : vector<4x1xf32> to vector<4x4xf32>
    %174 = arith.mulf %169, %173 : vector<4x4xf32>
    %cst_89 = arith.constant dense<0.000000e+00> : vector<4x32xf32>
    %175 = tpu.matmul %174, %161, %cst_89 {dimension_numbers = #tpu.dot_dimension_numbers<[1], [0], [0], [1], [0, 0, 1, 1], [], []>} : vector<4x4xf32>, vector<4x32xf32>, vector<4x32xf32> -> vector<4x32xf32>
    %176 = arith.addf %161, %175 : vector<4x32xf32>
    %c64 = arith.constant 64 : index
    %c0_90 = arith.constant 0 : index
    %177 = vector.load %arg10[%c64, %c0_90] : memref<256x32xf32, #tpu.memory_space<vmem>>, vector<16x32xf32>
    %178 = arith.addf %177, %7 : vector<16x32xf32>
    %cst_91 = arith.constant dense<0.000000e+00> : vector<4x16xf32>
    %179 = tpu.matmul %176, %178, %cst_91 {dimension_numbers = #tpu.dot_dimension_numbers<[1], [1], [0], [0], [0, 0, 1, 0], [], []>} : vector<4x32xf32>, vector<16x32xf32>, vector<4x16xf32> -> vector<4x16xf32>
    %cst_92 = arith.constant 0.176776692 : f32
    %180 = vector.broadcast %cst_92 : f32 to vector<4x16xf32>
    %181 = arith.mulf %179, %180 : vector<4x16xf32>
    %cst_93 = arith.constant dense<0xFF800000> : vector<4xf32>
    %182 = vector.multi_reduction <maximumf>, %181, %cst_93 [1] : vector<4x16xf32> to vector<4xf32>
    %183 = vector.shape_cast %182 : vector<4xf32> to vector<4x1xf32>
    %184 = vector.broadcast %183 : vector<4x1xf32> to vector<4x16xf32>
    %185 = arith.subf %181, %184 : vector<4x16xf32>
    %186 = math.exp %185 : vector<4x16xf32>
    %cst_94 = arith.constant dense<0.000000e+00> : vector<4xf32>
    %187 = vector.multi_reduction <add>, %186, %cst_94 [1] : vector<4x16xf32> to vector<4xf32>
    %188 = vector.shape_cast %187 : vector<4xf32> to vector<4x1xf32>
    %189 = tpu.reciprocal %188 {approx = true} : vector<4x1xf32> -> vector<4x1xf32>
    %190 = vector.broadcast %189 : vector<4x1xf32> to vector<4x16xf32>
    %191 = arith.mulf %186, %190 : vector<4x16xf32>
    %cst_95 = arith.constant dense<0.000000e+00> : vector<4x32xf32>
    %192 = tpu.matmul %191, %177, %cst_95 {dimension_numbers = #tpu.dot_dimension_numbers<[1], [0], [0], [1], [0, 0, 1, 1], [], []>} : vector<4x16xf32>, vector<16x32xf32>, vector<4x32xf32> -> vector<4x32xf32>
    %193 = vector.extract_strided_slice %192 {offsets = [0, 0], sizes = [1, 32], strides = [1, 1]} : vector<4x32xf32> to vector<1x32xf32>
    %c4_96 = arith.constant 4 : index
    %c0_97 = arith.constant 0 : index
    %194 = vector.load %arg12[%c4_96, %c0_97] : memref<16x32xf32, #tpu.memory_space<vmem>>, vector<1x32xf32>
    tpu.vector_store %arg12[%c4_96, %c0_97], %193 {strides = array<i32>} : memref<16x32xf32, #tpu.memory_space<vmem>>, vector<1x32xf32>,
    %195 = vector.extract_strided_slice %192 {offsets = [1, 0], sizes = [1, 32], strides = [1, 1]} : vector<4x32xf32> to vector<1x32xf32>
    %cst_98 = arith.constant dense<0.000000e+00> : vector<1x16xf32>
    %196 = tpu.matmul %195, %177, %cst_98 {dimension_numbers = #tpu.dot_dimension_numbers<[1], [1], [0], [0], [0, 0, 1, 0], [], []>} : vector<1x32xf32>, vector<16x32xf32>, vector<1x16xf32> -> vector<1x16xf32>
    %c4_99 = arith.constant 4 : index
    %c0_100 = arith.constant 0 : index
    %197 = vector.load %arg11[%c4_99, %c0_100] : memref<16x16xf32, #tpu.memory_space<vmem>>, vector<1x16xf32>
    tpu.vector_store %arg11[%c4_99, %c0_100], %196 {strides = array<i32>} : memref<16x16xf32, #tpu.memory_space<vmem>>, vector<1x16xf32>,
    %c5 = arith.constant 5 : index
    %c0_101 = arith.constant 0 : index
    %c0_102 = arith.constant 0 : index
    %198 = vector.load %arg2[%c5, %c0_101, %c0_102] : memref<16x4x32xf32, #tpu.memory_space<vmem>>, vector<1x4x32xf32>
    %199 = vector.shape_cast %198 : vector<1x4x32xf32> to vector<4x32xf32>
    %cst_103 = arith.constant dense<0.000000e+00> : vector<4x4xf32>
    %200 = tpu.matmul %199, %199, %cst_103 {dimension_numbers = #tpu.dot_dimension_numbers<[1], [1], [0], [0], [0, 0, 1, 0], [], []>} : vector<4x32xf32>, vector<4x32xf32>, vector<4x4xf32> -> vector<4x4xf32>
    %cst_104 = arith.constant 0.176776692 : f32
    %201 = vector.broadcast %cst_104 : f32 to vector<4x4xf32>
    %202 = arith.mulf %200, %201 : vector<4x4xf32>
    %cst_105 = arith.constant dense<0xFF800000> : vector<4xf32>
    %203 = vector.multi_reduction <maximumf>, %202, %cst_105 [1] : vector<4x4xf32> to vector<4xf32>
    %204 = vector.shape_cast %203 : vector<4xf32> to vector<4x1xf32>
    %205 = vector.broadcast %204 : vector<4x1xf32> to vector<4x4xf32>
    %206 = arith.subf %202, %205 : vector<4x4xf32>
    %207 = math.exp %206 : vector<4x4xf32>
    %cst_106 = arith.constant dense<0.000000e+00> : vector<4xf32>
    %208 = vector.multi_reduction <add>, %207, %cst_106 [1] : vector<4x4xf32> to vector<4xf32>
    %209 = vector.shape_cast %208 : vector<4xf32> to vector<4x1xf32>
    %210 = tpu.reciprocal %209 {approx = true} : vector<4x1xf32> -> vector<4x1xf32>
    %211 = vector.broadcast %210 : vector<4x1xf32> to vector<4x4xf32>
    %212 = arith.mulf %207, %211 : vector<4x4xf32>
    %cst_107 = arith.constant dense<0.000000e+00> : vector<4x32xf32>
    %213 = tpu.matmul %212, %199, %cst_107 {dimension_numbers = #tpu.dot_dimension_numbers<[1], [0], [0], [1], [0, 0, 1, 1], [], []>} : vector<4x4xf32>, vector<4x32xf32>, vector<4x32xf32> -> vector<4x32xf32>
    %214 = arith.addf %199, %213 : vector<4x32xf32>
    %c80 = arith.constant 80 : index
    %c0_108 = arith.constant 0 : index
    %215 = vector.load %arg10[%c80, %c0_108] : memref<256x32xf32, #tpu.memory_space<vmem>>, vector<16x32xf32>
    %216 = arith.addf %215, %7 : vector<16x32xf32>
    %cst_109 = arith.constant dense<0.000000e+00> : vector<4x16xf32>
    %217 = tpu.matmul %214, %216, %cst_109 {dimension_numbers = #tpu.dot_dimension_numbers<[1], [1], [0], [0], [0, 0, 1, 0], [], []>} : vector<4x32xf32>, vector<16x32xf32>, vector<4x16xf32> -> vector<4x16xf32>
    %cst_110 = arith.constant 0.176776692 : f32
    %218 = vector.broadcast %cst_110 : f32 to vector<4x16xf32>
    %219 = arith.mulf %217, %218 : vector<4x16xf32>
    %cst_111 = arith.constant dense<0xFF800000> : vector<4xf32>
    %220 = vector.multi_reduction <maximumf>, %219, %cst_111 [1] : vector<4x16xf32> to vector<4xf32>
    %221 = vector.shape_cast %220 : vector<4xf32> to vector<4x1xf32>
    %222 = vector.broadcast %221 : vector<4x1xf32> to vector<4x16xf32>
    %223 = arith.subf %219, %222 : vector<4x16xf32>
    %224 = math.exp %223 : vector<4x16xf32>
    %cst_112 = arith.constant dense<0.000000e+00> : vector<4xf32>
    %225 = vector.multi_reduction <add>, %224, %cst_112 [1] : vector<4x16xf32> to vector<4xf32>
    %226 = vector.shape_cast %225 : vector<4xf32> to vector<4x1xf32>
    %227 = tpu.reciprocal %226 {approx = true} : vector<4x1xf32> -> vector<4x1xf32>
    %228 = vector.broadcast %227 : vector<4x1xf32> to vector<4x16xf32>
    %229 = arith.mulf %224, %228 : vector<4x16xf32>
    %cst_113 = arith.constant dense<0.000000e+00> : vector<4x32xf32>
    %230 = tpu.matmul %229, %215, %cst_113 {dimension_numbers = #tpu.dot_dimension_numbers<[1], [0], [0], [1], [0, 0, 1, 1], [], []>} : vector<4x16xf32>, vector<16x32xf32>, vector<4x32xf32> -> vector<4x32xf32>
    %231 = vector.extract_strided_slice %230 {offsets = [0, 0], sizes = [1, 32], strides = [1, 1]} : vector<4x32xf32> to vector<1x32xf32>
    %c5_114 = arith.constant 5 : index
    %c0_115 = arith.constant 0 : index
    %232 = vector.load %arg12[%c5_114, %c0_115] : memref<16x32xf32, #tpu.memory_space<vmem>>, vector<1x32xf32>
    tpu.vector_store %arg12[%c5_114, %c0_115], %231 {strides = array<i32>} : memref<16x32xf32, #tpu.memory_space<vmem>>, vector<1x32xf32>,
    %233 = vector.extract_strided_slice %230 {offsets = [1, 0], sizes = [1, 32], strides = [1, 1]} : vector<4x32xf32> to vector<1x32xf32>
    %cst_116 = arith.constant dense<0.000000e+00> : vector<1x16xf32>
    %234 = tpu.matmul %233, %215, %cst_116 {dimension_numbers = #tpu.dot_dimension_numbers<[1], [1], [0], [0], [0, 0, 1, 0], [], []>} : vector<1x32xf32>, vector<16x32xf32>, vector<1x16xf32> -> vector<1x16xf32>
    %c5_117 = arith.constant 5 : index
    %c0_118 = arith.constant 0 : index
    %235 = vector.load %arg11[%c5_117, %c0_118] : memref<16x16xf32, #tpu.memory_space<vmem>>, vector<1x16xf32>
    tpu.vector_store %arg11[%c5_117, %c0_118], %234 {strides = array<i32>} : memref<16x16xf32, #tpu.memory_space<vmem>>, vector<1x16xf32>,
    %c6 = arith.constant 6 : index
    %c0_119 = arith.constant 0 : index
    %c0_120 = arith.constant 0 : index
    %236 = vector.load %arg2[%c6, %c0_119, %c0_120] : memref<16x4x32xf32, #tpu.memory_space<vmem>>, vector<1x4x32xf32>
    %237 = vector.shape_cast %236 : vector<1x4x32xf32> to vector<4x32xf32>
    %cst_121 = arith.constant dense<0.000000e+00> : vector<4x4xf32>
    %238 = tpu.matmul %237, %237, %cst_121 {dimension_numbers = #tpu.dot_dimension_numbers<[1], [1], [0], [0], [0, 0, 1, 0], [], []>} : vector<4x32xf32>, vector<4x32xf32>, vector<4x4xf32> -> vector<4x4xf32>
    %cst_122 = arith.constant 0.176776692 : f32
    %239 = vector.broadcast %cst_122 : f32 to vector<4x4xf32>
    %240 = arith.mulf %238, %239 : vector<4x4xf32>
    %cst_123 = arith.constant dense<0xFF800000> : vector<4xf32>
    %241 = vector.multi_reduction <maximumf>, %240, %cst_123 [1] : vector<4x4xf32> to vector<4xf32>
    %242 = vector.shape_cast %241 : vector<4xf32> to vector<4x1xf32>
    %243 = vector.broadcast %242 : vector<4x1xf32> to vector<4x4xf32>
    %244 = arith.subf %240, %243 : vector<4x4xf32>
    %245 = math.exp %244 : vector<4x4xf32>
    %cst_124 = arith.constant dense<0.000000e+00> : vector<4xf32>
    %246 = vector.multi_reduction <add>, %245, %cst_124 [1] : vector<4x4xf32> to vector<4xf32>
    %247 = vector.shape_cast %246 : vector<4xf32> to vector<4x1xf32>
    %248 = tpu.reciprocal %247 {approx = true} : vector<4x1xf32> -> vector<4x1xf32>
    %249 = vector.broadcast %248 : vector<4x1xf32> to vector<4x4xf32>
    %250 = arith.mulf %245, %249 : vector<4x4xf32>
    %cst_125 = arith.constant dense<0.000000e+00> : vector<4x32xf32>
    %251 = tpu.matmul %250, %237, %cst_125 {dimension_numbers = #tpu.dot_dimension_numbers<[1], [0], [0], [1], [0, 0, 1, 1], [], []>} : vector<4x4xf32>, vector<4x32xf32>, vector<4x32xf32> -> vector<4x32xf32>
    %252 = arith.addf %237, %251 : vector<4x32xf32>
    %c96 = arith.constant 96 : index
    %c0_126 = arith.constant 0 : index
    %253 = vector.load %arg10[%c96, %c0_126] : memref<256x32xf32, #tpu.memory_space<vmem>>, vector<16x32xf32>
    %254 = arith.addf %253, %7 : vector<16x32xf32>
    %cst_127 = arith.constant dense<0.000000e+00> : vector<4x16xf32>
    %255 = tpu.matmul %252, %254, %cst_127 {dimension_numbers = #tpu.dot_dimension_numbers<[1], [1], [0], [0], [0, 0, 1, 0], [], []>} : vector<4x32xf32>, vector<16x32xf32>, vector<4x16xf32> -> vector<4x16xf32>
    %cst_128 = arith.constant 0.176776692 : f32
    %256 = vector.broadcast %cst_128 : f32 to vector<4x16xf32>
    %257 = arith.mulf %255, %256 : vector<4x16xf32>
    %cst_129 = arith.constant dense<0xFF800000> : vector<4xf32>
    %258 = vector.multi_reduction <maximumf>, %257, %cst_129 [1] : vector<4x16xf32> to vector<4xf32>
    %259 = vector.shape_cast %258 : vector<4xf32> to vector<4x1xf32>
    %260 = vector.broadcast %259 : vector<4x1xf32> to vector<4x16xf32>
    %261 = arith.subf %257, %260 : vector<4x16xf32>
    %262 = math.exp %261 : vector<4x16xf32>
    %cst_130 = arith.constant dense<0.000000e+00> : vector<4xf32>
    %263 = vector.multi_reduction <add>, %262, %cst_130 [1] : vector<4x16xf32> to vector<4xf32>
    %264 = vector.shape_cast %263 : vector<4xf32> to vector<4x1xf32>
    %265 = tpu.reciprocal %264 {approx = true} : vector<4x1xf32> -> vector<4x1xf32>
    %266 = vector.broadcast %265 : vector<4x1xf32> to vector<4x16xf32>
    %267 = arith.mulf %262, %266 : vector<4x16xf32>
    %cst_131 = arith.constant dense<0.000000e+00> : vector<4x32xf32>
    %268 = tpu.matmul %267, %253, %cst_131 {dimension_numbers = #tpu.dot_dimension_numbers<[1], [0], [0], [1], [0, 0, 1, 1], [], []>} : vector<4x16xf32>, vector<16x32xf32>, vector<4x32xf32> -> vector<4x32xf32>
    %269 = vector.extract_strided_slice %268 {offsets = [0, 0], sizes = [1, 32], strides = [1, 1]} : vector<4x32xf32> to vector<1x32xf32>
    %c6_132 = arith.constant 6 : index
    %c0_133 = arith.constant 0 : index
    %270 = vector.load %arg12[%c6_132, %c0_133] : memref<16x32xf32, #tpu.memory_space<vmem>>, vector<1x32xf32>
    tpu.vector_store %arg12[%c6_132, %c0_133], %269 {strides = array<i32>} : memref<16x32xf32, #tpu.memory_space<vmem>>, vector<1x32xf32>,
    %271 = vector.extract_strided_slice %268 {offsets = [1, 0], sizes = [1, 32], strides = [1, 1]} : vector<4x32xf32> to vector<1x32xf32>
    %cst_134 = arith.constant dense<0.000000e+00> : vector<1x16xf32>
    %272 = tpu.matmul %271, %253, %cst_134 {dimension_numbers = #tpu.dot_dimension_numbers<[1], [1], [0], [0], [0, 0, 1, 0], [], []>} : vector<1x32xf32>, vector<16x32xf32>, vector<1x16xf32> -> vector<1x16xf32>
    %c6_135 = arith.constant 6 : index
    %c0_136 = arith.constant 0 : index
    %273 = vector.load %arg11[%c6_135, %c0_136] : memref<16x16xf32, #tpu.memory_space<vmem>>, vector<1x16xf32>
    tpu.vector_store %arg11[%c6_135, %c0_136], %272 {strides = array<i32>} : memref<16x16xf32, #tpu.memory_space<vmem>>, vector<1x16xf32>,
    %c7 = arith.constant 7 : index
    %c0_137 = arith.constant 0 : index
    %c0_138 = arith.constant 0 : index
    %274 = vector.load %arg2[%c7, %c0_137, %c0_138] : memref<16x4x32xf32, #tpu.memory_space<vmem>>, vector<1x4x32xf32>
    %275 = vector.shape_cast %274 : vector<1x4x32xf32> to vector<4x32xf32>
    %cst_139 = arith.constant dense<0.000000e+00> : vector<4x4xf32>
    %276 = tpu.matmul %275, %275, %cst_139 {dimension_numbers = #tpu.dot_dimension_numbers<[1], [1], [0], [0], [0, 0, 1, 0], [], []>} : vector<4x32xf32>, vector<4x32xf32>, vector<4x4xf32> -> vector<4x4xf32>
    %cst_140 = arith.constant 0.176776692 : f32
    %277 = vector.broadcast %cst_140 : f32 to vector<4x4xf32>
    %278 = arith.mulf %276, %277 : vector<4x4xf32>
    %cst_141 = arith.constant dense<0xFF800000> : vector<4xf32>
    %279 = vector.multi_reduction <maximumf>, %278, %cst_141 [1] : vector<4x4xf32> to vector<4xf32>
    %280 = vector.shape_cast %279 : vector<4xf32> to vector<4x1xf32>
    %281 = vector.broadcast %280 : vector<4x1xf32> to vector<4x4xf32>
    %282 = arith.subf %278, %281 : vector<4x4xf32>
    %283 = math.exp %282 : vector<4x4xf32>
    %cst_142 = arith.constant dense<0.000000e+00> : vector<4xf32>
    %284 = vector.multi_reduction <add>, %283, %cst_142 [1] : vector<4x4xf32> to vector<4xf32>
    %285 = vector.shape_cast %284 : vector<4xf32> to vector<4x1xf32>
    %286 = tpu.reciprocal %285 {approx = true} : vector<4x1xf32> -> vector<4x1xf32>
    %287 = vector.broadcast %286 : vector<4x1xf32> to vector<4x4xf32>
    %288 = arith.mulf %283, %287 : vector<4x4xf32>
    %cst_143 = arith.constant dense<0.000000e+00> : vector<4x32xf32>
    %289 = tpu.matmul %288, %275, %cst_143 {dimension_numbers = #tpu.dot_dimension_numbers<[1], [0], [0], [1], [0, 0, 1, 1], [], []>} : vector<4x4xf32>, vector<4x32xf32>, vector<4x32xf32> -> vector<4x32xf32>
    %290 = arith.addf %275, %289 : vector<4x32xf32>
    %c112 = arith.constant 112 : index
    %c0_144 = arith.constant 0 : index
    %291 = vector.load %arg10[%c112, %c0_144] : memref<256x32xf32, #tpu.memory_space<vmem>>, vector<16x32xf32>
    %292 = arith.addf %291, %7 : vector<16x32xf32>
    %cst_145 = arith.constant dense<0.000000e+00> : vector<4x16xf32>
    %293 = tpu.matmul %290, %292, %cst_145 {dimension_numbers = #tpu.dot_dimension_numbers<[1], [1], [0], [0], [0, 0, 1, 0], [], []>} : vector<4x32xf32>, vector<16x32xf32>, vector<4x16xf32> -> vector<4x16xf32>
    %cst_146 = arith.constant 0.176776692 : f32
    %294 = vector.broadcast %cst_146 : f32 to vector<4x16xf32>
    %295 = arith.mulf %293, %294 : vector<4x16xf32>
    %cst_147 = arith.constant dense<0xFF800000> : vector<4xf32>
    %296 = vector.multi_reduction <maximumf>, %295, %cst_147 [1] : vector<4x16xf32> to vector<4xf32>
    %297 = vector.shape_cast %296 : vector<4xf32> to vector<4x1xf32>
    %298 = vector.broadcast %297 : vector<4x1xf32> to vector<4x16xf32>
    %299 = arith.subf %295, %298 : vector<4x16xf32>
    %300 = math.exp %299 : vector<4x16xf32>
    %cst_148 = arith.constant dense<0.000000e+00> : vector<4xf32>
    %301 = vector.multi_reduction <add>, %300, %cst_148 [1] : vector<4x16xf32> to vector<4xf32>
    %302 = vector.shape_cast %301 : vector<4xf32> to vector<4x1xf32>
    %303 = tpu.reciprocal %302 {approx = true} : vector<4x1xf32> -> vector<4x1xf32>
    %304 = vector.broadcast %303 : vector<4x1xf32> to vector<4x16xf32>
    %305 = arith.mulf %300, %304 : vector<4x16xf32>
    %cst_149 = arith.constant dense<0.000000e+00> : vector<4x32xf32>
    %306 = tpu.matmul %305, %291, %cst_149 {dimension_numbers = #tpu.dot_dimension_numbers<[1], [0], [0], [1], [0, 0, 1, 1], [], []>} : vector<4x16xf32>, vector<16x32xf32>, vector<4x32xf32> -> vector<4x32xf32>
    %307 = vector.extract_strided_slice %306 {offsets = [0, 0], sizes = [1, 32], strides = [1, 1]} : vector<4x32xf32> to vector<1x32xf32>
    %c7_150 = arith.constant 7 : index
    %c0_151 = arith.constant 0 : index
    %308 = vector.load %arg12[%c7_150, %c0_151] : memref<16x32xf32, #tpu.memory_space<vmem>>, vector<1x32xf32>
    tpu.vector_store %arg12[%c7_150, %c0_151], %307 {strides = array<i32>} : memref<16x32xf32, #tpu.memory_space<vmem>>, vector<1x32xf32>,
    %309 = vector.extract_strided_slice %306 {offsets = [1, 0], sizes = [1, 32], strides = [1, 1]} : vector<4x32xf32> to vector<1x32xf32>
    %cst_152 = arith.constant dense<0.000000e+00> : vector<1x16xf32>
    %310 = tpu.matmul %309, %291, %cst_152 {dimension_numbers = #tpu.dot_dimension_numbers<[1], [1], [0], [0], [0, 0, 1, 0], [], []>} : vector<1x32xf32>, vector<16x32xf32>, vector<1x16xf32> -> vector<1x16xf32>
    %c7_153 = arith.constant 7 : index
    %c0_154 = arith.constant 0 : index
    %311 = vector.load %arg11[%c7_153, %c0_154] : memref<16x16xf32, #tpu.memory_space<vmem>>, vector<1x16xf32>
    tpu.vector_store %arg11[%c7_153, %c0_154], %310 {strides = array<i32>} : memref<16x16xf32, #tpu.memory_space<vmem>>, vector<1x16xf32>,
    %c8 = arith.constant 8 : index
    %c0_155 = arith.constant 0 : index
    %c0_156 = arith.constant 0 : index
    %312 = vector.load %arg2[%c8, %c0_155, %c0_156] : memref<16x4x32xf32, #tpu.memory_space<vmem>>, vector<1x4x32xf32>
    %313 = vector.shape_cast %312 : vector<1x4x32xf32> to vector<4x32xf32>
    %cst_157 = arith.constant dense<0.000000e+00> : vector<4x4xf32>
    %314 = tpu.matmul %313, %313, %cst_157 {dimension_numbers = #tpu.dot_dimension_numbers<[1], [1], [0], [0], [0, 0, 1, 0], [], []>} : vector<4x32xf32>, vector<4x32xf32>, vector<4x4xf32> -> vector<4x4xf32>
    %cst_158 = arith.constant 0.176776692 : f32
    %315 = vector.broadcast %cst_158 : f32 to vector<4x4xf32>
    %316 = arith.mulf %314, %315 : vector<4x4xf32>
    %cst_159 = arith.constant dense<0xFF800000> : vector<4xf32>
    %317 = vector.multi_reduction <maximumf>, %316, %cst_159 [1] : vector<4x4xf32> to vector<4xf32>
    %318 = vector.shape_cast %317 : vector<4xf32> to vector<4x1xf32>
    %319 = vector.broadcast %318 : vector<4x1xf32> to vector<4x4xf32>
    %320 = arith.subf %316, %319 : vector<4x4xf32>
    %321 = math.exp %320 : vector<4x4xf32>
    %cst_160 = arith.constant dense<0.000000e+00> : vector<4xf32>
    %322 = vector.multi_reduction <add>, %321, %cst_160 [1] : vector<4x4xf32> to vector<4xf32>
    %323 = vector.shape_cast %322 : vector<4xf32> to vector<4x1xf32>
    %324 = tpu.reciprocal %323 {approx = true} : vector<4x1xf32> -> vector<4x1xf32>
    %325 = vector.broadcast %324 : vector<4x1xf32> to vector<4x4xf32>
    %326 = arith.mulf %321, %325 : vector<4x4xf32>
    %cst_161 = arith.constant dense<0.000000e+00> : vector<4x32xf32>
    %327 = tpu.matmul %326, %313, %cst_161 {dimension_numbers = #tpu.dot_dimension_numbers<[1], [0], [0], [1], [0, 0, 1, 1], [], []>} : vector<4x4xf32>, vector<4x32xf32>, vector<4x32xf32> -> vector<4x32xf32>
    %328 = arith.addf %313, %327 : vector<4x32xf32>
    %c128 = arith.constant 128 : index
    %c0_162 = arith.constant 0 : index
    %329 = vector.load %arg10[%c128, %c0_162] : memref<256x32xf32, #tpu.memory_space<vmem>>, vector<16x32xf32>
    %330 = arith.addf %329, %7 : vector<16x32xf32>
    %cst_163 = arith.constant dense<0.000000e+00> : vector<4x16xf32>
    %331 = tpu.matmul %328, %330, %cst_163 {dimension_numbers = #tpu.dot_dimension_numbers<[1], [1], [0], [0], [0, 0, 1, 0], [], []>} : vector<4x32xf32>, vector<16x32xf32>, vector<4x16xf32> -> vector<4x16xf32>
    %cst_164 = arith.constant 0.176776692 : f32
    %332 = vector.broadcast %cst_164 : f32 to vector<4x16xf32>
    %333 = arith.mulf %331, %332 : vector<4x16xf32>
    %cst_165 = arith.constant dense<0xFF800000> : vector<4xf32>
    %334 = vector.multi_reduction <maximumf>, %333, %cst_165 [1] : vector<4x16xf32> to vector<4xf32>
    %335 = vector.shape_cast %334 : vector<4xf32> to vector<4x1xf32>
    %336 = vector.broadcast %335 : vector<4x1xf32> to vector<4x16xf32>
    %337 = arith.subf %333, %336 : vector<4x16xf32>
    %338 = math.exp %337 : vector<4x16xf32>
    %cst_166 = arith.constant dense<0.000000e+00> : vector<4xf32>
    %339 = vector.multi_reduction <add>, %338, %cst_166 [1] : vector<4x16xf32> to vector<4xf32>
    %340 = vector.shape_cast %339 : vector<4xf32> to vector<4x1xf32>
    %341 = tpu.reciprocal %340 {approx = true} : vector<4x1xf32> -> vector<4x1xf32>
    %342 = vector.broadcast %341 : vector<4x1xf32> to vector<4x16xf32>
    %343 = arith.mulf %338, %342 : vector<4x16xf32>
    %cst_167 = arith.constant dense<0.000000e+00> : vector<4x32xf32>
    %344 = tpu.matmul %343, %329, %cst_167 {dimension_numbers = #tpu.dot_dimension_numbers<[1], [0], [0], [1], [0, 0, 1, 1], [], []>} : vector<4x16xf32>, vector<16x32xf32>, vector<4x32xf32> -> vector<4x32xf32>
    %345 = vector.extract_strided_slice %344 {offsets = [0, 0], sizes = [1, 32], strides = [1, 1]} : vector<4x32xf32> to vector<1x32xf32>
    %c8_168 = arith.constant 8 : index
    %c0_169 = arith.constant 0 : index
    %346 = vector.load %arg12[%c8_168, %c0_169] : memref<16x32xf32, #tpu.memory_space<vmem>>, vector<1x32xf32>
    tpu.vector_store %arg12[%c8_168, %c0_169], %345 {strides = array<i32>} : memref<16x32xf32, #tpu.memory_space<vmem>>, vector<1x32xf32>,
    %347 = vector.extract_strided_slice %344 {offsets = [1, 0], sizes = [1, 32], strides = [1, 1]} : vector<4x32xf32> to vector<1x32xf32>
    %cst_170 = arith.constant dense<0.000000e+00> : vector<1x16xf32>
    %348 = tpu.matmul %347, %329, %cst_170 {dimension_numbers = #tpu.dot_dimension_numbers<[1], [1], [0], [0], [0, 0, 1, 0], [], []>} : vector<1x32xf32>, vector<16x32xf32>, vector<1x16xf32> -> vector<1x16xf32>
    %c8_171 = arith.constant 8 : index
    %c0_172 = arith.constant 0 : index
    %349 = vector.load %arg11[%c8_171, %c0_172] : memref<16x16xf32, #tpu.memory_space<vmem>>, vector<1x16xf32>
    tpu.vector_store %arg11[%c8_171, %c0_172], %348 {strides = array<i32>} : memref<16x16xf32, #tpu.memory_space<vmem>>, vector<1x16xf32>,
    %c9 = arith.constant 9 : index
    %c0_173 = arith.constant 0 : index
    %c0_174 = arith.constant 0 : index
    %350 = vector.load %arg2[%c9, %c0_173, %c0_174] : memref<16x4x32xf32, #tpu.memory_space<vmem>>, vector<1x4x32xf32>
    %351 = vector.shape_cast %350 : vector<1x4x32xf32> to vector<4x32xf32>
    %cst_175 = arith.constant dense<0.000000e+00> : vector<4x4xf32>
    %352 = tpu.matmul %351, %351, %cst_175 {dimension_numbers = #tpu.dot_dimension_numbers<[1], [1], [0], [0], [0, 0, 1, 0], [], []>} : vector<4x32xf32>, vector<4x32xf32>, vector<4x4xf32> -> vector<4x4xf32>
    %cst_176 = arith.constant 0.176776692 : f32
    %353 = vector.broadcast %cst_176 : f32 to vector<4x4xf32>
    %354 = arith.mulf %352, %353 : vector<4x4xf32>
    %cst_177 = arith.constant dense<0xFF800000> : vector<4xf32>
    %355 = vector.multi_reduction <maximumf>, %354, %cst_177 [1] : vector<4x4xf32> to vector<4xf32>
    %356 = vector.shape_cast %355 : vector<4xf32> to vector<4x1xf32>
    %357 = vector.broadcast %356 : vector<4x1xf32> to vector<4x4xf32>
    %358 = arith.subf %354, %357 : vector<4x4xf32>
    %359 = math.exp %358 : vector<4x4xf32>
    %cst_178 = arith.constant dense<0.000000e+00> : vector<4xf32>
    %360 = vector.multi_reduction <add>, %359, %cst_178 [1] : vector<4x4xf32> to vector<4xf32>
    %361 = vector.shape_cast %360 : vector<4xf32> to vector<4x1xf32>
    %362 = tpu.reciprocal %361 {approx = true} : vector<4x1xf32> -> vector<4x1xf32>
    %363 = vector.broadcast %362 : vector<4x1xf32> to vector<4x4xf32>
    %364 = arith.mulf %359, %363 : vector<4x4xf32>
    %cst_179 = arith.constant dense<0.000000e+00> : vector<4x32xf32>
    %365 = tpu.matmul %364, %351, %cst_179 {dimension_numbers = #tpu.dot_dimension_numbers<[1], [0], [0], [1], [0, 0, 1, 1], [], []>} : vector<4x4xf32>, vector<4x32xf32>, vector<4x32xf32> -> vector<4x32xf32>
    %366 = arith.addf %351, %365 : vector<4x32xf32>
    %c144 = arith.constant 144 : index
    %c0_180 = arith.constant 0 : index
    %367 = vector.load %arg10[%c144, %c0_180] : memref<256x32xf32, #tpu.memory_space<vmem>>, vector<16x32xf32>
    %368 = arith.addf %367, %7 : vector<16x32xf32>
    %cst_181 = arith.constant dense<0.000000e+00> : vector<4x16xf32>
    %369 = tpu.matmul %366, %368, %cst_181 {dimension_numbers = #tpu.dot_dimension_numbers<[1], [1], [0], [0], [0, 0, 1, 0], [], []>} : vector<4x32xf32>, vector<16x32xf32>, vector<4x16xf32> -> vector<4x16xf32>
    %cst_182 = arith.constant 0.176776692 : f32
    %370 = vector.broadcast %cst_182 : f32 to vector<4x16xf32>
    %371 = arith.mulf %369, %370 : vector<4x16xf32>
    %cst_183 = arith.constant dense<0xFF800000> : vector<4xf32>
    %372 = vector.multi_reduction <maximumf>, %371, %cst_183 [1] : vector<4x16xf32> to vector<4xf32>
    %373 = vector.shape_cast %372 : vector<4xf32> to vector<4x1xf32>
    %374 = vector.broadcast %373 : vector<4x1xf32> to vector<4x16xf32>
    %375 = arith.subf %371, %374 : vector<4x16xf32>
    %376 = math.exp %375 : vector<4x16xf32>
    %cst_184 = arith.constant dense<0.000000e+00> : vector<4xf32>
    %377 = vector.multi_reduction <add>, %376, %cst_184 [1] : vector<4x16xf32> to vector<4xf32>
    %378 = vector.shape_cast %377 : vector<4xf32> to vector<4x1xf32>
    %379 = tpu.reciprocal %378 {approx = true} : vector<4x1xf32> -> vector<4x1xf32>
    %380 = vector.broadcast %379 : vector<4x1xf32> to vector<4x16xf32>
    %381 = arith.mulf %376, %380 : vector<4x16xf32>
    %cst_185 = arith.constant dense<0.000000e+00> : vector<4x32xf32>
    %382 = tpu.matmul %381, %367, %cst_185 {dimension_numbers = #tpu.dot_dimension_numbers<[1], [0], [0], [1], [0, 0, 1, 1], [], []>} : vector<4x16xf32>, vector<16x32xf32>, vector<4x32xf32> -> vector<4x32xf32>
    %383 = vector.extract_strided_slice %382 {offsets = [0, 0], sizes = [1, 32], strides = [1, 1]} : vector<4x32xf32> to vector<1x32xf32>
    %c9_186 = arith.constant 9 : index
    %c0_187 = arith.constant 0 : index
    %384 = vector.load %arg12[%c9_186, %c0_187] : memref<16x32xf32, #tpu.memory_space<vmem>>, vector<1x32xf32>
    tpu.vector_store %arg12[%c9_186, %c0_187], %383 {strides = array<i32>} : memref<16x32xf32, #tpu.memory_space<vmem>>, vector<1x32xf32>,
    %385 = vector.extract_strided_slice %382 {offsets = [1, 0], sizes = [1, 32], strides = [1, 1]} : vector<4x32xf32> to vector<1x32xf32>
    %cst_188 = arith.constant dense<0.000000e+00> : vector<1x16xf32>
    %386 = tpu.matmul %385, %367, %cst_188 {dimension_numbers = #tpu.dot_dimension_numbers<[1], [1], [0], [0], [0, 0, 1, 0], [], []>} : vector<1x32xf32>, vector<16x32xf32>, vector<1x16xf32> -> vector<1x16xf32>
    %c9_189 = arith.constant 9 : index
    %c0_190 = arith.constant 0 : index
    %387 = vector.load %arg11[%c9_189, %c0_190] : memref<16x16xf32, #tpu.memory_space<vmem>>, vector<1x16xf32>
    tpu.vector_store %arg11[%c9_189, %c0_190], %386 {strides = array<i32>} : memref<16x16xf32, #tpu.memory_space<vmem>>, vector<1x16xf32>,
    %c10 = arith.constant 10 : index
    %c0_191 = arith.constant 0 : index
    %c0_192 = arith.constant 0 : index
    %388 = vector.load %arg2[%c10, %c0_191, %c0_192] : memref<16x4x32xf32, #tpu.memory_space<vmem>>, vector<1x4x32xf32>
    %389 = vector.shape_cast %388 : vector<1x4x32xf32> to vector<4x32xf32>
    %cst_193 = arith.constant dense<0.000000e+00> : vector<4x4xf32>
    %390 = tpu.matmul %389, %389, %cst_193 {dimension_numbers = #tpu.dot_dimension_numbers<[1], [1], [0], [0], [0, 0, 1, 0], [], []>} : vector<4x32xf32>, vector<4x32xf32>, vector<4x4xf32> -> vector<4x4xf32>
    %cst_194 = arith.constant 0.176776692 : f32
    %391 = vector.broadcast %cst_194 : f32 to vector<4x4xf32>
    %392 = arith.mulf %390, %391 : vector<4x4xf32>
    %cst_195 = arith.constant dense<0xFF800000> : vector<4xf32>
    %393 = vector.multi_reduction <maximumf>, %392, %cst_195 [1] : vector<4x4xf32> to vector<4xf32>
    %394 = vector.shape_cast %393 : vector<4xf32> to vector<4x1xf32>
    %395 = vector.broadcast %394 : vector<4x1xf32> to vector<4x4xf32>
    %396 = arith.subf %392, %395 : vector<4x4xf32>
    %397 = math.exp %396 : vector<4x4xf32>
    %cst_196 = arith.constant dense<0.000000e+00> : vector<4xf32>
    %398 = vector.multi_reduction <add>, %397, %cst_196 [1] : vector<4x4xf32> to vector<4xf32>
    %399 = vector.shape_cast %398 : vector<4xf32> to vector<4x1xf32>
    %400 = tpu.reciprocal %399 {approx = true} : vector<4x1xf32> -> vector<4x1xf32>
    %401 = vector.broadcast %400 : vector<4x1xf32> to vector<4x4xf32>
    %402 = arith.mulf %397, %401 : vector<4x4xf32>
    %cst_197 = arith.constant dense<0.000000e+00> : vector<4x32xf32>
    %403 = tpu.matmul %402, %389, %cst_197 {dimension_numbers = #tpu.dot_dimension_numbers<[1], [0], [0], [1], [0, 0, 1, 1], [], []>} : vector<4x4xf32>, vector<4x32xf32>, vector<4x32xf32> -> vector<4x32xf32>
    %404 = arith.addf %389, %403 : vector<4x32xf32>
    %c160 = arith.constant 160 : index
    %c0_198 = arith.constant 0 : index
    %405 = vector.load %arg10[%c160, %c0_198] : memref<256x32xf32, #tpu.memory_space<vmem>>, vector<16x32xf32>
    %406 = arith.addf %405, %7 : vector<16x32xf32>
    %cst_199 = arith.constant dense<0.000000e+00> : vector<4x16xf32>
    %407 = tpu.matmul %404, %406, %cst_199 {dimension_numbers = #tpu.dot_dimension_numbers<[1], [1], [0], [0], [0, 0, 1, 0], [], []>} : vector<4x32xf32>, vector<16x32xf32>, vector<4x16xf32> -> vector<4x16xf32>
    %cst_200 = arith.constant 0.176776692 : f32
    %408 = vector.broadcast %cst_200 : f32 to vector<4x16xf32>
    %409 = arith.mulf %407, %408 : vector<4x16xf32>
    %cst_201 = arith.constant dense<0xFF800000> : vector<4xf32>
    %410 = vector.multi_reduction <maximumf>, %409, %cst_201 [1] : vector<4x16xf32> to vector<4xf32>
    %411 = vector.shape_cast %410 : vector<4xf32> to vector<4x1xf32>
    %412 = vector.broadcast %411 : vector<4x1xf32> to vector<4x16xf32>
    %413 = arith.subf %409, %412 : vector<4x16xf32>
    %414 = math.exp %413 : vector<4x16xf32>
    %cst_202 = arith.constant dense<0.000000e+00> : vector<4xf32>
    %415 = vector.multi_reduction <add>, %414, %cst_202 [1] : vector<4x16xf32> to vector<4xf32>
    %416 = vector.shape_cast %415 : vector<4xf32> to vector<4x1xf32>
    %417 = tpu.reciprocal %416 {approx = true} : vector<4x1xf32> -> vector<4x1xf32>
    %418 = vector.broadcast %417 : vector<4x1xf32> to vector<4x16xf32>
    %419 = arith.mulf %414, %418 : vector<4x16xf32>
    %cst_203 = arith.constant dense<0.000000e+00> : vector<4x32xf32>
    %420 = tpu.matmul %419, %405, %cst_203 {dimension_numbers = #tpu.dot_dimension_numbers<[1], [0], [0], [1], [0, 0, 1, 1], [], []>} : vector<4x16xf32>, vector<16x32xf32>, vector<4x32xf32> -> vector<4x32xf32>
    %421 = vector.extract_strided_slice %420 {offsets = [0, 0], sizes = [1, 32], strides = [1, 1]} : vector<4x32xf32> to vector<1x32xf32>
    %c10_204 = arith.constant 10 : index
    %c0_205 = arith.constant 0 : index
    %422 = vector.load %arg12[%c10_204, %c0_205] : memref<16x32xf32, #tpu.memory_space<vmem>>, vector<1x32xf32>
    tpu.vector_store %arg12[%c10_204, %c0_205], %421 {strides = array<i32>} : memref<16x32xf32, #tpu.memory_space<vmem>>, vector<1x32xf32>,
    %423 = vector.extract_strided_slice %420 {offsets = [1, 0], sizes = [1, 32], strides = [1, 1]} : vector<4x32xf32> to vector<1x32xf32>
    %cst_206 = arith.constant dense<0.000000e+00> : vector<1x16xf32>
    %424 = tpu.matmul %423, %405, %cst_206 {dimension_numbers = #tpu.dot_dimension_numbers<[1], [1], [0], [0], [0, 0, 1, 0], [], []>} : vector<1x32xf32>, vector<16x32xf32>, vector<1x16xf32> -> vector<1x16xf32>
    %c10_207 = arith.constant 10 : index
    %c0_208 = arith.constant 0 : index
    %425 = vector.load %arg11[%c10_207, %c0_208] : memref<16x16xf32, #tpu.memory_space<vmem>>, vector<1x16xf32>
    tpu.vector_store %arg11[%c10_207, %c0_208], %424 {strides = array<i32>} : memref<16x16xf32, #tpu.memory_space<vmem>>, vector<1x16xf32>,
    %c11 = arith.constant 11 : index
    %c0_209 = arith.constant 0 : index
    %c0_210 = arith.constant 0 : index
    %426 = vector.load %arg2[%c11, %c0_209, %c0_210] : memref<16x4x32xf32, #tpu.memory_space<vmem>>, vector<1x4x32xf32>
    %427 = vector.shape_cast %426 : vector<1x4x32xf32> to vector<4x32xf32>
    %cst_211 = arith.constant dense<0.000000e+00> : vector<4x4xf32>
    %428 = tpu.matmul %427, %427, %cst_211 {dimension_numbers = #tpu.dot_dimension_numbers<[1], [1], [0], [0], [0, 0, 1, 0], [], []>} : vector<4x32xf32>, vector<4x32xf32>, vector<4x4xf32> -> vector<4x4xf32>
    %cst_212 = arith.constant 0.176776692 : f32
    %429 = vector.broadcast %cst_212 : f32 to vector<4x4xf32>
    %430 = arith.mulf %428, %429 : vector<4x4xf32>
    %cst_213 = arith.constant dense<0xFF800000> : vector<4xf32>
    %431 = vector.multi_reduction <maximumf>, %430, %cst_213 [1] : vector<4x4xf32> to vector<4xf32>
    %432 = vector.shape_cast %431 : vector<4xf32> to vector<4x1xf32>
    %433 = vector.broadcast %432 : vector<4x1xf32> to vector<4x4xf32>
    %434 = arith.subf %430, %433 : vector<4x4xf32>
    %435 = math.exp %434 : vector<4x4xf32>
    %cst_214 = arith.constant dense<0.000000e+00> : vector<4xf32>
    %436 = vector.multi_reduction <add>, %435, %cst_214 [1] : vector<4x4xf32> to vector<4xf32>
    %437 = vector.shape_cast %436 : vector<4xf32> to vector<4x1xf32>
    %438 = tpu.reciprocal %437 {approx = true} : vector<4x1xf32> -> vector<4x1xf32>
    %439 = vector.broadcast %438 : vector<4x1xf32> to vector<4x4xf32>
    %440 = arith.mulf %435, %439 : vector<4x4xf32>
    %cst_215 = arith.constant dense<0.000000e+00> : vector<4x32xf32>
    %441 = tpu.matmul %440, %427, %cst_215 {dimension_numbers = #tpu.dot_dimension_numbers<[1], [0], [0], [1], [0, 0, 1, 1], [], []>} : vector<4x4xf32>, vector<4x32xf32>, vector<4x32xf32> -> vector<4x32xf32>
    %442 = arith.addf %427, %441 : vector<4x32xf32>
    %c176 = arith.constant 176 : index
    %c0_216 = arith.constant 0 : index
    %443 = vector.load %arg10[%c176, %c0_216] : memref<256x32xf32, #tpu.memory_space<vmem>>, vector<16x32xf32>
    %444 = arith.addf %443, %7 : vector<16x32xf32>
    %cst_217 = arith.constant dense<0.000000e+00> : vector<4x16xf32>
    %445 = tpu.matmul %442, %444, %cst_217 {dimension_numbers = #tpu.dot_dimension_numbers<[1], [1], [0], [0], [0, 0, 1, 0], [], []>} : vector<4x32xf32>, vector<16x32xf32>, vector<4x16xf32> -> vector<4x16xf32>
    %cst_218 = arith.constant 0.176776692 : f32
    %446 = vector.broadcast %cst_218 : f32 to vector<4x16xf32>
    %447 = arith.mulf %445, %446 : vector<4x16xf32>
    %cst_219 = arith.constant dense<0xFF800000> : vector<4xf32>
    %448 = vector.multi_reduction <maximumf>, %447, %cst_219 [1] : vector<4x16xf32> to vector<4xf32>
    %449 = vector.shape_cast %448 : vector<4xf32> to vector<4x1xf32>
    %450 = vector.broadcast %449 : vector<4x1xf32> to vector<4x16xf32>
    %451 = arith.subf %447, %450 : vector<4x16xf32>
    %452 = math.exp %451 : vector<4x16xf32>
    %cst_220 = arith.constant dense<0.000000e+00> : vector<4xf32>
    %453 = vector.multi_reduction <add>, %452, %cst_220 [1] : vector<4x16xf32> to vector<4xf32>
    %454 = vector.shape_cast %453 : vector<4xf32> to vector<4x1xf32>
    %455 = tpu.reciprocal %454 {approx = true} : vector<4x1xf32> -> vector<4x1xf32>
    %456 = vector.broadcast %455 : vector<4x1xf32> to vector<4x16xf32>
    %457 = arith.mulf %452, %456 : vector<4x16xf32>
    %cst_221 = arith.constant dense<0.000000e+00> : vector<4x32xf32>
    %458 = tpu.matmul %457, %443, %cst_221 {dimension_numbers = #tpu.dot_dimension_numbers<[1], [0], [0], [1], [0, 0, 1, 1], [], []>} : vector<4x16xf32>, vector<16x32xf32>, vector<4x32xf32> -> vector<4x32xf32>
    %459 = vector.extract_strided_slice %458 {offsets = [0, 0], sizes = [1, 32], strides = [1, 1]} : vector<4x32xf32> to vector<1x32xf32>
    %c11_222 = arith.constant 11 : index
    %c0_223 = arith.constant 0 : index
    %460 = vector.load %arg12[%c11_222, %c0_223] : memref<16x32xf32, #tpu.memory_space<vmem>>, vector<1x32xf32>
    tpu.vector_store %arg12[%c11_222, %c0_223], %459 {strides = array<i32>} : memref<16x32xf32, #tpu.memory_space<vmem>>, vector<1x32xf32>,
    %461 = vector.extract_strided_slice %458 {offsets = [1, 0], sizes = [1, 32], strides = [1, 1]} : vector<4x32xf32> to vector<1x32xf32>
    %cst_224 = arith.constant dense<0.000000e+00> : vector<1x16xf32>
    %462 = tpu.matmul %461, %443, %cst_224 {dimension_numbers = #tpu.dot_dimension_numbers<[1], [1], [0], [0], [0, 0, 1, 0], [], []>} : vector<1x32xf32>, vector<16x32xf32>, vector<1x16xf32> -> vector<1x16xf32>
    %c11_225 = arith.constant 11 : index
    %c0_226 = arith.constant 0 : index
    %463 = vector.load %arg11[%c11_225, %c0_226] : memref<16x16xf32, #tpu.memory_space<vmem>>, vector<1x16xf32>
    tpu.vector_store %arg11[%c11_225, %c0_226], %462 {strides = array<i32>} : memref<16x16xf32, #tpu.memory_space<vmem>>, vector<1x16xf32>,
    %c12 = arith.constant 12 : index
    %c0_227 = arith.constant 0 : index
    %c0_228 = arith.constant 0 : index
    %464 = vector.load %arg2[%c12, %c0_227, %c0_228] : memref<16x4x32xf32, #tpu.memory_space<vmem>>, vector<1x4x32xf32>
    %465 = vector.shape_cast %464 : vector<1x4x32xf32> to vector<4x32xf32>
    %cst_229 = arith.constant dense<0.000000e+00> : vector<4x4xf32>
    %466 = tpu.matmul %465, %465, %cst_229 {dimension_numbers = #tpu.dot_dimension_numbers<[1], [1], [0], [0], [0, 0, 1, 0], [], []>} : vector<4x32xf32>, vector<4x32xf32>, vector<4x4xf32> -> vector<4x4xf32>
    %cst_230 = arith.constant 0.176776692 : f32
    %467 = vector.broadcast %cst_230 : f32 to vector<4x4xf32>
    %468 = arith.mulf %466, %467 : vector<4x4xf32>
    %cst_231 = arith.constant dense<0xFF800000> : vector<4xf32>
    %469 = vector.multi_reduction <maximumf>, %468, %cst_231 [1] : vector<4x4xf32> to vector<4xf32>
    %470 = vector.shape_cast %469 : vector<4xf32> to vector<4x1xf32>
    %471 = vector.broadcast %470 : vector<4x1xf32> to vector<4x4xf32>
    %472 = arith.subf %468, %471 : vector<4x4xf32>
    %473 = math.exp %472 : vector<4x4xf32>
    %cst_232 = arith.constant dense<0.000000e+00> : vector<4xf32>
    %474 = vector.multi_reduction <add>, %473, %cst_232 [1] : vector<4x4xf32> to vector<4xf32>
    %475 = vector.shape_cast %474 : vector<4xf32> to vector<4x1xf32>
    %476 = tpu.reciprocal %475 {approx = true} : vector<4x1xf32> -> vector<4x1xf32>
    %477 = vector.broadcast %476 : vector<4x1xf32> to vector<4x4xf32>
    %478 = arith.mulf %473, %477 : vector<4x4xf32>
    %cst_233 = arith.constant dense<0.000000e+00> : vector<4x32xf32>
    %479 = tpu.matmul %478, %465, %cst_233 {dimension_numbers = #tpu.dot_dimension_numbers<[1], [0], [0], [1], [0, 0, 1, 1], [], []>} : vector<4x4xf32>, vector<4x32xf32>, vector<4x32xf32> -> vector<4x32xf32>
    %480 = arith.addf %465, %479 : vector<4x32xf32>
    %c192 = arith.constant 192 : index
    %c0_234 = arith.constant 0 : index
    %481 = vector.load %arg10[%c192, %c0_234] : memref<256x32xf32, #tpu.memory_space<vmem>>, vector<16x32xf32>
    %482 = arith.addf %481, %7 : vector<16x32xf32>
    %cst_235 = arith.constant dense<0.000000e+00> : vector<4x16xf32>
    %483 = tpu.matmul %480, %482, %cst_235 {dimension_numbers = #tpu.dot_dimension_numbers<[1], [1], [0], [0], [0, 0, 1, 0], [], []>} : vector<4x32xf32>, vector<16x32xf32>, vector<4x16xf32> -> vector<4x16xf32>
    %cst_236 = arith.constant 0.176776692 : f32
    %484 = vector.broadcast %cst_236 : f32 to vector<4x16xf32>
    %485 = arith.mulf %483, %484 : vector<4x16xf32>
    %cst_237 = arith.constant dense<0xFF800000> : vector<4xf32>
    %486 = vector.multi_reduction <maximumf>, %485, %cst_237 [1] : vector<4x16xf32> to vector<4xf32>
    %487 = vector.shape_cast %486 : vector<4xf32> to vector<4x1xf32>
    %488 = vector.broadcast %487 : vector<4x1xf32> to vector<4x16xf32>
    %489 = arith.subf %485, %488 : vector<4x16xf32>
    %490 = math.exp %489 : vector<4x16xf32>
    %cst_238 = arith.constant dense<0.000000e+00> : vector<4xf32>
    %491 = vector.multi_reduction <add>, %490, %cst_238 [1] : vector<4x16xf32> to vector<4xf32>
    %492 = vector.shape_cast %491 : vector<4xf32> to vector<4x1xf32>
    %493 = tpu.reciprocal %492 {approx = true} : vector<4x1xf32> -> vector<4x1xf32>
    %494 = vector.broadcast %493 : vector<4x1xf32> to vector<4x16xf32>
    %495 = arith.mulf %490, %494 : vector<4x16xf32>
    %cst_239 = arith.constant dense<0.000000e+00> : vector<4x32xf32>
    %496 = tpu.matmul %495, %481, %cst_239 {dimension_numbers = #tpu.dot_dimension_numbers<[1], [0], [0], [1], [0, 0, 1, 1], [], []>} : vector<4x16xf32>, vector<16x32xf32>, vector<4x32xf32> -> vector<4x32xf32>
    %497 = vector.extract_strided_slice %496 {offsets = [0, 0], sizes = [1, 32], strides = [1, 1]} : vector<4x32xf32> to vector<1x32xf32>
    %c12_240 = arith.constant 12 : index
    %c0_241 = arith.constant 0 : index
    %498 = vector.load %arg12[%c12_240, %c0_241] : memref<16x32xf32, #tpu.memory_space<vmem>>, vector<1x32xf32>
    tpu.vector_store %arg12[%c12_240, %c0_241], %497 {strides = array<i32>} : memref<16x32xf32, #tpu.memory_space<vmem>>, vector<1x32xf32>,
    %499 = vector.extract_strided_slice %496 {offsets = [1, 0], sizes = [1, 32], strides = [1, 1]} : vector<4x32xf32> to vector<1x32xf32>
    %cst_242 = arith.constant dense<0.000000e+00> : vector<1x16xf32>
    %500 = tpu.matmul %499, %481, %cst_242 {dimension_numbers = #tpu.dot_dimension_numbers<[1], [1], [0], [0], [0, 0, 1, 0], [], []>} : vector<1x32xf32>, vector<16x32xf32>, vector<1x16xf32> -> vector<1x16xf32>
    %c12_243 = arith.constant 12 : index
    %c0_244 = arith.constant 0 : index
    %501 = vector.load %arg11[%c12_243, %c0_244] : memref<16x16xf32, #tpu.memory_space<vmem>>, vector<1x16xf32>
    tpu.vector_store %arg11[%c12_243, %c0_244], %500 {strides = array<i32>} : memref<16x16xf32, #tpu.memory_space<vmem>>, vector<1x16xf32>,
    %c13 = arith.constant 13 : index
    %c0_245 = arith.constant 0 : index
    %c0_246 = arith.constant 0 : index
    %502 = vector.load %arg2[%c13, %c0_245, %c0_246] : memref<16x4x32xf32, #tpu.memory_space<vmem>>, vector<1x4x32xf32>
    %503 = vector.shape_cast %502 : vector<1x4x32xf32> to vector<4x32xf32>
    %cst_247 = arith.constant dense<0.000000e+00> : vector<4x4xf32>
    %504 = tpu.matmul %503, %503, %cst_247 {dimension_numbers = #tpu.dot_dimension_numbers<[1], [1], [0], [0], [0, 0, 1, 0], [], []>} : vector<4x32xf32>, vector<4x32xf32>, vector<4x4xf32> -> vector<4x4xf32>
    %cst_248 = arith.constant 0.176776692 : f32
    %505 = vector.broadcast %cst_248 : f32 to vector<4x4xf32>
    %506 = arith.mulf %504, %505 : vector<4x4xf32>
    %cst_249 = arith.constant dense<0xFF800000> : vector<4xf32>
    %507 = vector.multi_reduction <maximumf>, %506, %cst_249 [1] : vector<4x4xf32> to vector<4xf32>
    %508 = vector.shape_cast %507 : vector<4xf32> to vector<4x1xf32>
    %509 = vector.broadcast %508 : vector<4x1xf32> to vector<4x4xf32>
    %510 = arith.subf %506, %509 : vector<4x4xf32>
    %511 = math.exp %510 : vector<4x4xf32>
    %cst_250 = arith.constant dense<0.000000e+00> : vector<4xf32>
    %512 = vector.multi_reduction <add>, %511, %cst_250 [1] : vector<4x4xf32> to vector<4xf32>
    %513 = vector.shape_cast %512 : vector<4xf32> to vector<4x1xf32>
    %514 = tpu.reciprocal %513 {approx = true} : vector<4x1xf32> -> vector<4x1xf32>
    %515 = vector.broadcast %514 : vector<4x1xf32> to vector<4x4xf32>
    %516 = arith.mulf %511, %515 : vector<4x4xf32>
    %cst_251 = arith.constant dense<0.000000e+00> : vector<4x32xf32>
    %517 = tpu.matmul %516, %503, %cst_251 {dimension_numbers = #tpu.dot_dimension_numbers<[1], [0], [0], [1], [0, 0, 1, 1], [], []>} : vector<4x4xf32>, vector<4x32xf32>, vector<4x32xf32> -> vector<4x32xf32>
    %518 = arith.addf %503, %517 : vector<4x32xf32>
    %c208 = arith.constant 208 : index
    %c0_252 = arith.constant 0 : index
    %519 = vector.load %arg10[%c208, %c0_252] : memref<256x32xf32, #tpu.memory_space<vmem>>, vector<16x32xf32>
    %520 = arith.addf %519, %7 : vector<16x32xf32>
    %cst_253 = arith.constant dense<0.000000e+00> : vector<4x16xf32>
    %521 = tpu.matmul %518, %520, %cst_253 {dimension_numbers = #tpu.dot_dimension_numbers<[1], [1], [0], [0], [0, 0, 1, 0], [], []>} : vector<4x32xf32>, vector<16x32xf32>, vector<4x16xf32> -> vector<4x16xf32>
    %cst_254 = arith.constant 0.176776692 : f32
    %522 = vector.broadcast %cst_254 : f32 to vector<4x16xf32>
    %523 = arith.mulf %521, %522 : vector<4x16xf32>
    %cst_255 = arith.constant dense<0xFF800000> : vector<4xf32>
    %524 = vector.multi_reduction <maximumf>, %523, %cst_255 [1] : vector<4x16xf32> to vector<4xf32>
    %525 = vector.shape_cast %524 : vector<4xf32> to vector<4x1xf32>
    %526 = vector.broadcast %525 : vector<4x1xf32> to vector<4x16xf32>
    %527 = arith.subf %523, %526 : vector<4x16xf32>
    %528 = math.exp %527 : vector<4x16xf32>
    %cst_256 = arith.constant dense<0.000000e+00> : vector<4xf32>
    %529 = vector.multi_reduction <add>, %528, %cst_256 [1] : vector<4x16xf32> to vector<4xf32>
    %530 = vector.shape_cast %529 : vector<4xf32> to vector<4x1xf32>
    %531 = tpu.reciprocal %530 {approx = true} : vector<4x1xf32> -> vector<4x1xf32>
    %532 = vector.broadcast %531 : vector<4x1xf32> to vector<4x16xf32>
    %533 = arith.mulf %528, %532 : vector<4x16xf32>
    %cst_257 = arith.constant dense<0.000000e+00> : vector<4x32xf32>
    %534 = tpu.matmul %533, %519, %cst_257 {dimension_numbers = #tpu.dot_dimension_numbers<[1], [0], [0], [1], [0, 0, 1, 1], [], []>} : vector<4x16xf32>, vector<16x32xf32>, vector<4x32xf32> -> vector<4x32xf32>
    %535 = vector.extract_strided_slice %534 {offsets = [0, 0], sizes = [1, 32], strides = [1, 1]} : vector<4x32xf32> to vector<1x32xf32>
    %c13_258 = arith.constant 13 : index
    %c0_259 = arith.constant 0 : index
    %536 = vector.load %arg12[%c13_258, %c0_259] : memref<16x32xf32, #tpu.memory_space<vmem>>, vector<1x32xf32>
    tpu.vector_store %arg12[%c13_258, %c0_259], %535 {strides = array<i32>} : memref<16x32xf32, #tpu.memory_space<vmem>>, vector<1x32xf32>,
    %537 = vector.extract_strided_slice %534 {offsets = [1, 0], sizes = [1, 32], strides = [1, 1]} : vector<4x32xf32> to vector<1x32xf32>
    %cst_260 = arith.constant dense<0.000000e+00> : vector<1x16xf32>
    %538 = tpu.matmul %537, %519, %cst_260 {dimension_numbers = #tpu.dot_dimension_numbers<[1], [1], [0], [0], [0, 0, 1, 0], [], []>} : vector<1x32xf32>, vector<16x32xf32>, vector<1x16xf32> -> vector<1x16xf32>
    %c13_261 = arith.constant 13 : index
    %c0_262 = arith.constant 0 : index
    %539 = vector.load %arg11[%c13_261, %c0_262] : memref<16x16xf32, #tpu.memory_space<vmem>>, vector<1x16xf32>
    tpu.vector_store %arg11[%c13_261, %c0_262], %538 {strides = array<i32>} : memref<16x16xf32, #tpu.memory_space<vmem>>, vector<1x16xf32>,
    %c14 = arith.constant 14 : index
    %c0_263 = arith.constant 0 : index
    %c0_264 = arith.constant 0 : index
    %540 = vector.load %arg2[%c14, %c0_263, %c0_264] : memref<16x4x32xf32, #tpu.memory_space<vmem>>, vector<1x4x32xf32>
    %541 = vector.shape_cast %540 : vector<1x4x32xf32> to vector<4x32xf32>
    %cst_265 = arith.constant dense<0.000000e+00> : vector<4x4xf32>
    %542 = tpu.matmul %541, %541, %cst_265 {dimension_numbers = #tpu.dot_dimension_numbers<[1], [1], [0], [0], [0, 0, 1, 0], [], []>} : vector<4x32xf32>, vector<4x32xf32>, vector<4x4xf32> -> vector<4x4xf32>
    %cst_266 = arith.constant 0.176776692 : f32
    %543 = vector.broadcast %cst_266 : f32 to vector<4x4xf32>
    %544 = arith.mulf %542, %543 : vector<4x4xf32>
    %cst_267 = arith.constant dense<0xFF800000> : vector<4xf32>
    %545 = vector.multi_reduction <maximumf>, %544, %cst_267 [1] : vector<4x4xf32> to vector<4xf32>
    %546 = vector.shape_cast %545 : vector<4xf32> to vector<4x1xf32>
    %547 = vector.broadcast %546 : vector<4x1xf32> to vector<4x4xf32>
    %548 = arith.subf %544, %547 : vector<4x4xf32>
    %549 = math.exp %548 : vector<4x4xf32>
    %cst_268 = arith.constant dense<0.000000e+00> : vector<4xf32>
    %550 = vector.multi_reduction <add>, %549, %cst_268 [1] : vector<4x4xf32> to vector<4xf32>
    %551 = vector.shape_cast %550 : vector<4xf32> to vector<4x1xf32>
    %552 = tpu.reciprocal %551 {approx = true} : vector<4x1xf32> -> vector<4x1xf32>
    %553 = vector.broadcast %552 : vector<4x1xf32> to vector<4x4xf32>
    %554 = arith.mulf %549, %553 : vector<4x4xf32>
    %cst_269 = arith.constant dense<0.000000e+00> : vector<4x32xf32>
    %555 = tpu.matmul %554, %541, %cst_269 {dimension_numbers = #tpu.dot_dimension_numbers<[1], [0], [0], [1], [0, 0, 1, 1], [], []>} : vector<4x4xf32>, vector<4x32xf32>, vector<4x32xf32> -> vector<4x32xf32>
    %556 = arith.addf %541, %555 : vector<4x32xf32>
    %c224 = arith.constant 224 : index
    %c0_270 = arith.constant 0 : index
    %557 = vector.load %arg10[%c224, %c0_270] : memref<256x32xf32, #tpu.memory_space<vmem>>, vector<16x32xf32>
    %558 = arith.addf %557, %7 : vector<16x32xf32>
    %cst_271 = arith.constant dense<0.000000e+00> : vector<4x16xf32>
    %559 = tpu.matmul %556, %558, %cst_271 {dimension_numbers = #tpu.dot_dimension_numbers<[1], [1], [0], [0], [0, 0, 1, 0], [], []>} : vector<4x32xf32>, vector<16x32xf32>, vector<4x16xf32> -> vector<4x16xf32>
    %cst_272 = arith.constant 0.176776692 : f32
    %560 = vector.broadcast %cst_272 : f32 to vector<4x16xf32>
    %561 = arith.mulf %559, %560 : vector<4x16xf32>
    %cst_273 = arith.constant dense<0xFF800000> : vector<4xf32>
    %562 = vector.multi_reduction <maximumf>, %561, %cst_273 [1] : vector<4x16xf32> to vector<4xf32>
    %563 = vector.shape_cast %562 : vector<4xf32> to vector<4x1xf32>
    %564 = vector.broadcast %563 : vector<4x1xf32> to vector<4x16xf32>
    %565 = arith.subf %561, %564 : vector<4x16xf32>
    %566 = math.exp %565 : vector<4x16xf32>
    %cst_274 = arith.constant dense<0.000000e+00> : vector<4xf32>
    %567 = vector.multi_reduction <add>, %566, %cst_274 [1] : vector<4x16xf32> to vector<4xf32>
    %568 = vector.shape_cast %567 : vector<4xf32> to vector<4x1xf32>
    %569 = tpu.reciprocal %568 {approx = true} : vector<4x1xf32> -> vector<4x1xf32>
    %570 = vector.broadcast %569 : vector<4x1xf32> to vector<4x16xf32>
    %571 = arith.mulf %566, %570 : vector<4x16xf32>
    %cst_275 = arith.constant dense<0.000000e+00> : vector<4x32xf32>
    %572 = tpu.matmul %571, %557, %cst_275 {dimension_numbers = #tpu.dot_dimension_numbers<[1], [0], [0], [1], [0, 0, 1, 1], [], []>} : vector<4x16xf32>, vector<16x32xf32>, vector<4x32xf32> -> vector<4x32xf32>
    %573 = vector.extract_strided_slice %572 {offsets = [0, 0], sizes = [1, 32], strides = [1, 1]} : vector<4x32xf32> to vector<1x32xf32>
    %c14_276 = arith.constant 14 : index
    %c0_277 = arith.constant 0 : index
    %574 = vector.load %arg12[%c14_276, %c0_277] : memref<16x32xf32, #tpu.memory_space<vmem>>, vector<1x32xf32>
    tpu.vector_store %arg12[%c14_276, %c0_277], %573 {strides = array<i32>} : memref<16x32xf32, #tpu.memory_space<vmem>>, vector<1x32xf32>,
    %575 = vector.extract_strided_slice %572 {offsets = [1, 0], sizes = [1, 32], strides = [1, 1]} : vector<4x32xf32> to vector<1x32xf32>
    %cst_278 = arith.constant dense<0.000000e+00> : vector<1x16xf32>
    %576 = tpu.matmul %575, %557, %cst_278 {dimension_numbers = #tpu.dot_dimension_numbers<[1], [1], [0], [0], [0, 0, 1, 0], [], []>} : vector<1x32xf32>, vector<16x32xf32>, vector<1x16xf32> -> vector<1x16xf32>
    %c14_279 = arith.constant 14 : index
    %c0_280 = arith.constant 0 : index
    %577 = vector.load %arg11[%c14_279, %c0_280] : memref<16x16xf32, #tpu.memory_space<vmem>>, vector<1x16xf32>
    tpu.vector_store %arg11[%c14_279, %c0_280], %576 {strides = array<i32>} : memref<16x16xf32, #tpu.memory_space<vmem>>, vector<1x16xf32>,
    %c15 = arith.constant 15 : index
    %c0_281 = arith.constant 0 : index
    %c0_282 = arith.constant 0 : index
    %578 = vector.load %arg2[%c15, %c0_281, %c0_282] : memref<16x4x32xf32, #tpu.memory_space<vmem>>, vector<1x4x32xf32>
    %579 = vector.shape_cast %578 : vector<1x4x32xf32> to vector<4x32xf32>
    %cst_283 = arith.constant dense<0.000000e+00> : vector<4x4xf32>
    %580 = tpu.matmul %579, %579, %cst_283 {dimension_numbers = #tpu.dot_dimension_numbers<[1], [1], [0], [0], [0, 0, 1, 0], [], []>} : vector<4x32xf32>, vector<4x32xf32>, vector<4x4xf32> -> vector<4x4xf32>
    %cst_284 = arith.constant 0.176776692 : f32
    %581 = vector.broadcast %cst_284 : f32 to vector<4x4xf32>
    %582 = arith.mulf %580, %581 : vector<4x4xf32>
    %cst_285 = arith.constant dense<0xFF800000> : vector<4xf32>
    %583 = vector.multi_reduction <maximumf>, %582, %cst_285 [1] : vector<4x4xf32> to vector<4xf32>
    %584 = vector.shape_cast %583 : vector<4xf32> to vector<4x1xf32>
    %585 = vector.broadcast %584 : vector<4x1xf32> to vector<4x4xf32>
    %586 = arith.subf %582, %585 : vector<4x4xf32>
    %587 = math.exp %586 : vector<4x4xf32>
    %cst_286 = arith.constant dense<0.000000e+00> : vector<4xf32>
    %588 = vector.multi_reduction <add>, %587, %cst_286 [1] : vector<4x4xf32> to vector<4xf32>
    %589 = vector.shape_cast %588 : vector<4xf32> to vector<4x1xf32>
    %590 = tpu.reciprocal %589 {approx = true} : vector<4x1xf32> -> vector<4x1xf32>
    %591 = vector.broadcast %590 : vector<4x1xf32> to vector<4x4xf32>
    %592 = arith.mulf %587, %591 : vector<4x4xf32>
    %cst_287 = arith.constant dense<0.000000e+00> : vector<4x32xf32>
    %593 = tpu.matmul %592, %579, %cst_287 {dimension_numbers = #tpu.dot_dimension_numbers<[1], [0], [0], [1], [0, 0, 1, 1], [], []>} : vector<4x4xf32>, vector<4x32xf32>, vector<4x32xf32> -> vector<4x32xf32>
    %594 = arith.addf %579, %593 : vector<4x32xf32>
    %c240 = arith.constant 240 : index
    %c0_288 = arith.constant 0 : index
    %595 = vector.load %arg10[%c240, %c0_288] : memref<256x32xf32, #tpu.memory_space<vmem>>, vector<16x32xf32>
    %596 = arith.addf %595, %7 : vector<16x32xf32>
    %cst_289 = arith.constant dense<0.000000e+00> : vector<4x16xf32>
    %597 = tpu.matmul %594, %596, %cst_289 {dimension_numbers = #tpu.dot_dimension_numbers<[1], [1], [0], [0], [0, 0, 1, 0], [], []>} : vector<4x32xf32>, vector<16x32xf32>, vector<4x16xf32> -> vector<4x16xf32>
    %cst_290 = arith.constant 0.176776692 : f32
    %598 = vector.broadcast %cst_290 : f32 to vector<4x16xf32>
    %599 = arith.mulf %597, %598 : vector<4x16xf32>
    %cst_291 = arith.constant dense<0xFF800000> : vector<4xf32>
    %600 = vector.multi_reduction <maximumf>, %599, %cst_291 [1] : vector<4x16xf32> to vector<4xf32>
    %601 = vector.shape_cast %600 : vector<4xf32> to vector<4x1xf32>
    %602 = vector.broadcast %601 : vector<4x1xf32> to vector<4x16xf32>
    %603 = arith.subf %599, %602 : vector<4x16xf32>
    %604 = math.exp %603 : vector<4x16xf32>
    %cst_292 = arith.constant dense<0.000000e+00> : vector<4xf32>
    %605 = vector.multi_reduction <add>, %604, %cst_292 [1] : vector<4x16xf32> to vector<4xf32>
    %606 = vector.shape_cast %605 : vector<4xf32> to vector<4x1xf32>
    %607 = tpu.reciprocal %606 {approx = true} : vector<4x1xf32> -> vector<4x1xf32>
    %608 = vector.broadcast %607 : vector<4x1xf32> to vector<4x16xf32>
    %609 = arith.mulf %604, %608 : vector<4x16xf32>
    %cst_293 = arith.constant dense<0.000000e+00> : vector<4x32xf32>
    %610 = tpu.matmul %609, %595, %cst_293 {dimension_numbers = #tpu.dot_dimension_numbers<[1], [0], [0], [1], [0, 0, 1, 1], [], []>} : vector<4x16xf32>, vector<16x32xf32>, vector<4x32xf32> -> vector<4x32xf32>
    %611 = vector.extract_strided_slice %610 {offsets = [0, 0], sizes = [1, 32], strides = [1, 1]} : vector<4x32xf32> to vector<1x32xf32>
    %c15_294 = arith.constant 15 : index
    %c0_295 = arith.constant 0 : index
    %612 = vector.load %arg12[%c15_294, %c0_295] : memref<16x32xf32, #tpu.memory_space<vmem>>, vector<1x32xf32>
    tpu.vector_store %arg12[%c15_294, %c0_295], %611 {strides = array<i32>} : memref<16x32xf32, #tpu.memory_space<vmem>>, vector<1x32xf32>,
    %613 = vector.extract_strided_slice %610 {offsets = [1, 0], sizes = [1, 32], strides = [1, 1]} : vector<4x32xf32> to vector<1x32xf32>
    %cst_296 = arith.constant dense<0.000000e+00> : vector<1x16xf32>
    %614 = tpu.matmul %613, %595, %cst_296 {dimension_numbers = #tpu.dot_dimension_numbers<[1], [1], [0], [0], [0, 0, 1, 0], [], []>} : vector<1x32xf32>, vector<16x32xf32>, vector<1x16xf32> -> vector<1x16xf32>
    %c15_297 = arith.constant 15 : index
    %c0_298 = arith.constant 0 : index
    %615 = vector.load %arg11[%c15_297, %c0_298] : memref<16x16xf32, #tpu.memory_space<vmem>>, vector<1x16xf32>
    tpu.vector_store %arg11[%c15_297, %c0_298], %614 {strides = array<i32>} : memref<16x16xf32, #tpu.memory_space<vmem>>, vector<1x16xf32>,
    %c0_299 = arith.constant 0 : index
    %c0_300 = arith.constant 0 : index
    %616 = vector.load %arg11[%c0_299, %c0_300] : memref<16x16xf32, #tpu.memory_space<vmem>>, vector<16x16xf32>
    %c0_301 = arith.constant 0 : index
    %c0_302 = arith.constant 0 : index
    %617 = vector.load %arg8[%c0_301, %c0_302] : memref<16x256xf32, #tpu.memory_space<vmem>>, vector<16x256xf32>
    %cst_303 = arith.constant dense<0.000000e+00> : vector<16x256xf32>
    %618 = tpu.matmul %616, %617, %cst_303 {dimension_numbers = #tpu.dot_dimension_numbers<[1], [0], [0], [1], [0, 0, 1, 1], [], []>} : vector<16x16xf32>, vector<16x256xf32>, vector<16x256xf32> -> vector<16x256xf32>
    %c0_304 = arith.constant 0 : index
    %c0_305 = arith.constant 0 : index
    %619 = vector.load %arg12[%c0_304, %c0_305] : memref<16x32xf32, #tpu.memory_space<vmem>>, vector<16x32xf32>
    %c0_306 = arith.constant 0 : index
    %c0_307 = arith.constant 0 : index
    %620 = vector.load %arg7[%c0_306, %c0_307] : memref<1x32xf32, #tpu.memory_space<vmem>>, vector<1x32xf32>
    %621 = vector.broadcast %620 : vector<1x32xf32> to vector<16x32xf32>
    %622 = arith.mulf %619, %621 : vector<16x32xf32>
    %cst_308 = arith.constant dense<0.000000e+00> : vector<16xf32>
    %623 = vector.multi_reduction <add>, %622, %cst_308 [1] : vector<16x32xf32> to vector<16xf32>
    %624 = vector.shape_cast %623 : vector<16xf32> to vector<16x1xf32>
    %c0_309 = arith.constant 0 : index
    %c0_310 = arith.constant 0 : index
    %625 = vector.load %arg3[%c0_309, %c0_310] : memref<16x256xf32, #tpu.memory_space<vmem>>, vector<16x256xf32>
    %cst_311 = arith.constant 0.000000e+00 : f32
    %626 = vector.broadcast %cst_311 : f32 to vector<16x256xf32>
    %627 = arith.maximumf %618, %626 : vector<16x256xf32>
    %628 = arith.mulf %618, %625 : vector<16x256xf32>
    %629 = arith.subf %627, %628 : vector<16x256xf32>
    %630 = math.absf %618 : vector<16x256xf32>
    %cst_312 = arith.constant 0.000000e+00 : f32
    %631 = vector.broadcast %cst_312 : f32 to vector<16x256xf32>
    %632 = arith.subf %631, %630 : vector<16x256xf32>
    %633 = math.exp %632 : vector<16x256xf32>
    %cst_313 = arith.constant 1.000000e+00 : f32
    %634 = vector.broadcast %cst_313 : f32 to vector<16x256xf32>
    %635 = arith.addf %634, %633 : vector<16x256xf32>
    %636 = math.log %635 : vector<16x256xf32>
    %637 = arith.addf %629, %636 : vector<16x256xf32>
    %cst_314 = arith.constant dense<0.000000e+00> : vector<16xf32>
    %638 = vector.multi_reduction <add>, %637, %cst_314 [1] : vector<16x256xf32> to vector<16xf32>
    %639 = vector.shape_cast %638 : vector<16xf32> to vector<16x1xf32>
    %cst_315 = arith.constant 2.560000e+02 : f32
    %640 = vector.broadcast %cst_315 : f32 to vector<16x1xf32>
    %641 = arith.divf %639, %640 : vector<16x1xf32>
    %642 = tpu.iota {dimensions = array<i32: 1>} : vector<16x128xi32>
    %c0_i32 = arith.constant 0 : i32
    %643 = vector.broadcast %c0_i32 : i32 to vector<16x128xi32>
    %644 = arith.cmpi eq, %642, %643 : vector<16x128xi32>
    %645 = arith.extui %644 : vector<16x128xi1> to vector<16x128xi32>
    %646 = arith.sitofp %645 : vector<16x128xi32> to vector<16x128xf32>
    %647 = vector.broadcast %624 : vector<16x1xf32> to vector<16x128xf32>
    %648 = arith.mulf %647, %646 : vector<16x128xf32>
    %c1_i32 = arith.constant 1 : i32
    %649 = vector.broadcast %c1_i32 : i32 to vector<16x128xi32>
    %650 = arith.cmpi eq, %642, %649 : vector<16x128xi32>
    %651 = arith.extui %650 : vector<16x128xi1> to vector<16x128xi32>
    %652 = arith.sitofp %651 : vector<16x128xi32> to vector<16x128xf32>
    %653 = vector.broadcast %641 : vector<16x1xf32> to vector<16x128xf32>
    %654 = arith.mulf %653, %652 : vector<16x128xf32>
    %655 = arith.addf %648, %654 : vector<16x128xf32>
    %656 = tpu.concatenate %618, %655 in 1 : vector<16x256xf32>, vector<16x128xf32> -> vector<16x384xf32>
    %c0_316 = arith.constant 0 : index
    %c0_317 = arith.constant 0 : index
    %657 = vector.load %arg9[%c0_316, %c0_317] : memref<16x384xf32, #tpu.memory_space<vmem>>, vector<16x384xf32>
    tpu.vector_store %arg9[%c0_316, %c0_317], %656 {strides = array<i32>} : memref<16x384xf32, #tpu.memory_space<vmem>>, vector<16x384xf32>,
    return
  }
  func.func @transform_0(%arg0: i32) -> (i32, i32) {
    %c0_i32 = arith.constant 0 : i32
    %c0_i32_0 = arith.constant 0 : i32
    return %arg0, %c0_i32 : i32, i32
  }
  func.func @transform_1(%arg0: i32) -> (i32, i32, i32) {
    %c0_i32 = arith.constant 0 : i32
    %c0_i32_0 = arith.constant 0 : i32
    %c0_i32_1 = arith.constant 0 : i32
    return %arg0, %c0_i32, %c0_i32_0 : i32, i32, i32
  }
  func.func @transform_2(%arg0: i32) -> (i32, i32) {
    %c0_i32 = arith.constant 0 : i32
    %c0_i32_0 = arith.constant 0 : i32
    return %arg0, %c0_i32 : i32, i32
  }
  func.func @transform_3(%arg0: i32) -> (i32, i32) {
    %c0_i32 = arith.constant 0 : i32
    %c0_i32_0 = arith.constant 0 : i32
    %c0_i32_1 = arith.constant 0 : i32
    return %c0_i32, %c0_i32_0 : i32, i32
  }
  func.func @transform_4(%arg0: i32) -> (i32, i32) {
    %c0_i32 = arith.constant 0 : i32
    %c0_i32_0 = arith.constant 0 : i32
    %c0_i32_1 = arith.constant 0 : i32
    return %c0_i32, %c0_i32_0 : i32, i32
  }
  func.func @transform_5(%arg0: i32) -> (i32, i32) {
    %c0_i32 = arith.constant 0 : i32
    %c0_i32_0 = arith.constant 0 : i32
    %c0_i32_1 = arith.constant 0 : i32
    return %c0_i32, %c0_i32_0 : i32, i32
  }
  func.func @transform_6(%arg0: i32) -> (i32, i32) {
    %c0_i32 = arith.constant 0 : i32
    %c0_i32_0 = arith.constant 0 : i32
    %c0_i32_1 = arith.constant 0 : i32
    return %c0_i32, %c0_i32_0 : i32, i32
  }
  func.func @transform_7(%arg0: i32) -> (i32, i32) {
    %c0_i32 = arith.constant 0 : i32
    %c0_i32_0 = arith.constant 0 : i32
    %c0_i32_1 = arith.constant 0 : i32
    return %c0_i32, %c0_i32_0 : i32, i32
  }
  func.func @transform_8(%arg0: i32) -> (i32, i32) {
    %c0_i32 = arith.constant 0 : i32
    %c0_i32_0 = arith.constant 0 : i32
    return %arg0, %c0_i32 : i32, i32
  }
}

</mosaic_0001>

<llo_original>
// kernel: _avsm_batched_impl.1
$region0: #{_avsm_batched_impl.1}
  #allocation0 [shape = 'u32[]', space=smem, size = 0x4, offset = 0x4, fixed_abs, tag = 'smem constant byte address 0x4 - core index']
  #allocation1 [shape = 'u32[72,128]{1,0:T(1,128)}', space=vmem, size = 0x9000, scoped, tag = 'internal scratch']
  #allocation2 [shape = 'f32[256,32]{1,0:T(8,128)}', space=vmem, size = 0x20000, scoped, tag = 'scratch operand']
  #allocation3 [shape = 'f32[16,16]{1,0:T(8,128)}', space=vmem, size = 0x2000, scoped, tag = 'scratch operand']
  #allocation4 [shape = 'f32[16,32]{1,0:T(8,128)}', space=vmem, size = 0x2000, scoped, tag = 'scratch operand']
  %s0 = inlined_call_operand.vmem [shape: f32[512,192], index: 0, kind: input, shape index: {}]
  %s1 = inlined_call_operand.vmem [shape: f32[32,4,32], index: 1, kind: input, shape index: {}]
  %s2 = inlined_call_operand.vmem [shape: f32[32,256], index: 2, kind: input, shape index: {}]
  %s3 = inlined_call_operand.vmem [shape: f32[192,32], index: 3, kind: input, shape index: {}]
  %s4 = inlined_call_operand.vmem [shape: f32[1,32], index: 4, kind: input, shape index: {}]
  %s5 = inlined_call_operand.vmem [shape: f32[16,32], index: 5, kind: input, shape index: {}]
  %s6 = inlined_call_operand.vmem [shape: f32[1,32], index: 6, kind: input, shape index: {}]
  %s7 = inlined_call_operand.vmem [shape: f32[16,256], index: 7, kind: input, shape index: {}]
  %s8 = inlined_call_operand.vmem [shape: f32[32,384], index: 8, kind: output, shape index: {}]
  %s9 = sld [smem:[#allocation0]]
  $region65: #{_avsm_batched_impl.1} parent=0
    _
  %s11 = ssub.s32 1, %s9
  %s12 = scalar_select 0, %s11, %s9
  loop: start=0, step=1, limit=4
  $region2: #{_avsm_batched_impl.1} parent=0 // loop_pre_header
    _
  $region3: #{_avsm_batched_impl.1} parent=0 // loop_header
    %s14 = sphi 0, %s18
    %p15 = scmp.ge.s32.totalorder %s14, 4
    %s24 = sphi 0, %s26
    %s27 = sphi 0, %s24
    %s28 = sphi 0, %s27
    %s44 = sphi 0, %s28
    %s50 = sphi 0, %s52
    %s53 = sphi 0, %s50
    %s54 = sphi 0, %s53
    %s70 = sphi 0, %s54
    %s76 = sphi 0, %s78
    %s79 = sphi 0, %s76
    %s80 = sphi 0, %s79
    %s96 = sphi 0, %s80
    %s100 = sphi 0, %s100
    %s102 = sphi 0, %s100
    %s103 = sphi 0, %s102
    %s117 = sphi 0, %s103
    %s121 = sphi 0, %s121
    %s123 = sphi 0, %s121
    %s124 = sphi 0, %s123
    %s138 = sphi 0, %s124
    %s142 = sphi 0, %s142
    %s144 = sphi 0, %s142
    %s145 = sphi 0, %s144
    %s159 = sphi 0, %s145
    %s163 = sphi 0, %s163
    %s165 = sphi 0, %s163
    %s166 = sphi 0, %s165
    %s180 = sphi 0, %s166
    %s184 = sphi 0, %s184
    %s186 = sphi 0, %s184
    %s187 = sphi 0, %s186
    %s201 = sphi 0, %s187
    %s207 = sphi 0, %s209
    %s210 = sphi 0, %s207
    %s211 = sphi 0, %s210
    %s227 = sphi 0, %s211
  $region4: #{_avsm_batched_impl.1} parent=0 // loop_header_branch
    %17 = sbr.rel (%p15) target = $region8
  $region5: #{_avsm_batched_impl.1} parent=0 // loop_body
    %s19 = ssub.s32 %s14, 1
    %s20 = ssub.s32 %s14, 2
    %s21 = sadd.s32 %s14, 1
    %s22 = ssub.s32 %s14, %s21
    %p23 = scmp.eq.s32.totalorder %s22, 0
    %s25 = sadd.s32 %s24, 1
    %s26 = scalar_select %p23, %s24, %s25
    %p29 = pneg %p23
    %p30 = scmp.eq.s32.totalorder %s14, 1
    %p31 = por %p29, %p30
    %p32 = scmp.ne.s32.totalorder %s24, %s27
    %p33 = scmp.eq.s32.totalorder %s14, 0
    %p34 = por %p32, %p33
    %p35 = scmp.ne.s32.totalorder %s24, %s27
    %p36 = scmp.eq.s32.totalorder %s19, 1
    %p37 = por %p35, %p36
    %p38 = scmp.ne.s32.totalorder %s27, %s28
    %p39 = scmp.eq.s32.totalorder %s19, 0
    %p40 = por %p38, %p39
    %p41 = scmp.ne.s32.totalorder %s27, %s28
    %p42 = scmp.eq.s32.totalorder %s20, 1
    %p43 = por %p41, %p42
    %p45 = scmp.ne.s32.totalorder %s28, %s44
    %p46 = scmp.eq.s32.totalorder %s20, 0
    %p47 = por %p45, %p46
    %s48 = ssub.s32 %s14, %s21
    %p49 = scmp.eq.s32.totalorder %s48, 0
    %s51 = sadd.s32 %s50, 1
    %s52 = scalar_select %p49, %s50, %s51
    %p55 = pneg %p49
    %p56 = scmp.eq.s32.totalorder %s14, 1
    %p57 = por %p55, %p56
    %p58 = scmp.ne.s32.totalorder %s50, %s53
    %p59 = scmp.eq.s32.totalorder %s14, 0
    %p60 = por %p58, %p59
    %p61 = scmp.ne.s32.totalorder %s50, %s53
    %p62 = scmp.eq.s32.totalorder %s19, 1
    %p63 = por %p61, %p62
    %p64 = scmp.ne.s32.totalorder %s53, %s54
    %p65 = scmp.eq.s32.totalorder %s19, 0
    %p66 = por %p64, %p65
    %p67 = scmp.ne.s32.totalorder %s53, %s54
    %p68 = scmp.eq.s32.totalorder %s20, 1
    %p69 = por %p67, %p68
    %p71 = scmp.ne.s32.totalorder %s54, %s70
    %p72 = scmp.eq.s32.totalorder %s20, 0
    %p73 = por %p71, %p72
    %s74 = ssub.s32 %s14, %s21
    %p75 = scmp.eq.s32.totalorder %s74, 0
    %s77 = sadd.s32 %s76, 1
    %s78 = scalar_select %p75, %s76, %s77
    %p81 = pneg %p75
    %p82 = scmp.eq.s32.totalorder %s14, 1
    %p83 = por %p81, %p82
    %p84 = scmp.ne.s32.totalorder %s76, %s79
    %p85 = scmp.eq.s32.totalorder %s14, 0
    %p86 = por %p84, %p85
    %p87 = scmp.ne.s32.totalorder %s76, %s79
    %p88 = scmp.eq.s32.totalorder %s19, 1
    %p89 = por %p87, %p88
    %p90 = scmp.ne.s32.totalorder %s79, %s80
    %p91 = scmp.eq.s32.totalorder %s19, 0
    %p92 = por %p90, %p91
    %p93 = scmp.ne.s32.totalorder %s79, %s80
    %p94 = scmp.eq.s32.totalorder %s20, 1
    %p95 = por %p93, %p94
    %p97 = scmp.ne.s32.totalorder %s80, %s96
    %p98 = scmp.eq.s32.totalorder %s20, 0
    %p99 = por %p97, %p98
    %s101 = sadd.s32 %s100, 1
    %p104 = scmp.eq.s32.totalorder %s14, 1
    %p105 = scmp.ne.s32.totalorder %s100, %s102
    %p106 = scmp.eq.s32.totalorder %s14, 0
    %p107 = por %p105, %p106
    %p108 = scmp.ne.s32.totalorder %s100, %s102
    %p109 = scmp.eq.s32.totalorder %s19, 1
    %p110 = por %p108, %p109
    %p111 = scmp.ne.s32.totalorder %s102, %s103
    %p112 = scmp.eq.s32.totalorder %s19, 0
    %p113 = por %p111, %p112
    %p114 = scmp.ne.s32.totalorder %s102, %s103
    %p115 = scmp.eq.s32.totalorder %s20, 1
    %p116 = por %p114, %p115
    %p118 = scmp.ne.s32.totalorder %s103, %s117
    %p119 = scmp.eq.s32.totalorder %s20, 0
    %p120 = por %p118, %p119
    %s122 = sadd.s32 %s121, 1
    %p125 = scmp.eq.s32.totalorder %s14, 1
    %p126 = scmp.ne.s32.totalorder %s121, %s123
    %p127 = scmp.eq.s32.totalorder %s14, 0
    %p128 = por %p126, %p127
    %p129 = scmp.ne.s32.totalorder %s121, %s123
    %p130 = scmp.eq.s32.totalorder %s19, 1
    %p131 = por %p129, %p130
    %p132 = scmp.ne.s32.totalorder %s123, %s124
    %p133 = scmp.eq.s32.totalorder %s19, 0
    %p134 = por %p132, %p133
    %p135 = scmp.ne.s32.totalorder %s123, %s124
    %p136 = scmp.eq.s32.totalorder %s20, 1
    %p137 = por %p135, %p136
    %p139 = scmp.ne.s32.totalorder %s124, %s138
    %p140 = scmp.eq.s32.totalorder %s20, 0
    %p141 = por %p139, %p140
    %s143 = sadd.s32 %s142, 1
    %p146 = scmp.eq.s32.totalorder %s14, 1
    %p147 = scmp.ne.s32.totalorder %s142, %s144
    %p148 = scmp.eq.s32.totalorder %s14, 0
    %p149 = por %p147, %p148
    %p150 = scmp.ne.s32.totalorder %s142, %s144
    %p151 = scmp.eq.s32.totalorder %s19, 1
    %p152 = por %p150, %p151
    %p153 = scmp.ne.s32.totalorder %s144, %s145
    %p154 = scmp.eq.s32.totalorder %s19, 0
    %p155 = por %p153, %p154
    %p156 = scmp.ne.s32.totalorder %s144, %s145
    %p157 = scmp.eq.s32.totalorder %s20, 1
    %p158 = por %p156, %p157
    %p160 = scmp.ne.s32.totalorder %s145, %s159
    %p161 = scmp.eq.s32.totalorder %s20, 0
    %p162 = por %p160, %p161
    %s164 = sadd.s32 %s163, 1
    %p167 = scmp.eq.s32.totalorder %s14, 1
    %p168 = scmp.ne.s32.totalorder %s163, %s165
    %p169 = scmp.eq.s32.totalorder %s14, 0
    %p170 = por %p168, %p169
    %p171 = scmp.ne.s32.totalorder %s163, %s165
    %p172 = scmp.eq.s32.totalorder %s19, 1
    %p173 = por %p171, %p172
    %p174 = scmp.ne.s32.totalorder %s165, %s166
    %p175 = scmp.eq.s32.totalorder %s19, 0
    %p176 = por %p174, %p175
    %p177 = scmp.ne.s32.totalorder %s165, %s166
    %p178 = scmp.eq.s32.totalorder %s20, 1
    %p179 = por %p177, %p178
    %p181 = scmp.ne.s32.totalorder %s166, %s180
    %p182 = scmp.eq.s32.totalorder %s20, 0
    %p183 = por %p181, %p182
    %s185 = sadd.s32 %s184, 1
    %p188 = scmp.eq.s32.totalorder %s14, 1
    %p189 = scmp.ne.s32.totalorder %s184, %s186
    %p190 = scmp.eq.s32.totalorder %s14, 0
    %p191 = por %p189, %p190
    %p192 = scmp.ne.s32.totalorder %s184, %s186
    %p193 = scmp.eq.s32.totalorder %s19, 1
    %p194 = por %p192, %p193
    %p195 = scmp.ne.s32.totalorder %s186, %s187
    %p196 = scmp.eq.s32.totalorder %s19, 0
    %p197 = por %p195, %p196
    %p198 = scmp.ne.s32.totalorder %s186, %s187
    %p199 = scmp.eq.s32.totalorder %s20, 1
    %p200 = por %p198, %p199
    %p202 = scmp.ne.s32.totalorder %s187, %s201
    %p203 = scmp.eq.s32.totalorder %s20, 0
    %p204 = por %p202, %p203
    %s205 = ssub.s32 %s14, %s21
    %p206 = scmp.eq.s32.totalorder %s205, 0
    %s208 = sadd.s32 %s207, 1
    %s209 = scalar_select %p206, %s207, %s208
    %p212 = pneg %p206
    %p213 = scmp.eq.s32.totalorder %s14, 1
    %p214 = por %p212, %p213
    %p215 = scmp.ne.s32.totalorder %s207, %s210
    %p216 = scmp.eq.s32.totalorder %s14, 0
    %p217 = por %p215, %p216
    %p218 = scmp.ne.s32.totalorder %s207, %s210
    %p219 = scmp.eq.s32.totalorder %s19, 1
    %p220 = por %p218, %p219
    %p221 = scmp.ne.s32.totalorder %s210, %s211
    %p222 = scmp.eq.s32.totalorder %s19, 0
    %p223 = por %p221, %p222
    %p224 = scmp.ne.s32.totalorder %s210, %s211
    %p225 = scmp.eq.s32.totalorder %s20, 1
    %p226 = por %p224, %p225
    %p228 = scmp.ne.s32.totalorder %s211, %s227
    %p229 = scmp.eq.s32.totalorder %s20, 0
    %p230 = por %p228, %p229
    %p231 = scmp.le.s32.totalorder 1, %s14
    %p232 = scmp.lt.s32.totalorder %s14, 3
    %p233 = pnand %p231, %p232
    %p234 = pneg %p233
    // Predicated region
    $region9: #{_avsm_batched_impl.1} parent=5 // pred_check
      _
    $region10: #{_avsm_batched_impl.1} parent=5 // pred_check_branch
      %236 = sbr.rel (%p233) target = $region12
    $region11: #{_avsm_batched_impl.1} parent=5 // pred_region
      %s237 = ssub.s32 %s14, 1
      // Predicated region
      $region13: #{_avsm_batched_impl.1} parent=11 // pred_check
        %p238 = pneg %p113
      $region14: #{_avsm_batched_impl.1} parent=11 // pred_check_branch
        %240 = sbr.rel (%p238) target = $region16
      $region15: #{_avsm_batched_impl.1} parent=11 // pred_region
        _
      $region16: #{_avsm_batched_impl.1} parent=11 // pred_fallthru
        _
      // Predicated region
      $region17: #{_avsm_batched_impl.1} parent=11 // pred_check
        %p241 = pneg %p134
      $region18: #{_avsm_batched_impl.1} parent=11 // pred_check_branch
        %243 = sbr.rel (%p241) target = $region20
      $region19: #{_avsm_batched_impl.1} parent=11 // pred_region
        _
      $region20: #{_avsm_batched_impl.1} parent=11 // pred_fallthru
        _
      // Predicated region
      $region21: #{_avsm_batched_impl.1} parent=11 // pred_check
        %p244 = pneg %p155
      $region22: #{_avsm_batched_impl.1} parent=11 // pred_check_branch
        %246 = sbr.rel (%p244) target = $region24
      $region23: #{_avsm_batched_impl.1} parent=11 // pred_region
        _
      $region24: #{_avsm_batched_impl.1} parent=11 // pred_fallthru
        _
      // Predicated region
      $region25: #{_avsm_batched_impl.1} parent=11 // pred_check
        %p247 = pneg %p176
      $region26: #{_avsm_batched_impl.1} parent=11 // pred_check_branch
        %249 = sbr.rel (%p247) target = $region28
      $region27: #{_avsm_batched_impl.1} parent=11 // pred_region
        _
      $region28: #{_avsm_batched_impl.1} parent=11 // pred_fallthru
        _
      // Predicated region
      $region29: #{_avsm_batched_impl.1} parent=11 // pred_check
        %p250 = pneg %p197
      $region30: #{_avsm_batched_impl.1} parent=11 // pred_check_branch
        %252 = sbr.rel (%p250) target = $region32
      $region31: #{_avsm_batched_impl.1} parent=11 // pred_region
        _
      $region32: #{_avsm_batched_impl.1} parent=11 // pred_fallthru
        _
    $region12: #{_avsm_batched_impl.1} parent=5 // pred_fallthru
      _
    %p253 = scmp.lt.s32.totalorder %s14, 2
    // Predicated region
    $region33: #{_avsm_batched_impl.1} parent=5 // pred_check
      %p254 = pneg %p253
    $region34: #{_avsm_batched_impl.1} parent=5 // pred_check_branch
      %256 = sbr.rel (%p254) target = $region36
    $region35: #{_avsm_batched_impl.1} parent=5 // pred_region
      // Predicated region
      $region37: #{_avsm_batched_impl.1} parent=35 // pred_check
        %p257 = pneg %p34
      $region38: #{_avsm_batched_impl.1} parent=35 // pred_check_branch
        %259 = sbr.rel (%p257) target = $region40
      $region39: #{_avsm_batched_impl.1} parent=35 // pred_region
        %s260 = smul.u32 32, %s14
        %p261 = scmp.lt.s32.totalorder %s260, 63
        %s262 = scalar_select %p261, %s260, 63
        %s263 = smul.addr %s262, 2
        %s264 = smul.addr %s263, 8
        %s265 = scalar_lea.vmem %s0, %s264
        %s266 = smul.u32 32, %s14
      $region40: #{_avsm_batched_impl.1} parent=35 // pred_fallthru
        _
      // Predicated region
      $region41: #{_avsm_batched_impl.1} parent=35 // pred_check
        %p267 = pneg %p60
      $region42: #{_avsm_batched_impl.1} parent=35 // pred_check_branch
        %269 = sbr.rel (%p267) target = $region44
      $region43: #{_avsm_batched_impl.1} parent=35 // pred_region
        %s270 = smul.u32 16, %s14
        %p271 = scmp.lt.s32.totalorder %s270, 31
        %s272 = scalar_select %p271, %s270, 31
        %s273 = smul.addr %s272, 4
        %s274 = scalar_lea.vmem %s1, %s273
        %s275 = smul.u32 16, %s14
      $region44: #{_avsm_batched_impl.1} parent=35 // pred_fallthru
        _
      // Predicated region
      $region45: #{_avsm_batched_impl.1} parent=35 // pred_check
        %p276 = pneg %p86
      $region46: #{_avsm_batched_impl.1} parent=35 // pred_check_branch
        %278 = sbr.rel (%p276) target = $region48
      $region47: #{_avsm_batched_impl.1} parent=35 // pred_region
        %s279 = smul.u32 2, %s14
        %p280 = scmp.lt.s32.totalorder %s279, 3
        %s281 = scalar_select %p280, %s279, 3
        %s282 = smul.addr %s281, 2
        %s283 = smul.addr %s282, 8
        %s284 = scalar_lea.vmem %s2, %s283
        %s285 = smul.u32 2, %s14
      $region48: #{_avsm_batched_impl.1} parent=35 // pred_fallthru
        _
    $region36: #{_avsm_batched_impl.1} parent=5 // pred_fallthru
      _
    %p286 = scmp.le.s32.totalorder 1, %s14
    %p287 = scmp.lt.s32.totalorder %s14, 3
    %p288 = pnand %p286, %p287
    %p289 = pneg %p288
    // Predicated region
    $region49: #{_avsm_batched_impl.1} parent=5 // pred_check
      _
    $region50: #{_avsm_batched_impl.1} parent=5 // pred_check_branch
      %291 = sbr.rel (%p288) target = $region52
    $region51: #{_avsm_batched_impl.1} parent=5 // pred_region
      %s292 = ssub.s32 %s14, 1
      %s293 = smul.u32 32, %s19
      %p294 = scmp.lt.s32.totalorder %s293, 63
      %s295 = scalar_select %p294, %s293, 63
      %s296 = smul.addr %s295, 2
      %s297 = smul.addr %s296, 8
      %s298 = scalar_lea.vmem %s0, %s297
      %p299 = pneg %p40
      %p300 = pneg %p37
      %s301 = smul.u32 16, %s19
      %p302 = scmp.lt.s32.totalorder %s301, 31
      %s303 = scalar_select %p302, %s301, 31
      %s304 = smul.addr %s303, 4
      %s305 = scalar_lea.vmem %s1, %s304
      %p306 = pneg %p66
      %p307 = pneg %p63
      %s308 = smul.u32 2, %s19
      %p309 = scmp.lt.s32.totalorder %s308, 3
      %s310 = scalar_select %p309, %s308, 3
      %s311 = smul.addr %s310, 2
      %s312 = smul.addr %s311, 8
      %s313 = scalar_lea.vmem %s2, %s312
      %p314 = pneg %p92
      %p315 = pneg %p89
      %p316 = pneg %p113
      %p317 = pneg %p110
      %p318 = pneg %p134
      %p319 = pneg %p131
      %p320 = pneg %p155
      %p321 = pneg %p152
      %p322 = pneg %p176
      %p323 = pneg %p173
      %p324 = pneg %p197
      %p325 = pneg %p194
      %p326 = pneg %p223
      %p327 = pneg %p220
      %s328 = smul.u32 2, %s19
      %p329 = scmp.lt.s32.totalorder %s328, 3
      %s330 = scalar_select %p329, %s328, 3
      %s331 = smul.addr %s330, 3
      %s332 = smul.addr %s331, 8
      %s333 = scalar_lea.vmem %s8, %s332
      %s334 = smul.u32 32, %s19
      %p335 = scmp.lt.s32.totalorder %s334, 63
      %s336 = scalar_select %p335, %s334, 63
      %s337 = smul.addr %s336, 2
      %s338 = smul.addr %s337, 8
      %s339 = scalar_lea.vmem %s0, %s338
      %s340 = smul.u32 32, %s19
      %s341 = smul.u32 16, %s19
      %p342 = scmp.lt.s32.totalorder %s341, 31
      %s343 = scalar_select %p342, %s341, 31
      %s344 = smul.addr %s343, 4
      %s345 = scalar_lea.vmem %s1, %s344
      %s346 = smul.u32 16, %s19
      %s347 = smul.u32 2, %s19
      %p348 = scmp.lt.s32.totalorder %s347, 3
      %s349 = scalar_select %p348, %s347, 3
      %s350 = smul.addr %s349, 2
      %s351 = smul.addr %s350, 8
      %s352 = scalar_lea.vmem %s2, %s351
      %s353 = smul.u32 2, %s19
      %s354 = smul.u32 2, %s19
      %p355 = scmp.lt.s32.totalorder %s354, 3
      %s356 = scalar_select %p355, %s354, 3
      %s357 = smul.addr %s356, 3
      %s358 = smul.addr %s357, 8
      %s359 = scalar_lea.vmem %s8, %s358
      %s360 = smul.u32 2, %s19
      %v361 = vld [vmem:[%s339] sm:$0xff]
      %v362 = vld [vmem:[%s339 + $0x8] sm:$0xff]
      %v363 = vld [vmem:[%s339 + $0x10] sm:$0xff]
      %v364 = vld [vmem:[%s339 + $0x18] sm:$0xff]
      %v365 = vld [vmem:[%s339 + $0x20] sm:$0xff]
      %v366 = vld [vmem:[%s339 + $0x28] sm:$0xff]
      %v367 = vld [vmem:[%s339 + $0x30] sm:$0xff]
      %v368 = vld [vmem:[%s339 + $0x38] sm:$0xff]
      %v369 = vld [vmem:[%s339 + $0x40] sm:$0xff]
      %v370 = vld [vmem:[%s339 + $0x48] sm:$0xff]
      %v371 = vld [vmem:[%s339 + $0x50] sm:$0xff]
      %v372 = vld [vmem:[%s339 + $0x58] sm:$0xff]
      %v373 = vld [vmem:[%s339 + $0x60] sm:$0xff]
      %v374 = vld [vmem:[%s339 + $0x68] sm:$0xff]
      %v375 = vld [vmem:[%s339 + $0x70] sm:$0xff]
      %v376 = vld [vmem:[%s339 + $0x78] sm:$0xff]
      %v377 = vld [vmem:[%s339 + $0x80] sm:$0xff]
      %v378 = vld [vmem:[%s339 + $0x88] sm:$0xff]
      %v379 = vld [vmem:[%s339 + $0x90] sm:$0xff]
      %v380 = vld [vmem:[%s339 + $0x98] sm:$0xff]
      %v381 = vld [vmem:[%s339 + $0xa0] sm:$0xff]
      %v382 = vld [vmem:[%s339 + $0xa8] sm:$0xff]
      %v383 = vld [vmem:[%s339 + $0xb0] sm:$0xff]
      %v384 = vld [vmem:[%s339 + $0xb8] sm:$0xff]
      %v385 = vld [vmem:[%s339 + $0xc0] sm:$0xff]
      %v386 = vld [vmem:[%s339 + $0xc8] sm:$0xff]
      %v387 = vld [vmem:[%s339 + $0xd0] sm:$0xff]
      %v388 = vld [vmem:[%s339 + $0xd8] sm:$0xff]
      %v389 = vld [vmem:[%s339 + $0xe0] sm:$0xff]
      %v390 = vld [vmem:[%s339 + $0xe8] sm:$0xff]
      %v391 = vld [vmem:[%s339 + $0xf0] sm:$0xff]
      %v392 = vld [vmem:[%s339 + $0xf8] sm:$0xff]
      %v393 = vld [vmem:[%s339 + $0x100] sm:$0xff]
      %v394 = vld [vmem:[%s339 + $0x108] sm:$0xff]
      %v395 = vld [vmem:[%s339 + $0x110] sm:$0xff]
      %v396 = vld [vmem:[%s339 + $0x118] sm:$0xff]
      %v397 = vld [vmem:[%s339 + $0x120] sm:$0xff]
      %v398 = vld [vmem:[%s339 + $0x128] sm:$0xff]
      %v399 = vld [vmem:[%s339 + $0x130] sm:$0xff]
      %v400 = vld [vmem:[%s339 + $0x138] sm:$0xff]
      %v401 = vld [vmem:[%s339 + $0x140] sm:$0xff]
      %v402 = vld [vmem:[%s339 + $0x148] sm:$0xff]
      %v403 = vld [vmem:[%s339 + $0x150] sm:$0xff]
      %v404 = vld [vmem:[%s339 + $0x158] sm:$0xff]
      %v405 = vld [vmem:[%s339 + $0x160] sm:$0xff]
      %v406 = vld [vmem:[%s339 + $0x168] sm:$0xff]
      %v407 = vld [vmem:[%s339 + $0x170] sm:$0xff]
      %v408 = vld [vmem:[%s339 + $0x178] sm:$0xff]
      %v409 = vld [vmem:[%s339 + $0x180] sm:$0xff]
      %v410 = vld [vmem:[%s339 + $0x188] sm:$0xff]
      %v411 = vld [vmem:[%s339 + $0x190] sm:$0xff]
      %v412 = vld [vmem:[%s339 + $0x198] sm:$0xff]
      %v413 = vld [vmem:[%s339 + $0x1a0] sm:$0xff]
      %v414 = vld [vmem:[%s339 + $0x1a8] sm:$0xff]
      %v415 = vld [vmem:[%s339 + $0x1b0] sm:$0xff]
      %v416 = vld [vmem:[%s339 + $0x1b8] sm:$0xff]
      %v417 = vld [vmem:[%s339 + $0x1c0] sm:$0xff]
      %v418 = vld [vmem:[%s339 + $0x1c8] sm:$0xff]
      %v419 = vld [vmem:[%s339 + $0x1d0] sm:$0xff]
      %v420 = vld [vmem:[%s339 + $0x1d8] sm:$0xff]
      %v421 = vld [vmem:[%s339 + $0x1e0] sm:$0xff]
      %v422 = vld [vmem:[%s339 + $0x1e8] sm:$0xff]
      %v423 = vld [vmem:[%s339 + $0x1f0] sm:$0xff]
      %v424 = vld [vmem:[%s339 + $0x1f8] sm:$0xff]
      %v425 = vld [vmem:[%s3] sm:$0xff]
      %v426 = vld [vmem:[%s3 + $0x8] sm:$0xff]
      %v427 = vld [vmem:[%s3 + $0x10] sm:$0xff]
      %v428 = vld [vmem:[%s3 + $0x18] sm:$0xff]
      %v429 = vld [vmem:[%s3 + $0x20] sm:$0xff]
      %v430 = vld [vmem:[%s3 + $0x28] sm:$0xff]
      %v431 = vld [vmem:[%s3 + $0x30] sm:$0xff]
      %v432 = vld [vmem:[%s3 + $0x38] sm:$0xff]
      %v433 = vld [vmem:[%s3 + $0x40] sm:$0xff]
      %v434 = vld [vmem:[%s3 + $0x48] sm:$0xff]
      %v435 = vld [vmem:[%s3 + $0x50] sm:$0xff]
      %v436 = vld [vmem:[%s3 + $0x58] sm:$0xff]
      %v437 = vld [vmem:[%s3 + $0x60] sm:$0xff]
      %v438 = vld [vmem:[%s3 + $0x68] sm:$0xff]
      %v439 = vld [vmem:[%s3 + $0x70] sm:$0xff]
      %v440 = vld [vmem:[%s3 + $0x78] sm:$0xff]
      %v441 = vld [vmem:[%s3 + $0x80] sm:$0xff]
      %v442 = vld [vmem:[%s3 + $0x88] sm:$0xff]
      %v443 = vld [vmem:[%s3 + $0x90] sm:$0xff]
      %v444 = vld [vmem:[%s3 + $0x98] sm:$0xff]
      %v445 = vld [vmem:[%s3 + $0xa0] sm:$0xff]
      %v446 = vld [vmem:[%s3 + $0xa8] sm:$0xff]
      %v447 = vld [vmem:[%s3 + $0xb0] sm:$0xff]
      %v448 = vld [vmem:[%s3 + $0xb8] sm:$0xff]
      %v449 = vld [vmem:[%s4] sm:$0x1]
      %v451 = vperm.slane %v449, 0
      %vm453 = vcmask 523264
      %v455 = vsel %vm453, %v362, 0
      %v458 = vsel %vm453, %v364, 0
      %v461 = vsel %vm453, %v366, 0
      %v464 = vsel %vm453, %v368, 0
      %v467 = vsel %vm453, %v370, 0
      %v470 = vsel %vm453, %v372, 0
      %v473 = vsel %vm453, %v374, 0
      %v476 = vsel %vm453, %v376, 0
      %v479 = vsel %vm453, %v378, 0
      %v482 = vsel %vm453, %v380, 0
      %v485 = vsel %vm453, %v382, 0
      %v488 = vsel %vm453, %v384, 0
      %v491 = vsel %vm453, %v386, 0
      %v494 = vsel %vm453, %v388, 0
      %v497 = vsel %vm453, %v390, 0
      %v500 = vsel %vm453, %v392, 0
      %v503 = vsel %vm453, %v394, 0
      %v506 = vsel %vm453, %v396, 0
      %v509 = vsel %vm453, %v398, 0
      %v512 = vsel %vm453, %v400, 0
      %v515 = vsel %vm453, %v402, 0
      %v518 = vsel %vm453, %v404, 0
      %v521 = vsel %vm453, %v406, 0
      %v524 = vsel %vm453, %v408, 0
      %v527 = vsel %vm453, %v410, 0
      %v530 = vsel %vm453, %v412, 0
      %v533 = vsel %vm453, %v414, 0
      %v536 = vsel %vm453, %v416, 0
      %v539 = vsel %vm453, %v418, 0
      %v542 = vsel %vm453, %v420, 0
      %v545 = vsel %vm453, %v422, 0
      %v548 = vsel %vm453, %v424, 0
      %550 = vmatpush.msra.mxu0 %v440
      %551 = vmatpush.msra.mxu0 %v439
      %552 = vmatpush.msra.mxu0 %v438
      %553 = vmatpush.msra.mxu0 %v437
      %554 = vmatpush.msra.mxu0 %v436
      %555 = vmatpush.msra.mxu0 %v435
      %556 = vmatpush.msra.mxu0 %v434
      %557 = vmatpush.msra.mxu0 %v433
      %558 = vmatpush.msra.mxu0 %v432
      %559 = vmatpush.msra.mxu0 %v431
      %560 = vmatpush.msra.mxu0 %v430
      %561 = vmatpush.msra.mxu0 %v429
      %562 = vmatpush.msra.mxu0 %v428
      %563 = vmatpush.msra.mxu0 %v427
      %564 = vmatpush.msra.mxu0 %v426
      %565 = vmatpush.msra.mxu0 %v425
      %566 = vmatmul.f32.gmra.mxu0 %v361
      %v567 = vpop.f32.mrf.mxu0
      %v568 = vadd.f32 %v451, %v567
      %569 = vmatmul.f32.gmra.mxu0 %v363
      %v570 = vpop.f32.mrf.mxu0
      %v571 = vadd.f32 %v451, %v570
      %572 = vmatmul.f32.gmra.mxu0 %v365
      %v573 = vpop.f32.mrf.mxu0
      %v574 = vadd.f32 %v451, %v573
      %575 = vmatmul.f32.gmra.mxu0 %v367
      %v576 = vpop.f32.mrf.mxu0
      %v577 = vadd.f32 %v451, %v576
      %578 = vmatmul.f32.gmra.mxu0 %v369
      %v579 = vpop.f32.mrf.mxu0
      %v580 = vadd.f32 %v451, %v579
      %581 = vmatmul.f32.gmra.mxu0 %v371
      %v582 = vpop.f32.mrf.mxu0
      %v583 = vadd.f32 %v451, %v582
      %584 = vmatmul.f32.gmra.mxu0 %v373
      %v585 = vpop.f32.mrf.mxu0
      %v586 = vadd.f32 %v451, %v585
      %587 = vmatmul.f32.gmra.mxu0 %v375
      %v588 = vpop.f32.mrf.mxu0
      %v589 = vadd.f32 %v451, %v588
      %590 = vmatmul.f32.gmra.mxu0 %v377
      %v591 = vpop.f32.mrf.mxu0
      %v592 = vadd.f32 %v451, %v591
      %593 = vmatmul.f32.gmra.mxu0 %v379
      %v594 = vpop.f32.mrf.mxu0
      %v595 = vadd.f32 %v451, %v594
      %596 = vmatmul.f32.gmra.mxu0 %v381
      %v597 = vpop.f32.mrf.mxu0
      %v598 = vadd.f32 %v451, %v597
      %599 = vmatmul.f32.gmra.mxu0 %v383
      %v600 = vpop.f32.mrf.mxu0
      %v601 = vadd.f32 %v451, %v600
      %602 = vmatmul.f32.gmra.mxu0 %v385
      %v603 = vpop.f32.mrf.mxu0
      %v604 = vadd.f32 %v451, %v603
      %605 = vmatmul.f32.gmra.mxu0 %v387
      %v606 = vpop.f32.mrf.mxu0
      %v607 = vadd.f32 %v451, %v606
      %608 = vmatmul.f32.gmra.mxu0 %v389
      %v609 = vpop.f32.mrf.mxu0
      %v610 = vadd.f32 %v451, %v609
      %611 = vmatmul.f32.gmra.mxu0 %v391
      %v612 = vpop.f32.mrf.mxu0
      %v613 = vadd.f32 %v451, %v612
      %614 = vmatmul.f32.gmra.mxu0 %v393
      %v615 = vpop.f32.mrf.mxu0
      %v616 = vadd.f32 %v451, %v615
      %617 = vmatmul.f32.gmra.mxu0 %v395
      %v618 = vpop.f32.mrf.mxu0
      %v619 = vadd.f32 %v451, %v618
      %620 = vmatmul.f32.gmra.mxu0 %v397
      %v621 = vpop.f32.mrf.mxu0
      %v622 = vadd.f32 %v451, %v621
      %623 = vmatmul.f32.gmra.mxu0 %v399
      %v624 = vpop.f32.mrf.mxu0
      %v625 = vadd.f32 %v451, %v624
      %626 = vmatmul.f32.gmra.mxu0 %v401
      %v627 = vpop.f32.mrf.mxu0
      %v628 = vadd.f32 %v451, %v627
      %629 = vmatmul.f32.gmra.mxu0 %v403
      %v630 = vpop.f32.mrf.mxu0
      %v631 = vadd.f32 %v451, %v630
      %632 = vmatmul.f32.gmra.mxu0 %v405
      %v633 = vpop.f32.mrf.mxu0
      %v634 = vadd.f32 %v451, %v633
      %635 = vmatmul.f32.gmra.mxu0 %v407
      %v636 = vpop.f32.mrf.mxu0
      %v637 = vadd.f32 %v451, %v636
      %638 = vmatmul.f32.gmra.mxu0 %v409
      %v639 = vpop.f32.mrf.mxu0
      %v640 = vadd.f32 %v451, %v639
      %641 = vmatmul.f32.gmra.mxu0 %v411
      %v642 = vpop.f32.mrf.mxu0
      %v643 = vadd.f32 %v451, %v642
      %644 = vmatmul.f32.gmra.mxu0 %v413
      %v645 = vpop.f32.mrf.mxu0
      %v646 = vadd.f32 %v451, %v645
      %647 = vmatmul.f32.gmra.mxu0 %v415
      %v648 = vpop.f32.mrf.mxu0
      %v649 = vadd.f32 %v451, %v648
      %650 = vmatmul.f32.gmra.mxu0 %v417
      %v651 = vpop.f32.mrf.mxu0
      %v652 = vadd.f32 %v451, %v651
      %653 = vmatmul.f32.gmra.mxu0 %v419
      %v654 = vpop.f32.mrf.mxu0
      %v655 = vadd.f32 %v451, %v654
      %656 = vmatmul.f32.gmra.mxu0 %v421
      %v657 = vpop.f32.mrf.mxu0
      %v658 = vadd.f32 %v451, %v657
      %659 = vmatmul.f32.gmra.mxu0 %v423
      %v660 = vpop.f32.mrf.mxu0
      %v661 = vadd.f32 %v451, %v660
      %662 = vdwg.mxu0
      %663 = vmatpush.msra.mxu0 0.0
      %664 = vmatpush.msra.mxu0 0.0
      %665 = vmatpush.msra.mxu0 0.0
      %666 = vmatpush.msra.mxu0 0.0
      %667 = vmatpush.msra.mxu0 0.0
      %668 = vmatpush.msra.mxu0 0.0
      %669 = vmatpush.msra.mxu0 0.0
      %670 = vmatpush.msra.mxu0 0.0
      %671 = vmatpush.msra.mxu0 %v448
      %672 = vmatpush.msra.mxu0 %v447
      %673 = vmatpush.msra.mxu0 %v446
      %674 = vmatpush.msra.mxu0 %v445
      %675 = vmatpush.msra.mxu0 %v444
      %676 = vmatpush.msra.mxu0 %v443
      %677 = vmatpush.msra.mxu0 %v442
      %678 = vmatpush.msra.mxu0 %v441
      %679 = vmatmul.f32.gmra.mxu0 %v455
      %v680 = vpop.f32.mrf.mxu0
      %v681 = vadd.f32 %v568, %v680
      %682 = vmatmul.f32.gmra.mxu0 %v458
      %v683 = vpop.f32.mrf.mxu0
      %v684 = vadd.f32 %v571, %v683
      %685 = vmatmul.f32.gmra.mxu0 %v461
      %v686 = vpop.f32.mrf.mxu0
      %v687 = vadd.f32 %v574, %v686
      %688 = vmatmul.f32.gmra.mxu0 %v464
      %v689 = vpop.f32.mrf.mxu0
      %v690 = vadd.f32 %v577, %v689
      %691 = vmatmul.f32.gmra.mxu0 %v467
      %v692 = vpop.f32.mrf.mxu0
      %v693 = vadd.f32 %v580, %v692
      %694 = vmatmul.f32.gmra.mxu0 %v470
      %v695 = vpop.f32.mrf.mxu0
      %v696 = vadd.f32 %v583, %v695
      %697 = vmatmul.f32.gmra.mxu0 %v473
      %v698 = vpop.f32.mrf.mxu0
      %v699 = vadd.f32 %v586, %v698
      %700 = vmatmul.f32.gmra.mxu0 %v476
      %v701 = vpop.f32.mrf.mxu0
      %v702 = vadd.f32 %v589, %v701
      %703 = vmatmul.f32.gmra.mxu0 %v479
      %v704 = vpop.f32.mrf.mxu0
      %v705 = vadd.f32 %v592, %v704
      %706 = vmatmul.f32.gmra.mxu0 %v482
      %v707 = vpop.f32.mrf.mxu0
      %v708 = vadd.f32 %v595, %v707
      %709 = vmatmul.f32.gmra.mxu0 %v485
      %v710 = vpop.f32.mrf.mxu0
      %v711 = vadd.f32 %v598, %v710
      %712 = vmatmul.f32.gmra.mxu0 %v488
      %v713 = vpop.f32.mrf.mxu0
      %v714 = vadd.f32 %v601, %v713
      %715 = vmatmul.f32.gmra.mxu0 %v491
      %v716 = vpop.f32.mrf.mxu0
      %v717 = vadd.f32 %v604, %v716
      %718 = vmatmul.f32.gmra.mxu0 %v494
      %v719 = vpop.f32.mrf.mxu0
      %v720 = vadd.f32 %v607, %v719
      %721 = vmatmul.f32.gmra.mxu0 %v497
      %v722 = vpop.f32.mrf.mxu0
      %v723 = vadd.f32 %v610, %v722
      %724 = vmatmul.f32.gmra.mxu0 %v500
      %v725 = vpop.f32.mrf.mxu0
      %v726 = vadd.f32 %v613, %v725
      %727 = vmatmul.f32.gmra.mxu0 %v503
      %v728 = vpop.f32.mrf.mxu0
      %v729 = vadd.f32 %v616, %v728
      %730 = vmatmul.f32.gmra.mxu0 %v506
      %v731 = vpop.f32.mrf.mxu0
      %v732 = vadd.f32 %v619, %v731
      %733 = vmatmul.f32.gmra.mxu0 %v509
      %v734 = vpop.f32.mrf.mxu0
      %v735 = vadd.f32 %v622, %v734
      %736 = vmatmul.f32.gmra.mxu0 %v512
      %v737 = vpop.f32.mrf.mxu0
      %v738 = vadd.f32 %v625, %v737
      %739 = vmatmul.f32.gmra.mxu0 %v515
      %v740 = vpop.f32.mrf.mxu0
      %v741 = vadd.f32 %v628, %v740
      %742 = vmatmul.f32.gmra.mxu0 %v518
      %v743 = vpop.f32.mrf.mxu0
      %v744 = vadd.f32 %v631, %v743
      %745 = vmatmul.f32.gmra.mxu0 %v521
      %v746 = vpop.f32.mrf.mxu0
      %v747 = vadd.f32 %v634, %v746
      %748 = vmatmul.f32.gmra.mxu0 %v524
      %v749 = vpop.f32.mrf.mxu0
      %v750 = vadd.f32 %v637, %v749
      %751 = vmatmul.f32.gmra.mxu0 %v527
      %v752 = vpop.f32.mrf.mxu0
      %v753 = vadd.f32 %v640, %v752
      %754 = vmatmul.f32.gmra.mxu0 %v530
      %v755 = vpop.f32.mrf.mxu0
      %v756 = vadd.f32 %v643, %v755
      %757 = vmatmul.f32.gmra.mxu0 %v533
      %v758 = vpop.f32.mrf.mxu0
      %v759 = vadd.f32 %v646, %v758
      %760 = vmatmul.f32.gmra.mxu0 %v536
      %v761 = vpop.f32.mrf.mxu0
      %v762 = vadd.f32 %v649, %v761
      %763 = vmatmul.f32.gmra.mxu0 %v539
      %v764 = vpop.f32.mrf.mxu0
      %v765 = vadd.f32 %v652, %v764
      %766 = vmatmul.f32.gmra.mxu0 %v542
      %v767 = vpop.f32.mrf.mxu0
      %v768 = vadd.f32 %v655, %v767
      %769 = vmatmul.f32.gmra.mxu0 %v545
      %v770 = vpop.f32.mrf.mxu0
      %v771 = vadd.f32 %v658, %v770
      %772 = vmatmul.f32.gmra.mxu0 %v548
      %v773 = vpop.f32.mrf.mxu0
      %v774 = vadd.f32 %v661, %v773
      %775 = vdwg.mxu0
      %vm776 = vcmask 261120
      %777 = vst.msk [vmem:[#allocation2] sm:$0xff] %vm776, %v681
      %778 = vst.msk [vmem:[#allocation2 + $0x8] sm:$0xff] %vm776, %v684
      %779 = vst.msk [vmem:[#allocation2 + $0x10] sm:$0xff] %vm776, %v687
      %780 = vst.msk [vmem:[#allocation2 + $0x18] sm:$0xff] %vm776, %v690
      %781 = vst.msk [vmem:[#allocation2 + $0x20] sm:$0xff] %vm776, %v693
      %782 = vst.msk [vmem:[#allocation2 + $0x28] sm:$0xff] %vm776, %v696
      %783 = vst.msk [vmem:[#allocation2 + $0x30] sm:$0xff] %vm776, %v699
      %784 = vst.msk [vmem:[#allocation2 + $0x38] sm:$0xff] %vm776, %v702
      %785 = vst.msk [vmem:[#allocation2 + $0x40] sm:$0xff] %vm776, %v705
      %786 = vst.msk [vmem:[#allocation2 + $0x48] sm:$0xff] %vm776, %v708
      %787 = vst.msk [vmem:[#allocation2 + $0x50] sm:$0xff] %vm776, %v711
      %788 = vst.msk [vmem:[#allocation2 + $0x58] sm:$0xff] %vm776, %v714
      %789 = vst.msk [vmem:[#allocation2 + $0x60] sm:$0xff] %vm776, %v717
      %790 = vst.msk [vmem:[#allocation2 + $0x68] sm:$0xff] %vm776, %v720
      %791 = vst.msk [vmem:[#allocation2 + $0x70] sm:$0xff] %vm776, %v723
      %792 = vst.msk [vmem:[#allocation2 + $0x78] sm:$0xff] %vm776, %v726
      %793 = vst.msk [vmem:[#allocation2 + $0x80] sm:$0xff] %vm776, %v729
      %794 = vst.msk [vmem:[#allocation2 + $0x88] sm:$0xff] %vm776, %v732
      %795 = vst.msk [vmem:[#allocation2 + $0x90] sm:$0xff] %vm776, %v735
      %796 = vst.msk [vmem:[#allocation2 + $0x98] sm:$0xff] %vm776, %v738
      %797 = vst.msk [vmem:[#allocation2 + $0xa0] sm:$0xff] %vm776, %v741
      %798 = vst.msk [vmem:[#allocation2 + $0xa8] sm:$0xff] %vm776, %v744
      %799 = vst.msk [vmem:[#allocation2 + $0xb0] sm:$0xff] %vm776, %v747
      %800 = vst.msk [vmem:[#allocation2 + $0xb8] sm:$0xff] %vm776, %v750
      %801 = vst.msk [vmem:[#allocation2 + $0xc0] sm:$0xff] %vm776, %v753
      %802 = vst.msk [vmem:[#allocation2 + $0xc8] sm:$0xff] %vm776, %v756
      %803 = vst.msk [vmem:[#allocation2 + $0xd0] sm:$0xff] %vm776, %v759
      %804 = vst.msk [vmem:[#allocation2 + $0xd8] sm:$0xff] %vm776, %v762
      %805 = vst.msk [vmem:[#allocation2 + $0xe0] sm:$0xff] %vm776, %v765
      %806 = vst.msk [vmem:[#allocation2 + $0xe8] sm:$0xff] %vm776, %v768
      %807 = vst.msk [vmem:[#allocation2 + $0xf0] sm:$0xff] %vm776, %v771
      %808 = vst.msk [vmem:[#allocation2 + $0xf8] sm:$0xff] %vm776, %v774
      %v809 = vld [vmem:[%s5] sm:$0xff]
      %v810 = vld [vmem:[%s5 + $0x8] sm:$0xff]
      %v811 = vld [vmem:[%s345] sm:$0xf]
      %v813 = vsel %vm776, %v811, 0
      %815 = vmatpush.xpose.msra.mxu0 0.0
      %816 = vmatpush.xpose.msra.mxu0 0.0
      %817 = vmatpush.xpose.msra.mxu0 0.0
      %818 = vmatpush.xpose.msra.mxu0 0.0
      %819 = vmatpush.xpose.msra.mxu0 0.0
      %820 = vmatpush.xpose.msra.mxu0 0.0
      %821 = vmatpush.xpose.msra.mxu0 0.0
      %822 = vmatpush.xpose.msra.mxu0 0.0
      %823 = vmatpush.xpose.msra.mxu0 0.0
      %824 = vmatpush.xpose.msra.mxu0 0.0
      %825 = vmatpush.xpose.msra.mxu0 0.0
      %826 = vmatpush.xpose.msra.mxu0 0.0
      %827 = vmatpush.xpose.msra.mxu0 0.0
      %828 = vmatpush.xpose.msra.mxu0 0.0
      %829 = vmatpush.xpose.msra.mxu0 0.0
      %830 = vmatpush.xpose.msra.mxu0 %v813
      %831 = vmatmul.f32.gmra.mxu0 %v813
      %v832 = vpop.f32.mrf.mxu0
      %v833 = vadd.f32 0.0, %v832
      %834 = vdwg.mxu0
      %v835 = vmul.f32 %v833, 0.17677669
      %vm836 = vcmask 27648
      %v837 = vsel %vm836, %v835, -inf
      %838 = vmax.xlane.f32.xlu0 %v837
      %v839 = vpop.xlane.xlu0 %838
      %v840 = vsub.f32 %v835, %v839
      %v841 = vmul.f32 %v840, 1.442695
      %v842 = vpow.pop %v841
      %v843 = vsel %vm836, %v842, 0.0
      %844 = vadd.xlane.f32.xlu0 %v843
      %v845 = vpop.xlane.xlu0 %844
      %v846 = vrcp.pop %v845
      %v847 = vmul.f32 %v842, %v846
      %vm848 = vcmask 31744
      %v850 = vsel %vm848, %v847, 0
      %vm852 = vcmask 1043456
      %v853 = vsel %vm852, %v811, 0
      %855 = vmatpush.msra.mxu0 0.0
      %856 = vmatpush.msra.mxu0 0.0
      %857 = vmatpush.msra.mxu0 0.0
      %858 = vmatpush.msra.mxu0 0.0
      %859 = vmatpush.msra.mxu0 0.0
      %860 = vmatpush.msra.mxu0 0.0
      %861 = vmatpush.msra.mxu0 0.0
      %862 = vmatpush.msra.mxu0 0.0
      %863 = vmatpush.msra.mxu0 0.0
      %864 = vmatpush.msra.mxu0 0.0
      %865 = vmatpush.msra.mxu0 0.0
      %866 = vmatpush.msra.mxu0 0.0
      %867 = vmatpush.msra.mxu0 0.0
      %868 = vmatpush.msra.mxu0 0.0
      %869 = vmatpush.msra.mxu0 0.0
      %870 = vmatpush.msra.mxu0 %v853
      %871 = vmatmul.f32.gmra.mxu0 %v850
      %v872 = vpop.f32.mrf.mxu0
      %v873 = vadd.f32 0.0, %v872
      %874 = vdwg.mxu0
      %v875 = vadd.f32 %v811, %v873
      %v876 = vld [vmem:[#allocation2] sm:$0xff]
      %v877 = vld [vmem:[#allocation2 + $0x8] sm:$0xff]
      %v878 = vadd.f32 %v876, %v809
      %v879 = vadd.f32 %v877, %v810
      %v881 = vsel %vm776, %v875, 0
      %v884 = vsel %vm776, %v878, 0
      %v887 = vsel %vm776, %v879, 0
      %889 = vmatpush.xpose.msra.mxu0 0.0
      %890 = vmatpush.xpose.msra.mxu0 0.0
      %891 = vmatpush.xpose.msra.mxu0 0.0
      %892 = vmatpush.xpose.msra.mxu0 0.0
      %893 = vmatpush.xpose.msra.mxu0 0.0
      %894 = vmatpush.xpose.msra.mxu0 0.0
      %895 = vmatpush.xpose.msra.mxu0 0.0
      %896 = vmatpush.xpose.msra.mxu0 0.0
      %897 = vmatpush.xpose.msra.mxu0 0.0
      %898 = vmatpush.xpose.msra.mxu0 0.0
      %899 = vmatpush.xpose.msra.mxu0 0.0
      %900 = vmatpush.xpose.msra.mxu0 0.0
      %901 = vmatpush.xpose.msra.mxu0 0.0
      %902 = vmatpush.xpose.msra.mxu0 0.0
      %903 = vmatpush.xpose.msra.mxu0 %v887
      %904 = vmatpush.xpose.msra.mxu0 %v884
      %905 = vmatmul.f32.gmra.mxu0 %v881
      %v906 = vpop.f32.mrf.mxu0
      %v907 = vadd.f32 0.0, %v906
      %908 = vdwg.mxu0
      %v909 = vmul.f32 %v907, 0.17677669
      %vm910 = vcmask 125952
      %v911 = vsel %vm910, %v909, -inf
      %912 = vmax.xlane.f32.xlu0 %v911
      %v913 = vpop.xlane.xlu0 %912
      %v914 = vsub.f32 %v909, %v913
      %v915 = vmul.f32 %v914, 1.442695
      %v916 = vpow.pop %v915
      %v917 = vsel %vm910, %v916, 0.0
      %918 = vadd.xlane.f32.xlu0 %v917
      %v919 = vpop.xlane.xlu0 %918
      %v920 = vrcp.pop %v919
      %v921 = vmul.f32 %v916, %v920
      %vm922 = vcmask 130048
      %v924 = vsel %vm922, %v921, 0
      %926 = vmatpush.msra.mxu0 0.0
      %927 = vmatpush.msra.mxu0 0.0
      %928 = vmatpush.msra.mxu0 0.0
      %929 = vmatpush.msra.mxu0 0.0
      %930 = vmatpush.msra.mxu0 0.0
      %931 = vmatpush.msra.mxu0 0.0
      %932 = vmatpush.msra.mxu0 0.0
      %933 = vmatpush.msra.mxu0 0.0
      %934 = vmatpush.msra.mxu0 0.0
      %935 = vmatpush.msra.mxu0 0.0
      %936 = vmatpush.msra.mxu0 0.0
      %937 = vmatpush.msra.mxu0 0.0
      %938 = vmatpush.msra.mxu0 0.0
      %939 = vmatpush.msra.mxu0 0.0
      %940 = vmatpush.msra.mxu0 %v877
      %941 = vmatpush.msra.mxu0 %v876
      %942 = vmatmul.f32.gmra.mxu0 %v924
      %v943 = vpop.f32.mrf.mxu0
      %v944 = vadd.f32 0.0, %v943
      %945 = vdwg.mxu0
      %vm946 = vcmask 253952
      %947 = vst.msk [vmem:[#allocation4] sm:$0x1] %vm946, %v944
      %v949 = vrot.slane %v944, 1
      %v950 = vsel %vm776, %v949, 0
      %v953 = vsel %vm776, %v876, 0
      %v956 = vsel %vm776, %v877, 0
      %958 = vmatpush.xpose.msra.mxu0 0.0
      %959 = vmatpush.xpose.msra.mxu0 0.0
      %960 = vmatpush.xpose.msra.mxu0 0.0
      %961 = vmatpush.xpose.msra.mxu0 0.0
      %962 = vmatpush.xpose.msra.mxu0 0.0
      %963 = vmatpush.xpose.msra.mxu0 0.0
      %964 = vmatpush.xpose.msra.mxu0 0.0
      %965 = vmatpush.xpose.msra.mxu0 0.0
      %966 = vmatpush.xpose.msra.mxu0 0.0
      %967 = vmatpush.xpose.msra.mxu0 0.0
      %968 = vmatpush.xpose.msra.mxu0 0.0
      %969 = vmatpush.xpose.msra.mxu0 0.0
      %970 = vmatpush.xpose.msra.mxu0 0.0
      %971 = vmatpush.xpose.msra.mxu0 0.0
      %972 = vmatpush.xpose.msra.mxu0 %v956
      %973 = vmatpush.xpose.msra.mxu0 %v953
      %974 = vmatmul.f32.gmra.mxu0 %v950
      %v975 = vpop.f32.mrf.mxu0
      %v976 = vadd.f32 0.0, %v975
      %977 = vdwg.mxu0
      %vm978 = vcmask 122880
      %979 = vst.msk [vmem:[#allocation3] sm:$0x1] %vm978, %v976
      %s980 = scalar_lea.vmem %s345, 4
      %v981 = vld [vmem:[%s980] sm:$0xf]
      %v983 = vsel %vm776, %v981, 0
      %985 = vmatpush.xpose.msra.mxu0 0.0
      %986 = vmatpush.xpose.msra.mxu0 0.0
      %987 = vmatpush.xpose.msra.mxu0 0.0
      %988 = vmatpush.xpose.msra.mxu0 0.0
      %989 = vmatpush.xpose.msra.mxu0 0.0
      %990 = vmatpush.xpose.msra.mxu0 0.0
      %991 = vmatpush.xpose.msra.mxu0 0.0
      %992 = vmatpush.xpose.msra.mxu0 0.0
      %993 = vmatpush.xpose.msra.mxu0 0.0
      %994 = vmatpush.xpose.msra.mxu0 0.0
      %995 = vmatpush.xpose.msra.mxu0 0.0
      %996 = vmatpush.xpose.msra.mxu0 0.0
      %997 = vmatpush.xpose.msra.mxu0 0.0
      %998 = vmatpush.xpose.msra.mxu0 0.0
      %999 = vmatpush.xpose.msra.mxu0 0.0
      %1000 = vmatpush.xpose.msra.mxu0 %v983
      %1001 = vmatmul.f32.gmra.mxu0 %v983
      %v1002 = vpop.f32.mrf.mxu0
      %v1003 = vadd.f32 0.0, %v1002
      %1004 = vdwg.mxu0
      %v1005 = vmul.f32 %v1003, 0.17677669
      %v1006 = vsel %vm836, %v1005, -inf
      %1007 = vmax.xlane.f32.xlu0 %v1006
      %v1008 = vpop.xlane.xlu0 %1007
      %v1009 = vsub.f32 %v1005, %v1008
      %v1010 = vmul.f32 %v1009, 1.442695
      %v1011 = vpow.pop %v1010
      %v1012 = vsel %vm836, %v1011, 0.0
      %1013 = vadd.xlane.f32.xlu0 %v1012
      %v1014 = vpop.xlane.xlu0 %1013
      %v1015 = vrcp.pop %v1014
      %v1016 = vmul.f32 %v1011, %v1015
      %v1018 = vsel %vm848, %v1016, 0
      %v1020 = vsel %vm852, %v981, 0
      %1022 = vmatpush.msra.mxu0 0.0
      %1023 = vmatpush.msra.mxu0 0.0
      %1024 = vmatpush.msra.mxu0 0.0
      %1025 = vmatpush.msra.mxu0 0.0
      %1026 = vmatpush.msra.mxu0 0.0
      %1027 = vmatpush.msra.mxu0 0.0
      %1028 = vmatpush.msra.mxu0 0.0
      %1029 = vmatpush.msra.mxu0 0.0
      %1030 = vmatpush.msra.mxu0 0.0
      %1031 = vmatpush.msra.mxu0 0.0
      %1032 = vmatpush.msra.mxu0 0.0
      %1033 = vmatpush.msra.mxu0 0.0
      %1034 = vmatpush.msra.mxu0 0.0
      %1035 = vmatpush.msra.mxu0 0.0
      %1036 = vmatpush.msra.mxu0 0.0
      %1037 = vmatpush.msra.mxu0 %v1020
      %1038 = vmatmul.f32.gmra.mxu0 %v1018
      %v1039 = vpop.f32.mrf.mxu0
      %v1040 = vadd.f32 0.0, %v1039
      %1041 = vdwg.mxu0
      %v1042 = vadd.f32 %v981, %v1040
      %v1043 = vld [vmem:[#allocation2 + $0x10] sm:$0xff]
      %v1044 = vld [vmem:[#allocation2 + $0x18] sm:$0xff]
      %v1045 = vadd.f32 %v1043, %v809
      %v1046 = vadd.f32 %v1044, %v810
      %v1048 = vsel %vm776, %v1042, 0
      %v1051 = vsel %vm776, %v1045, 0
      %v1054 = vsel %vm776, %v1046, 0
      %1056 = vmatpush.xpose.msra.mxu0 0.0
      %1057 = vmatpush.xpose.msra.mxu0 0.0
      %1058 = vmatpush.xpose.msra.mxu0 0.0
      %1059 = vmatpush.xpose.msra.mxu0 0.0
      %1060 = vmatpush.xpose.msra.mxu0 0.0
      %1061 = vmatpush.xpose.msra.mxu0 0.0
      %1062 = vmatpush.xpose.msra.mxu0 0.0
      %1063 = vmatpush.xpose.msra.mxu0 0.0
      %1064 = vmatpush.xpose.msra.mxu0 0.0
      %1065 = vmatpush.xpose.msra.mxu0 0.0
      %1066 = vmatpush.xpose.msra.mxu0 0.0
      %1067 = vmatpush.xpose.msra.mxu0 0.0
      %1068 = vmatpush.xpose.msra.mxu0 0.0
      %1069 = vmatpush.xpose.msra.mxu0 0.0
      %1070 = vmatpush.xpose.msra.mxu0 %v1054
      %1071 = vmatpush.xpose.msra.mxu0 %v1051
      %1072 = vmatmul.f32.gmra.mxu0 %v1048
      %v1073 = vpop.f32.mrf.mxu0
      %v1074 = vadd.f32 0.0, %v1073
      %1075 = vdwg.mxu0
      %v1076 = vmul.f32 %v1074, 0.17677669
      %v1077 = vsel %vm910, %v1076, -inf
      %1078 = vmax.xlane.f32.xlu0 %v1077
      %v1079 = vpop.xlane.xlu0 %1078
      %v1080 = vsub.f32 %v1076, %v1079
      %v1081 = vmul.f32 %v1080, 1.442695
      %v1082 = vpow.pop %v1081
      %v1083 = vsel %vm910, %v1082, 0.0
      %1084 = vadd.xlane.f32.xlu0 %v1083
      %v1085 = vpop.xlane.xlu0 %1084
      %v1086 = vrcp.pop %v1085
      %v1087 = vmul.f32 %v1082, %v1086
      %v1089 = vsel %vm922, %v1087, 0
      %1091 = vmatpush.msra.mxu0 0.0
      %1092 = vmatpush.msra.mxu0 0.0
      %1093 = vmatpush.msra.mxu0 0.0
      %1094 = vmatpush.msra.mxu0 0.0
      %1095 = vmatpush.msra.mxu0 0.0
      %1096 = vmatpush.msra.mxu0 0.0
      %1097 = vmatpush.msra.mxu0 0.0
      %1098 = vmatpush.msra.mxu0 0.0
      %1099 = vmatpush.msra.mxu0 0.0
      %1100 = vmatpush.msra.mxu0 0.0
      %1101 = vmatpush.msra.mxu0 0.0
      %1102 = vmatpush.msra.mxu0 0.0
      %1103 = vmatpush.msra.mxu0 0.0
      %1104 = vmatpush.msra.mxu0 0.0
      %1105 = vmatpush.msra.mxu0 %v1044
      %1106 = vmatpush.msra.mxu0 %v1043
      %1107 = vmatmul.f32.gmra.mxu0 %v1089
      %v1108 = vpop.f32.mrf.mxu0
      %v1109 = vadd.f32 0.0, %v1108
      %1110 = vdwg.mxu0
      %1111 = vst.msk [vmem:[#allocation4 + $0x1] sm:$0x1] %vm946, %v1109
      %v1113 = vrot.slane %v1109, 1
      %v1114 = vsel %vm776, %v1113, 0
      %v1117 = vsel %vm776, %v1043, 0
      %v1120 = vsel %vm776, %v1044, 0
      %1122 = vmatpush.xpose.msra.mxu0 0.0
      %1123 = vmatpush.xpose.msra.mxu0 0.0
      %1124 = vmatpush.xpose.msra.mxu0 0.0
      %1125 = vmatpush.xpose.msra.mxu0 0.0
      %1126 = vmatpush.xpose.msra.mxu0 0.0
      %1127 = vmatpush.xpose.msra.mxu0 0.0
      %1128 = vmatpush.xpose.msra.mxu0 0.0
      %1129 = vmatpush.xpose.msra.mxu0 0.0
      %1130 = vmatpush.xpose.msra.mxu0 0.0
      %1131 = vmatpush.xpose.msra.mxu0 0.0
      %1132 = vmatpush.xpose.msra.mxu0 0.0
      %1133 = vmatpush.xpose.msra.mxu0 0.0
      %1134 = vmatpush.xpose.msra.mxu0 0.0
      %1135 = vmatpush.xpose.msra.mxu0 0.0
      %1136 = vmatpush.xpose.msra.mxu0 %v1120
      %1137 = vmatpush.xpose.msra.mxu0 %v1117
      %1138 = vmatmul.f32.gmra.mxu0 %v1114
      %v1139 = vpop.f32.mrf.mxu0
      %v1140 = vadd.f32 0.0, %v1139
      %1141 = vdwg.mxu0
      %1142 = vst.msk [vmem:[#allocation3 + $0x1] sm:$0x1] %vm978, %v1140
      %s1143 = scalar_lea.vmem %s345, 8
      %v1144 = vld [vmem:[%s1143] sm:$0xf]
      %v1146 = vsel %vm776, %v1144, 0
      %1148 = vmatpush.xpose.msra.mxu0 0.0
      %1149 = vmatpush.xpose.msra.mxu0 0.0
      %1150 = vmatpush.xpose.msra.mxu0 0.0
      %1151 = vmatpush.xpose.msra.mxu0 0.0
      %1152 = vmatpush.xpose.msra.mxu0 0.0
      %1153 = vmatpush.xpose.msra.mxu0 0.0
      %1154 = vmatpush.xpose.msra.mxu0 0.0
      %1155 = vmatpush.xpose.msra.mxu0 0.0
      %1156 = vmatpush.xpose.msra.mxu0 0.0
      %1157 = vmatpush.xpose.msra.mxu0 0.0
      %1158 = vmatpush.xpose.msra.mxu0 0.0
      %1159 = vmatpush.xpose.msra.mxu0 0.0
      %1160 = vmatpush.xpose.msra.mxu0 0.0
      %1161 = vmatpush.xpose.msra.mxu0 0.0
      %1162 = vmatpush.xpose.msra.mxu0 0.0
      %1163 = vmatpush.xpose.msra.mxu0 %v1146
      %1164 = vmatmul.f32.gmra.mxu0 %v1146
      %v1165 = vpop.f32.mrf.mxu0
      %v1166 = vadd.f32 0.0, %v1165
      %1167 = vdwg.mxu0
      %v1168 = vmul.f32 %v1166, 0.17677669
      %v1169 = vsel %vm836, %v1168, -inf
      %1170 = vmax.xlane.f32.xlu0 %v1169
      %v1171 = vpop.xlane.xlu0 %1170
      %v1172 = vsub.f32 %v1168, %v1171
      %v1173 = vmul.f32 %v1172, 1.442695
      %v1174 = vpow.pop %v1173
      %v1175 = vsel %vm836, %v1174, 0.0
      %1176 = vadd.xlane.f32.xlu0 %v1175
      %v1177 = vpop.xlane.xlu0 %1176
      %v1178 = vrcp.pop %v1177
      %v1179 = vmul.f32 %v1174, %v1178
      %v1181 = vsel %vm848, %v1179, 0
      %v1183 = vsel %vm852, %v1144, 0
      %1185 = vmatpush.msra.mxu0 0.0
      %1186 = vmatpush.msra.mxu0 0.0
      %1187 = vmatpush.msra.mxu0 0.0
      %1188 = vmatpush.msra.mxu0 0.0
      %1189 = vmatpush.msra.mxu0 0.0
      %1190 = vmatpush.msra.mxu0 0.0
      %1191 = vmatpush.msra.mxu0 0.0
      %1192 = vmatpush.msra.mxu0 0.0
      %1193 = vmatpush.msra.mxu0 0.0
      %1194 = vmatpush.msra.mxu0 0.0
      %1195 = vmatpush.msra.mxu0 0.0
      %1196 = vmatpush.msra.mxu0 0.0
      %1197 = vmatpush.msra.mxu0 0.0
      %1198 = vmatpush.msra.mxu0 0.0
      %1199 = vmatpush.msra.mxu0 0.0
      %1200 = vmatpush.msra.mxu0 %v1183
      %1201 = vmatmul.f32.gmra.mxu0 %v1181
      %v1202 = vpop.f32.mrf.mxu0
      %v1203 = vadd.f32 0.0, %v1202
      %1204 = vdwg.mxu0
      %v1205 = vadd.f32 %v1144, %v1203
      %v1206 = vld [vmem:[#allocation2 + $0x20] sm:$0xff]
      %v1207 = vld [vmem:[#allocation2 + $0x28] sm:$0xff]
      %v1208 = vadd.f32 %v1206, %v809
      %v1209 = vadd.f32 %v1207, %v810
      %v1211 = vsel %vm776, %v1205, 0
      %v1214 = vsel %vm776, %v1208, 0
      %v1217 = vsel %vm776, %v1209, 0
      %1219 = vmatpush.xpose.msra.mxu0 0.0
      %1220 = vmatpush.xpose.msra.mxu0 0.0
      %1221 = vmatpush.xpose.msra.mxu0 0.0
      %1222 = vmatpush.xpose.msra.mxu0 0.0
      %1223 = vmatpush.xpose.msra.mxu0 0.0
      %1224 = vmatpush.xpose.msra.mxu0 0.0
      %1225 = vmatpush.xpose.msra.mxu0 0.0
      %1226 = vmatpush.xpose.msra.mxu0 0.0
      %1227 = vmatpush.xpose.msra.mxu0 0.0
      %1228 = vmatpush.xpose.msra.mxu0 0.0
      %1229 = vmatpush.xpose.msra.mxu0 0.0
      %1230 = vmatpush.xpose.msra.mxu0 0.0
      %1231 = vmatpush.xpose.msra.mxu0 0.0
      %1232 = vmatpush.xpose.msra.mxu0 0.0
      %1233 = vmatpush.xpose.msra.mxu0 %v1217
      %1234 = vmatpush.xpose.msra.mxu0 %v1214
      %1235 = vmatmul.f32.gmra.mxu0 %v1211
      %v1236 = vpop.f32.mrf.mxu0
      %v1237 = vadd.f32 0.0, %v1236
      %1238 = vdwg.mxu0
      %v1239 = vmul.f32 %v1237, 0.17677669
      %v1240 = vsel %vm910, %v1239, -inf
      %1241 = vmax.xlane.f32.xlu0 %v1240
      %v1242 = vpop.xlane.xlu0 %1241
      %v1243 = vsub.f32 %v1239, %v1242
      %v1244 = vmul.f32 %v1243, 1.442695
      %v1245 = vpow.pop %v1244
      %v1246 = vsel %vm910, %v1245, 0.0
      %1247 = vadd.xlane.f32.xlu0 %v1246
      %v1248 = vpop.xlane.xlu0 %1247
      %v1249 = vrcp.pop %v1248
      %v1250 = vmul.f32 %v1245, %v1249
      %v1252 = vsel %vm922, %v1250, 0
      %1254 = vmatpush.msra.mxu0 0.0
      %1255 = vmatpush.msra.mxu0 0.0
      %1256 = vmatpush.msra.mxu0 0.0
      %1257 = vmatpush.msra.mxu0 0.0
      %1258 = vmatpush.msra.mxu0 0.0
      %1259 = vmatpush.msra.mxu0 0.0
      %1260 = vmatpush.msra.mxu0 0.0
      %1261 = vmatpush.msra.mxu0 0.0
      %1262 = vmatpush.msra.mxu0 0.0
      %1263 = vmatpush.msra.mxu0 0.0
      %1264 = vmatpush.msra.mxu0 0.0
      %1265 = vmatpush.msra.mxu0 0.0
      %1266 = vmatpush.msra.mxu0 0.0
      %1267 = vmatpush.msra.mxu0 0.0
      %1268 = vmatpush.msra.mxu0 %v1207
      %1269 = vmatpush.msra.mxu0 %v1206
      %1270 = vmatmul.f32.gmra.mxu0 %v1252
      %v1271 = vpop.f32.mrf.mxu0
      %v1272 = vadd.f32 0.0, %v1271
      %1273 = vdwg.mxu0
      %1274 = vst.msk [vmem:[#allocation4 + $0x2] sm:$0x1] %vm946, %v1272
      %v1276 = vrot.slane %v1272, 1
      %v1277 = vsel %vm776, %v1276, 0
      %v1280 = vsel %vm776, %v1206, 0
      %v1283 = vsel %vm776, %v1207, 0
      %1285 = vmatpush.xpose.msra.mxu0 0.0
      %1286 = vmatpush.xpose.msra.mxu0 0.0
      %1287 = vmatpush.xpose.msra.mxu0 0.0
      %1288 = vmatpush.xpose.msra.mxu0 0.0
      %1289 = vmatpush.xpose.msra.mxu0 0.0
      %1290 = vmatpush.xpose.msra.mxu0 0.0
      %1291 = vmatpush.xpose.msra.mxu0 0.0
      %1292 = vmatpush.xpose.msra.mxu0 0.0
      %1293 = vmatpush.xpose.msra.mxu0 0.0
      %1294 = vmatpush.xpose.msra.mxu0 0.0
      %1295 = vmatpush.xpose.msra.mxu0 0.0
      %1296 = vmatpush.xpose.msra.mxu0 0.0
      %1297 = vmatpush.xpose.msra.mxu0 0.0
      %1298 = vmatpush.xpose.msra.mxu0 0.0
      %1299 = vmatpush.xpose.msra.mxu0 %v1283
      %1300 = vmatpush.xpose.msra.mxu0 %v1280
      %1301 = vmatmul.f32.gmra.mxu0 %v1277
      %v1302 = vpop.f32.mrf.mxu0
      %v1303 = vadd.f32 0.0, %v1302
      %1304 = vdwg.mxu0
      %1305 = vst.msk [vmem:[#allocation3 + $0x2] sm:$0x1] %vm978, %v1303
      %s1306 = scalar_lea.vmem %s345, 12
      %v1307 = vld [vmem:[%s1306] sm:$0xf]
      %v1309 = vsel %vm776, %v1307, 0
      %1311 = vmatpush.xpose.msra.mxu0 0.0
      %1312 = vmatpush.xpose.msra.mxu0 0.0
      %1313 = vmatpush.xpose.msra.mxu0 0.0
      %1314 = vmatpush.xpose.msra.mxu0 0.0
      %1315 = vmatpush.xpose.msra.mxu0 0.0
      %1316 = vmatpush.xpose.msra.mxu0 0.0
      %1317 = vmatpush.xpose.msra.mxu0 0.0
      %1318 = vmatpush.xpose.msra.mxu0 0.0
      %1319 = vmatpush.xpose.msra.mxu0 0.0
      %1320 = vmatpush.xpose.msra.mxu0 0.0
      %1321 = vmatpush.xpose.msra.mxu0 0.0
      %1322 = vmatpush.xpose.msra.mxu0 0.0
      %1323 = vmatpush.xpose.msra.mxu0 0.0
      %1324 = vmatpush.xpose.msra.mxu0 0.0
      %1325 = vmatpush.xpose.msra.mxu0 0.0
      %1326 = vmatpush.xpose.msra.mxu0 %v1309
      %1327 = vmatmul.f32.gmra.mxu0 %v1309
      %v1328 = vpop.f32.mrf.mxu0
      %v1329 = vadd.f32 0.0, %v1328
      %1330 = vdwg.mxu0
      %v1331 = vmul.f32 %v1329, 0.17677669
      %v1332 = vsel %vm836, %v1331, -inf
      %1333 = vmax.xlane.f32.xlu0 %v1332
      %v1334 = vpop.xlane.xlu0 %1333
      %v1335 = vsub.f32 %v1331, %v1334
      %v1336 = vmul.f32 %v1335, 1.442695
      %v1337 = vpow.pop %v1336
      %v1338 = vsel %vm836, %v1337, 0.0
      %1339 = vadd.xlane.f32.xlu0 %v1338
      %v1340 = vpop.xlane.xlu0 %1339
      %v1341 = vrcp.pop %v1340
      %v1342 = vmul.f32 %v1337, %v1341
      %v1344 = vsel %vm848, %v1342, 0
      %v1346 = vsel %vm852, %v1307, 0
      %1348 = vmatpush.msra.mxu0 0.0
      %1349 = vmatpush.msra.mxu0 0.0
      %1350 = vmatpush.msra.mxu0 0.0
      %1351 = vmatpush.msra.mxu0 0.0
      %1352 = vmatpush.msra.mxu0 0.0
      %1353 = vmatpush.msra.mxu0 0.0
      %1354 = vmatpush.msra.mxu0 0.0
      %1355 = vmatpush.msra.mxu0 0.0
      %1356 = vmatpush.msra.mxu0 0.0
      %1357 = vmatpush.msra.mxu0 0.0
      %1358 = vmatpush.msra.mxu0 0.0
      %1359 = vmatpush.msra.mxu0 0.0
      %1360 = vmatpush.msra.mxu0 0.0
      %1361 = vmatpush.msra.mxu0 0.0
      %1362 = vmatpush.msra.mxu0 0.0
      %1363 = vmatpush.msra.mxu0 %v1346
      %1364 = vmatmul.f32.gmra.mxu0 %v1344
      %v1365 = vpop.f32.mrf.mxu0
      %v1366 = vadd.f32 0.0, %v1365
      %1367 = vdwg.mxu0
      %v1368 = vadd.f32 %v1307, %v1366
      %v1369 = vld [vmem:[#allocation2 + $0x30] sm:$0xff]
      %v1370 = vld [vmem:[#allocation2 + $0x38] sm:$0xff]
      %v1371 = vadd.f32 %v1369, %v809
      %v1372 = vadd.f32 %v1370, %v810
      %v1374 = vsel %vm776, %v1368, 0
      %v1377 = vsel %vm776, %v1371, 0
      %v1380 = vsel %vm776, %v1372, 0
      %1382 = vmatpush.xpose.msra.mxu0 0.0
      %1383 = vmatpush.xpose.msra.mxu0 0.0
      %1384 = vmatpush.xpose.msra.mxu0 0.0
      %1385 = vmatpush.xpose.msra.mxu0 0.0
      %1386 = vmatpush.xpose.msra.mxu0 0.0
      %1387 = vmatpush.xpose.msra.mxu0 0.0
      %1388 = vmatpush.xpose.msra.mxu0 0.0
      %1389 = vmatpush.xpose.msra.mxu0 0.0
      %1390 = vmatpush.xpose.msra.mxu0 0.0
      %1391 = vmatpush.xpose.msra.mxu0 0.0
      %1392 = vmatpush.xpose.msra.mxu0 0.0
      %1393 = vmatpush.xpose.msra.mxu0 0.0
      %1394 = vmatpush.xpose.msra.mxu0 0.0
      %1395 = vmatpush.xpose.msra.mxu0 0.0
      %1396 = vmatpush.xpose.msra.mxu0 %v1380
      %1397 = vmatpush.xpose.msra.mxu0 %v1377
      %1398 = vmatmul.f32.gmra.mxu0 %v1374
      %v1399 = vpop.f32.mrf.mxu0
      %v1400 = vadd.f32 0.0, %v1399
      %1401 = vdwg.mxu0
      %v1402 = vmul.f32 %v1400, 0.17677669
      %v1403 = vsel %vm910, %v1402, -inf
      %1404 = vmax.xlane.f32.xlu0 %v1403
      %v1405 = vpop.xlane.xlu0 %1404
      %v1406 = vsub.f32 %v1402, %v1405
      %v1407 = vmul.f32 %v1406, 1.442695
      %v1408 = vpow.pop %v1407
      %v1409 = vsel %vm910, %v1408, 0.0
      %1410 = vadd.xlane.f32.xlu0 %v1409
      %v1411 = vpop.xlane.xlu0 %1410
      %v1412 = vrcp.pop %v1411
      %v1413 = vmul.f32 %v1408, %v1412
      %v1415 = vsel %vm922, %v1413, 0
      %1417 = vmatpush.msra.mxu0 0.0
      %1418 = vmatpush.msra.mxu0 0.0
      %1419 = vmatpush.msra.mxu0 0.0
      %1420 = vmatpush.msra.mxu0 0.0
      %1421 = vmatpush.msra.mxu0 0.0
      %1422 = vmatpush.msra.mxu0 0.0
      %1423 = vmatpush.msra.mxu0 0.0
      %1424 = vmatpush.msra.mxu0 0.0
      %1425 = vmatpush.msra.mxu0 0.0
      %1426 = vmatpush.msra.mxu0 0.0
      %1427 = vmatpush.msra.mxu0 0.0
      %1428 = vmatpush.msra.mxu0 0.0
      %1429 = vmatpush.msra.mxu0 0.0
      %1430 = vmatpush.msra.mxu0 0.0
      %1431 = vmatpush.msra.mxu0 %v1370
      %1432 = vmatpush.msra.mxu0 %v1369
      %1433 = vmatmul.f32.gmra.mxu0 %v1415
      %v1434 = vpop.f32.mrf.mxu0
      %v1435 = vadd.f32 0.0, %v1434
      %1436 = vdwg.mxu0
      %1437 = vst.msk [vmem:[#allocation4 + $0x3] sm:$0x1] %vm946, %v1435
      %v1439 = vrot.slane %v1435, 1
      %v1440 = vsel %vm776, %v1439, 0
      %v1443 = vsel %vm776, %v1369, 0
      %v1446 = vsel %vm776, %v1370, 0
      %1448 = vmatpush.xpose.msra.mxu0 0.0
      %1449 = vmatpush.xpose.msra.mxu0 0.0
      %1450 = vmatpush.xpose.msra.mxu0 0.0
      %1451 = vmatpush.xpose.msra.mxu0 0.0
      %1452 = vmatpush.xpose.msra.mxu0 0.0
      %1453 = vmatpush.xpose.msra.mxu0 0.0
      %1454 = vmatpush.xpose.msra.mxu0 0.0
      %1455 = vmatpush.xpose.msra.mxu0 0.0
      %1456 = vmatpush.xpose.msra.mxu0 0.0
      %1457 = vmatpush.xpose.msra.mxu0 0.0
      %1458 = vmatpush.xpose.msra.mxu0 0.0
      %1459 = vmatpush.xpose.msra.mxu0 0.0
      %1460 = vmatpush.xpose.msra.mxu0 0.0
      %1461 = vmatpush.xpose.msra.mxu0 0.0
      %1462 = vmatpush.xpose.msra.mxu0 %v1446
      %1463 = vmatpush.xpose.msra.mxu0 %v1443
      %1464 = vmatmul.f32.gmra.mxu0 %v1440
      %v1465 = vpop.f32.mrf.mxu0
      %v1466 = vadd.f32 0.0, %v1465
      %1467 = vdwg.mxu0
      %1468 = vst.msk [vmem:[#allocation3 + $0x3] sm:$0x1] %vm978, %v1466
      %s1469 = scalar_lea.vmem %s345, 16
      %v1470 = vld [vmem:[%s1469] sm:$0xf]
      %v1472 = vsel %vm776, %v1470, 0
      %1474 = vmatpush.xpose.msra.mxu0 0.0
      %1475 = vmatpush.xpose.msra.mxu0 0.0
      %1476 = vmatpush.xpose.msra.mxu0 0.0
      %1477 = vmatpush.xpose.msra.mxu0 0.0
      %1478 = vmatpush.xpose.msra.mxu0 0.0
      %1479 = vmatpush.xpose.msra.mxu0 0.0
      %1480 = vmatpush.xpose.msra.mxu0 0.0
      %1481 = vmatpush.xpose.msra.mxu0 0.0
      %1482 = vmatpush.xpose.msra.mxu0 0.0
      %1483 = vmatpush.xpose.msra.mxu0 0.0
      %1484 = vmatpush.xpose.msra.mxu0 0.0
      %1485 = vmatpush.xpose.msra.mxu0 0.0
      %1486 = vmatpush.xpose.msra.mxu0 0.0
      %1487 = vmatpush.xpose.msra.mxu0 0.0
      %1488 = vmatpush.xpose.msra.mxu0 0.0
      %1489 = vmatpush.xpose.msra.mxu0 %v1472
      %1490 = vmatmul.f32.gmra.mxu0 %v1472
      %v1491 = vpop.f32.mrf.mxu0
      %v1492 = vadd.f32 0.0, %v1491
      %1493 = vdwg.mxu0
      %v1494 = vmul.f32 %v1492, 0.17677669
      %v1495 = vsel %vm836, %v1494, -inf
      %1496 = vmax.xlane.f32.xlu0 %v1495
      %v1497 = vpop.xlane.xlu0 %1496
      %v1498 = vsub.f32 %v1494, %v1497
      %v1499 = vmul.f32 %v1498, 1.442695
      %v1500 = vpow.pop %v1499
      %v1501 = vsel %vm836, %v1500, 0.0
      %1502 = vadd.xlane.f32.xlu0 %v1501
      %v1503 = vpop.xlane.xlu0 %1502
      %v1504 = vrcp.pop %v1503
      %v1505 = vmul.f32 %v1500, %v1504
      %v1507 = vsel %vm848, %v1505, 0
      %v1509 = vsel %vm852, %v1470, 0
      %1511 = vmatpush.msra.mxu0 0.0
      %1512 = vmatpush.msra.mxu0 0.0
      %1513 = vmatpush.msra.mxu0 0.0
      %1514 = vmatpush.msra.mxu0 0.0
      %1515 = vmatpush.msra.mxu0 0.0
      %1516 = vmatpush.msra.mxu0 0.0
      %1517 = vmatpush.msra.mxu0 0.0
      %1518 = vmatpush.msra.mxu0 0.0
      %1519 = vmatpush.msra.mxu0 0.0
      %1520 = vmatpush.msra.mxu0 0.0
      %1521 = vmatpush.msra.mxu0 0.0
      %1522 = vmatpush.msra.mxu0 0.0
      %1523 = vmatpush.msra.mxu0 0.0
      %1524 = vmatpush.msra.mxu0 0.0
      %1525 = vmatpush.msra.mxu0 0.0
      %1526 = vmatpush.msra.mxu0 %v1509
      %1527 = vmatmul.f32.gmra.mxu0 %v1507
      %v1528 = vpop.f32.mrf.mxu0
      %v1529 = vadd.f32 0.0, %v1528
      %1530 = vdwg.mxu0
      %v1531 = vadd.f32 %v1470, %v1529
      %v1532 = vld [vmem:[#allocation2 + $0x40] sm:$0xff]
      %v1533 = vld [vmem:[#allocation2 + $0x48] sm:$0xff]
      %v1534 = vadd.f32 %v1532, %v809
      %v1535 = vadd.f32 %v1533, %v810
      %v1537 = vsel %vm776, %v1531, 0
      %v1540 = vsel %vm776, %v1534, 0
      %v1543 = vsel %vm776, %v1535, 0
      %1545 = vmatpush.xpose.msra.mxu0 0.0
      %1546 = vmatpush.xpose.msra.mxu0 0.0
      %1547 = vmatpush.xpose.msra.mxu0 0.0
      %1548 = vmatpush.xpose.msra.mxu0 0.0
      %1549 = vmatpush.xpose.msra.mxu0 0.0
      %1550 = vmatpush.xpose.msra.mxu0 0.0
      %1551 = vmatpush.xpose.msra.mxu0 0.0
      %1552 = vmatpush.xpose.msra.mxu0 0.0
      %1553 = vmatpush.xpose.msra.mxu0 0.0
      %1554 = vmatpush.xpose.msra.mxu0 0.0
      %1555 = vmatpush.xpose.msra.mxu0 0.0
      %1556 = vmatpush.xpose.msra.mxu0 0.0
      %1557 = vmatpush.xpose.msra.mxu0 0.0
      %1558 = vmatpush.xpose.msra.mxu0 0.0
      %1559 = vmatpush.xpose.msra.mxu0 %v1543
      %1560 = vmatpush.xpose.msra.mxu0 %v1540
      %1561 = vmatmul.f32.gmra.mxu0 %v1537
      %v1562 = vpop.f32.mrf.mxu0
      %v1563 = vadd.f32 0.0, %v1562
      %1564 = vdwg.mxu0
      %v1565 = vmul.f32 %v1563, 0.17677669
      %v1566 = vsel %vm910, %v1565, -inf
      %1567 = vmax.xlane.f32.xlu0 %v1566
      %v1568 = vpop.xlane.xlu0 %1567
      %v1569 = vsub.f32 %v1565, %v1568
      %v1570 = vmul.f32 %v1569, 1.442695
      %v1571 = vpow.pop %v1570
      %v1572 = vsel %vm910, %v1571, 0.0
      %1573 = vadd.xlane.f32.xlu0 %v1572
      %v1574 = vpop.xlane.xlu0 %1573
      %v1575 = vrcp.pop %v1574
      %v1576 = vmul.f32 %v1571, %v1575
      %v1578 = vsel %vm922, %v1576, 0
      %1580 = vmatpush.msra.mxu0 0.0
      %1581 = vmatpush.msra.mxu0 0.0
      %1582 = vmatpush.msra.mxu0 0.0
      %1583 = vmatpush.msra.mxu0 0.0
      %1584 = vmatpush.msra.mxu0 0.0
      %1585 = vmatpush.msra.mxu0 0.0
      %1586 = vmatpush.msra.mxu0 0.0
      %1587 = vmatpush.msra.mxu0 0.0
      %1588 = vmatpush.msra.mxu0 0.0
      %1589 = vmatpush.msra.mxu0 0.0
      %1590 = vmatpush.msra.mxu0 0.0
      %1591 = vmatpush.msra.mxu0 0.0
      %1592 = vmatpush.msra.mxu0 0.0
      %1593 = vmatpush.msra.mxu0 0.0
      %1594 = vmatpush.msra.mxu0 %v1533
      %1595 = vmatpush.msra.mxu0 %v1532
      %1596 = vmatmul.f32.gmra.mxu0 %v1578
      %v1597 = vpop.f32.mrf.mxu0
      %v1598 = vadd.f32 0.0, %v1597
      %1599 = vdwg.mxu0
      %1600 = vst.msk [vmem:[#allocation4 + $0x4] sm:$0x1] %vm946, %v1598
      %v1602 = vrot.slane %v1598, 1
      %v1603 = vsel %vm776, %v1602, 0
      %v1606 = vsel %vm776, %v1532, 0
      %v1609 = vsel %vm776, %v1533, 0
      %1611 = vmatpush.xpose.msra.mxu0 0.0
      %1612 = vmatpush.xpose.msra.mxu0 0.0
      %1613 = vmatpush.xpose.msra.mxu0 0.0
      %1614 = vmatpush.xpose.msra.mxu0 0.0
      %1615 = vmatpush.xpose.msra.mxu0 0.0
      %1616 = vmatpush.xpose.msra.mxu0 0.0
      %1617 = vmatpush.xpose.msra.mxu0 0.0
      %1618 = vmatpush.xpose.msra.mxu0 0.0
      %1619 = vmatpush.xpose.msra.mxu0 0.0
      %1620 = vmatpush.xpose.msra.mxu0 0.0
      %1621 = vmatpush.xpose.msra.mxu0 0.0
      %1622 = vmatpush.xpose.msra.mxu0 0.0
      %1623 = vmatpush.xpose.msra.mxu0 0.0
      %1624 = vmatpush.xpose.msra.mxu0 0.0
      %1625 = vmatpush.xpose.msra.mxu0 %v1609
      %1626 = vmatpush.xpose.msra.mxu0 %v1606
      %1627 = vmatmul.f32.gmra.mxu0 %v1603
      %v1628 = vpop.f32.mrf.mxu0
      %v1629 = vadd.f32 0.0, %v1628
      %1630 = vdwg.mxu0
      %1631 = vst.msk [vmem:[#allocation3 + $0x4] sm:$0x1] %vm978, %v1629
      %s1632 = scalar_lea.vmem %s345, 20
      %v1633 = vld [vmem:[%s1632] sm:$0xf]
      %v1635 = vsel %vm776, %v1633, 0
      %1637 = vmatpush.xpose.msra.mxu0 0.0
      %1638 = vmatpush.xpose.msra.mxu0 0.0
      %1639 = vmatpush.xpose.msra.mxu0 0.0
      %1640 = vmatpush.xpose.msra.mxu0 0.0
      %1641 = vmatpush.xpose.msra.mxu0 0.0
      %1642 = vmatpush.xpose.msra.mxu0 0.0
      %1643 = vmatpush.xpose.msra.mxu0 0.0
      %1644 = vmatpush.xpose.msra.mxu0 0.0
      %1645 = vmatpush.xpose.msra.mxu0 0.0
      %1646 = vmatpush.xpose.msra.mxu0 0.0
      %1647 = vmatpush.xpose.msra.mxu0 0.0
      %1648 = vmatpush.xpose.msra.mxu0 0.0
      %1649 = vmatpush.xpose.msra.mxu0 0.0
      %1650 = vmatpush.xpose.msra.mxu0 0.0
      %1651 = vmatpush.xpose.msra.mxu0 0.0
      %1652 = vmatpush.xpose.msra.mxu0 %v1635
      %1653 = vmatmul.f32.gmra.mxu0 %v1635
      %v1654 = vpop.f32.mrf.mxu0
      %v1655 = vadd.f32 0.0, %v1654
      %1656 = vdwg.mxu0
      %v1657 = vmul.f32 %v1655, 0.17677669
      %v1658 = vsel %vm836, %v1657, -inf
      %1659 = vmax.xlane.f32.xlu0 %v1658
      %v1660 = vpop.xlane.xlu0 %1659
      %v1661 = vsub.f32 %v1657, %v1660
      %v1662 = vmul.f32 %v1661, 1.442695
      %v1663 = vpow.pop %v1662
      %v1664 = vsel %vm836, %v1663, 0.0
      %1665 = vadd.xlane.f32.xlu0 %v1664
      %v1666 = vpop.xlane.xlu0 %1665
      %v1667 = vrcp.pop %v1666
      %v1668 = vmul.f32 %v1663, %v1667
      %v1670 = vsel %vm848, %v1668, 0
      %v1672 = vsel %vm852, %v1633, 0
      %1674 = vmatpush.msra.mxu0 0.0
      %1675 = vmatpush.msra.mxu0 0.0
      %1676 = vmatpush.msra.mxu0 0.0
      %1677 = vmatpush.msra.mxu0 0.0
      %1678 = vmatpush.msra.mxu0 0.0
      %1679 = vmatpush.msra.mxu0 0.0
      %1680 = vmatpush.msra.mxu0 0.0
      %1681 = vmatpush.msra.mxu0 0.0
      %1682 = vmatpush.msra.mxu0 0.0
      %1683 = vmatpush.msra.mxu0 0.0
      %1684 = vmatpush.msra.mxu0 0.0
      %1685 = vmatpush.msra.mxu0 0.0
      %1686 = vmatpush.msra.mxu0 0.0
      %1687 = vmatpush.msra.mxu0 0.0
      %1688 = vmatpush.msra.mxu0 0.0
      %1689 = vmatpush.msra.mxu0 %v1672
      %1690 = vmatmul.f32.gmra.mxu0 %v1670
      %v1691 = vpop.f32.mrf.mxu0
      %v1692 = vadd.f32 0.0, %v1691
      %1693 = vdwg.mxu0
      %v1694 = vadd.f32 %v1633, %v1692
      %v1695 = vld [vmem:[#allocation2 + $0x50] sm:$0xff]
      %v1696 = vld [vmem:[#allocation2 + $0x58] sm:$0xff]
      %v1697 = vadd.f32 %v1695, %v809
      %v1698 = vadd.f32 %v1696, %v810
      %v1700 = vsel %vm776, %v1694, 0
      %v1703 = vsel %vm776, %v1697, 0
      %v1706 = vsel %vm776, %v1698, 0
      %1708 = vmatpush.xpose.msra.mxu0 0.0
      %1709 = vmatpush.xpose.msra.mxu0 0.0
      %1710 = vmatpush.xpose.msra.mxu0 0.0
      %1711 = vmatpush.xpose.msra.mxu0 0.0
      %1712 = vmatpush.xpose.msra.mxu0 0.0
      %1713 = vmatpush.xpose.msra.mxu0 0.0
      %1714 = vmatpush.xpose.msra.mxu0 0.0
      %1715 = vmatpush.xpose.msra.mxu0 0.0
      %1716 = vmatpush.xpose.msra.mxu0 0.0
      %1717 = vmatpush.xpose.msra.mxu0 0.0
      %1718 = vmatpush.xpose.msra.mxu0 0.0
      %1719 = vmatpush.xpose.msra.mxu0 0.0
      %1720 = vmatpush.xpose.msra.mxu0 0.0
      %1721 = vmatpush.xpose.msra.mxu0 0.0
      %1722 = vmatpush.xpose.msra.mxu0 %v1706
      %1723 = vmatpush.xpose.msra.mxu0 %v1703
      %1724 = vmatmul.f32.gmra.mxu0 %v1700
      %v1725 = vpop.f32.mrf.mxu0
      %v1726 = vadd.f32 0.0, %v1725
      %1727 = vdwg.mxu0
      %v1728 = vmul.f32 %v1726, 0.17677669
      %v1729 = vsel %vm910, %v1728, -inf
      %1730 = vmax.xlane.f32.xlu0 %v1729
      %v1731 = vpop.xlane.xlu0 %1730
      %v1732 = vsub.f32 %v1728, %v1731
      %v1733 = vmul.f32 %v1732, 1.442695
      %v1734 = vpow.pop %v1733
      %v1735 = vsel %vm910, %v1734, 0.0
      %1736 = vadd.xlane.f32.xlu0 %v1735
      %v1737 = vpop.xlane.xlu0 %1736
      %v1738 = vrcp.pop %v1737
      %v1739 = vmul.f32 %v1734, %v1738
      %v1741 = vsel %vm922, %v1739, 0
      %1743 = vmatpush.msra.mxu0 0.0
      %1744 = vmatpush.msra.mxu0 0.0
      %1745 = vmatpush.msra.mxu0 0.0
      %1746 = vmatpush.msra.mxu0 0.0
      %1747 = vmatpush.msra.mxu0 0.0
      %1748 = vmatpush.msra.mxu0 0.0
      %1749 = vmatpush.msra.mxu0 0.0
      %1750 = vmatpush.msra.mxu0 0.0
      %1751 = vmatpush.msra.mxu0 0.0
      %1752 = vmatpush.msra.mxu0 0.0
      %1753 = vmatpush.msra.mxu0 0.0
      %1754 = vmatpush.msra.mxu0 0.0
      %1755 = vmatpush.msra.mxu0 0.0
      %1756 = vmatpush.msra.mxu0 0.0
      %1757 = vmatpush.msra.mxu0 %v1696
      %1758 = vmatpush.msra.mxu0 %v1695
      %1759 = vmatmul.f32.gmra.mxu0 %v1741
      %v1760 = vpop.f32.mrf.mxu0
      %v1761 = vadd.f32 0.0, %v1760
      %1762 = vdwg.mxu0
      %1763 = vst.msk [vmem:[#allocation4 + $0x5] sm:$0x1] %vm946, %v1761
      %v1765 = vrot.slane %v1761, 1
      %v1766 = vsel %vm776, %v1765, 0
      %v1769 = vsel %vm776, %v1695, 0
      %v1772 = vsel %vm776, %v1696, 0
      %1774 = vmatpush.xpose.msra.mxu0 0.0
      %1775 = vmatpush.xpose.msra.mxu0 0.0
      %1776 = vmatpush.xpose.msra.mxu0 0.0
      %1777 = vmatpush.xpose.msra.mxu0 0.0
      %1778 = vmatpush.xpose.msra.mxu0 0.0
      %1779 = vmatpush.xpose.msra.mxu0 0.0
      %1780 = vmatpush.xpose.msra.mxu0 0.0
      %1781 = vmatpush.xpose.msra.mxu0 0.0
      %1782 = vmatpush.xpose.msra.mxu0 0.0
      %1783 = vmatpush.xpose.msra.mxu0 0.0
      %1784 = vmatpush.xpose.msra.mxu0 0.0
      %1785 = vmatpush.xpose.msra.mxu0 0.0
      %1786 = vmatpush.xpose.msra.mxu0 0.0
      %1787 = vmatpush.xpose.msra.mxu0 0.0
      %1788 = vmatpush.xpose.msra.mxu0 %v1772
      %1789 = vmatpush.xpose.msra.mxu0 %v1769
      %1790 = vmatmul.f32.gmra.mxu0 %v1766
      %v1791 = vpop.f32.mrf.mxu0
      %v1792 = vadd.f32 0.0, %v1791
      %1793 = vdwg.mxu0
      %1794 = vst.msk [vmem:[#allocation3 + $0x5] sm:$0x1] %vm978, %v1792
      %s1795 = scalar_lea.vmem %s345, 24
      %v1796 = vld [vmem:[%s1795] sm:$0xf]
      %v1798 = vsel %vm776, %v1796, 0
      %1800 = vmatpush.xpose.msra.mxu0 0.0
      %1801 = vmatpush.xpose.msra.mxu0 0.0
      %1802 = vmatpush.xpose.msra.mxu0 0.0
      %1803 = vmatpush.xpose.msra.mxu0 0.0
      %1804 = vmatpush.xpose.msra.mxu0 0.0
      %1805 = vmatpush.xpose.msra.mxu0 0.0
      %1806 = vmatpush.xpose.msra.mxu0 0.0
      %1807 = vmatpush.xpose.msra.mxu0 0.0
      %1808 = vmatpush.xpose.msra.mxu0 0.0
      %1809 = vmatpush.xpose.msra.mxu0 0.0
      %1810 = vmatpush.xpose.msra.mxu0 0.0
      %1811 = vmatpush.xpose.msra.mxu0 0.0
      %1812 = vmatpush.xpose.msra.mxu0 0.0
      %1813 = vmatpush.xpose.msra.mxu0 0.0
      %1814 = vmatpush.xpose.msra.mxu0 0.0
      %1815 = vmatpush.xpose.msra.mxu0 %v1798
      %1816 = vmatmul.f32.gmra.mxu0 %v1798
      %v1817 = vpop.f32.mrf.mxu0
      %v1818 = vadd.f32 0.0, %v1817
      %1819 = vdwg.mxu0
      %v1820 = vmul.f32 %v1818, 0.17677669
      %v1821 = vsel %vm836, %v1820, -inf
      %1822 = vmax.xlane.f32.xlu0 %v1821
      %v1823 = vpop.xlane.xlu0 %1822
      %v1824 = vsub.f32 %v1820, %v1823
      %v1825 = vmul.f32 %v1824, 1.442695
      %v1826 = vpow.pop %v1825
      %v1827 = vsel %vm836, %v1826, 0.0
      %1828 = vadd.xlane.f32.xlu0 %v1827
      %v1829 = vpop.xlane.xlu0 %1828
      %v1830 = vrcp.pop %v1829
      %v1831 = vmul.f32 %v1826, %v1830
      %v1833 = vsel %vm848, %v1831, 0
      %v1835 = vsel %vm852, %v1796, 0
      %1837 = vmatpush.msra.mxu0 0.0
      %1838 = vmatpush.msra.mxu0 0.0
      %1839 = vmatpush.msra.mxu0 0.0
      %1840 = vmatpush.msra.mxu0 0.0
      %1841 = vmatpush.msra.mxu0 0.0
      %1842 = vmatpush.msra.mxu0 0.0
      %1843 = vmatpush.msra.mxu0 0.0
      %1844 = vmatpush.msra.mxu0 0.0
      %1845 = vmatpush.msra.mxu0 0.0
      %1846 = vmatpush.msra.mxu0 0.0
      %1847 = vmatpush.msra.mxu0 0.0
      %1848 = vmatpush.msra.mxu0 0.0
      %1849 = vmatpush.msra.mxu0 0.0
      %1850 = vmatpush.msra.mxu0 0.0
      %1851 = vmatpush.msra.mxu0 0.0
      %1852 = vmatpush.msra.mxu0 %v1835
      %1853 = vmatmul.f32.gmra.mxu0 %v1833
      %v1854 = vpop.f32.mrf.mxu0
      %v1855 = vadd.f32 0.0, %v1854
      %1856 = vdwg.mxu0
      %v1857 = vadd.f32 %v1796, %v1855
      %v1858 = vld [vmem:[#allocation2 + $0x60] sm:$0xff]
      %v1859 = vld [vmem:[#allocation2 + $0x68] sm:$0xff]
      %v1860 = vadd.f32 %v1858, %v809
      %v1861 = vadd.f32 %v1859, %v810
      %v1863 = vsel %vm776, %v1857, 0
      %v1866 = vsel %vm776, %v1860, 0
      %v1869 = vsel %vm776, %v1861, 0
      %1871 = vmatpush.xpose.msra.mxu0 0.0
      %1872 = vmatpush.xpose.msra.mxu0 0.0
      %1873 = vmatpush.xpose.msra.mxu0 0.0
      %1874 = vmatpush.xpose.msra.mxu0 0.0
      %1875 = vmatpush.xpose.msra.mxu0 0.0
      %1876 = vmatpush.xpose.msra.mxu0 0.0
      %1877 = vmatpush.xpose.msra.mxu0 0.0
      %1878 = vmatpush.xpose.msra.mxu0 0.0
      %1879 = vmatpush.xpose.msra.mxu0 0.0
      %1880 = vmatpush.xpose.msra.mxu0 0.0
      %1881 = vmatpush.xpose.msra.mxu0 0.0
      %1882 = vmatpush.xpose.msra.mxu0 0.0
      %1883 = vmatpush.xpose.msra.mxu0 0.0
      %1884 = vmatpush.xpose.msra.mxu0 0.0
      %1885 = vmatpush.xpose.msra.mxu0 %v1869
      %1886 = vmatpush.xpose.msra.mxu0 %v1866
      %1887 = vmatmul.f32.gmra.mxu0 %v1863
      %v1888 = vpop.f32.mrf.mxu0
      %v1889 = vadd.f32 0.0, %v1888
      %1890 = vdwg.mxu0
      %v1891 = vmul.f32 %v1889, 0.17677669
      %v1892 = vsel %vm910, %v1891, -inf
      %1893 = vmax.xlane.f32.xlu0 %v1892
      %v1894 = vpop.xlane.xlu0 %1893
      %v1895 = vsub.f32 %v1891, %v1894
      %v1896 = vmul.f32 %v1895, 1.442695
      %v1897 = vpow.pop %v1896
      %v1898 = vsel %vm910, %v1897, 0.0
      %1899 = vadd.xlane.f32.xlu0 %v1898
      %v1900 = vpop.xlane.xlu0 %1899
      %v1901 = vrcp.pop %v1900
      %v1902 = vmul.f32 %v1897, %v1901
      %v1904 = vsel %vm922, %v1902, 0
      %1906 = vmatpush.msra.mxu0 0.0
      %1907 = vmatpush.msra.mxu0 0.0
      %1908 = vmatpush.msra.mxu0 0.0
      %1909 = vmatpush.msra.mxu0 0.0
      %1910 = vmatpush.msra.mxu0 0.0
      %1911 = vmatpush.msra.mxu0 0.0
      %1912 = vmatpush.msra.mxu0 0.0
      %1913 = vmatpush.msra.mxu0 0.0
      %1914 = vmatpush.msra.mxu0 0.0
      %1915 = vmatpush.msra.mxu0 0.0
      %1916 = vmatpush.msra.mxu0 0.0
      %1917 = vmatpush.msra.mxu0 0.0
      %1918 = vmatpush.msra.mxu0 0.0
      %1919 = vmatpush.msra.mxu0 0.0
      %1920 = vmatpush.msra.mxu0 %v1859
      %1921 = vmatpush.msra.mxu0 %v1858
      %1922 = vmatmul.f32.gmra.mxu0 %v1904
      %v1923 = vpop.f32.mrf.mxu0
      %v1924 = vadd.f32 0.0, %v1923
      %1925 = vdwg.mxu0
      %1926 = vst.msk [vmem:[#allocation4 + $0x6] sm:$0x1] %vm946, %v1924
      %v1928 = vrot.slane %v1924, 1
      %v1929 = vsel %vm776, %v1928, 0
      %v1932 = vsel %vm776, %v1858, 0
      %v1935 = vsel %vm776, %v1859, 0
      %1937 = vmatpush.xpose.msra.mxu0 0.0
      %1938 = vmatpush.xpose.msra.mxu0 0.0
      %1939 = vmatpush.xpose.msra.mxu0 0.0
      %1940 = vmatpush.xpose.msra.mxu0 0.0
      %1941 = vmatpush.xpose.msra.mxu0 0.0
      %1942 = vmatpush.xpose.msra.mxu0 0.0
      %1943 = vmatpush.xpose.msra.mxu0 0.0
      %1944 = vmatpush.xpose.msra.mxu0 0.0
      %1945 = vmatpush.xpose.msra.mxu0 0.0
      %1946 = vmatpush.xpose.msra.mxu0 0.0
      %1947 = vmatpush.xpose.msra.mxu0 0.0
      %1948 = vmatpush.xpose.msra.mxu0 0.0
      %1949 = vmatpush.xpose.msra.mxu0 0.0
      %1950 = vmatpush.xpose.msra.mxu0 0.0
      %1951 = vmatpush.xpose.msra.mxu0 %v1935
      %1952 = vmatpush.xpose.msra.mxu0 %v1932
      %1953 = vmatmul.f32.gmra.mxu0 %v1929
      %v1954 = vpop.f32.mrf.mxu0
      %v1955 = vadd.f32 0.0, %v1954
      %1956 = vdwg.mxu0
      %1957 = vst.msk [vmem:[#allocation3 + $0x6] sm:$0x1] %vm978, %v1955
      %s1958 = scalar_lea.vmem %s345, 28
      %v1959 = vld [vmem:[%s1958] sm:$0xf]
      %v1961 = vsel %vm776, %v1959, 0
      %1963 = vmatpush.xpose.msra.mxu0 0.0
      %1964 = vmatpush.xpose.msra.mxu0 0.0
      %1965 = vmatpush.xpose.msra.mxu0 0.0
      %1966 = vmatpush.xpose.msra.mxu0 0.0
      %1967 = vmatpush.xpose.msra.mxu0 0.0
      %1968 = vmatpush.xpose.msra.mxu0 0.0
      %1969 = vmatpush.xpose.msra.mxu0 0.0
      %1970 = vmatpush.xpose.msra.mxu0 0.0
      %1971 = vmatpush.xpose.msra.mxu0 0.0
      %1972 = vmatpush.xpose.msra.mxu0 0.0
      %1973 = vmatpush.xpose.msra.mxu0 0.0
      %1974 = vmatpush.xpose.msra.mxu0 0.0
      %1975 = vmatpush.xpose.msra.mxu0 0.0
      %1976 = vmatpush.xpose.msra.mxu0 0.0
      %1977 = vmatpush.xpose.msra.mxu0 0.0
      %1978 = vmatpush.xpose.msra.mxu0 %v1961
      %1979 = vmatmul.f32.gmra.mxu0 %v1961
      %v1980 = vpop.f32.mrf.mxu0
      %v1981 = vadd.f32 0.0, %v1980
      %1982 = vdwg.mxu0
      %v1983 = vmul.f32 %v1981, 0.17677669
      %v1984 = vsel %vm836, %v1983, -inf
      %1985 = vmax.xlane.f32.xlu0 %v1984
      %v1986 = vpop.xlane.xlu0 %1985
      %v1987 = vsub.f32 %v1983, %v1986
      %v1988 = vmul.f32 %v1987, 1.442695
      %v1989 = vpow.pop %v1988
      %v1990 = vsel %vm836, %v1989, 0.0
      %1991 = vadd.xlane.f32.xlu0 %v1990
      %v1992 = vpop.xlane.xlu0 %1991
      %v1993 = vrcp.pop %v1992
      %v1994 = vmul.f32 %v1989, %v1993
      %v1996 = vsel %vm848, %v1994, 0
      %v1998 = vsel %vm852, %v1959, 0
      %2000 = vmatpush.msra.mxu0 0.0
      %2001 = vmatpush.msra.mxu0 0.0
      %2002 = vmatpush.msra.mxu0 0.0
      %2003 = vmatpush.msra.mxu0 0.0
      %2004 = vmatpush.msra.mxu0 0.0
      %2005 = vmatpush.msra.mxu0 0.0
      %2006 = vmatpush.msra.mxu0 0.0
      %2007 = vmatpush.msra.mxu0 0.0
      %2008 = vmatpush.msra.mxu0 0.0
      %2009 = vmatpush.msra.mxu0 0.0
      %2010 = vmatpush.msra.mxu0 0.0
      %2011 = vmatpush.msra.mxu0 0.0
      %2012 = vmatpush.msra.mxu0 0.0
      %2013 = vmatpush.msra.mxu0 0.0
      %2014 = vmatpush.msra.mxu0 0.0
      %2015 = vmatpush.msra.mxu0 %v1998
      %2016 = vmatmul.f32.gmra.mxu0 %v1996
      %v2017 = vpop.f32.mrf.mxu0
      %v2018 = vadd.f32 0.0, %v2017
      %2019 = vdwg.mxu0
      %v2020 = vadd.f32 %v1959, %v2018
      %v2021 = vld [vmem:[#allocation2 + $0x70] sm:$0xff]
      %v2022 = vld [vmem:[#allocation2 + $0x78] sm:$0xff]
      %v2023 = vadd.f32 %v2021, %v809
      %v2024 = vadd.f32 %v2022, %v810
      %v2026 = vsel %vm776, %v2020, 0
      %v2029 = vsel %vm776, %v2023, 0
      %v2032 = vsel %vm776, %v2024, 0
      %2034 = vmatpush.xpose.msra.mxu0 0.0
      %2035 = vmatpush.xpose.msra.mxu0 0.0
      %2036 = vmatpush.xpose.msra.mxu0 0.0
      %2037 = vmatpush.xpose.msra.mxu0 0.0
      %2038 = vmatpush.xpose.msra.mxu0 0.0
      %2039 = vmatpush.xpose.msra.mxu0 0.0
      %2040 = vmatpush.xpose.msra.mxu0 0.0
      %2041 = vmatpush.xpose.msra.mxu0 0.0
      %2042 = vmatpush.xpose.msra.mxu0 0.0
      %2043 = vmatpush.xpose.msra.mxu0 0.0
      %2044 = vmatpush.xpose.msra.mxu0 0.0
      %2045 = vmatpush.xpose.msra.mxu0 0.0
      %2046 = vmatpush.xpose.msra.mxu0 0.0
      %2047 = vmatpush.xpose.msra.mxu0 0.0
      %2048 = vmatpush.xpose.msra.mxu0 %v2032
      %2049 = vmatpush.xpose.msra.mxu0 %v2029
      %2050 = vmatmul.f32.gmra.mxu0 %v2026
      %v2051 = vpop.f32.mrf.mxu0
      %v2052 = vadd.f32 0.0, %v2051
      %2053 = vdwg.mxu0
      %v2054 = vmul.f32 %v2052, 0.17677669
      %v2055 = vsel %vm910, %v2054, -inf
      %2056 = vmax.xlane.f32.xlu0 %v2055
      %v2057 = vpop.xlane.xlu0 %2056
      %v2058 = vsub.f32 %v2054, %v2057
      %v2059 = vmul.f32 %v2058, 1.442695
      %v2060 = vpow.pop %v2059
      %v2061 = vsel %vm910, %v2060, 0.0
      %2062 = vadd.xlane.f32.xlu0 %v2061
      %v2063 = vpop.xlane.xlu0 %2062
      %v2064 = vrcp.pop %v2063
      %v2065 = vmul.f32 %v2060, %v2064
      %v2067 = vsel %vm922, %v2065, 0
      %2069 = vmatpush.msra.mxu0 0.0
      %2070 = vmatpush.msra.mxu0 0.0
      %2071 = vmatpush.msra.mxu0 0.0
      %2072 = vmatpush.msra.mxu0 0.0
      %2073 = vmatpush.msra.mxu0 0.0
      %2074 = vmatpush.msra.mxu0 0.0
      %2075 = vmatpush.msra.mxu0 0.0
      %2076 = vmatpush.msra.mxu0 0.0
      %2077 = vmatpush.msra.mxu0 0.0
      %2078 = vmatpush.msra.mxu0 0.0
      %2079 = vmatpush.msra.mxu0 0.0
      %2080 = vmatpush.msra.mxu0 0.0
      %2081 = vmatpush.msra.mxu0 0.0
      %2082 = vmatpush.msra.mxu0 0.0
      %2083 = vmatpush.msra.mxu0 %v2022
      %2084 = vmatpush.msra.mxu0 %v2021
      %2085 = vmatmul.f32.gmra.mxu0 %v2067
      %v2086 = vpop.f32.mrf.mxu0
      %v2087 = vadd.f32 0.0, %v2086
      %2088 = vdwg.mxu0
      %2089 = vst.msk [vmem:[#allocation4 + $0x7] sm:$0x1] %vm946, %v2087
      %v2091 = vrot.slane %v2087, 1
      %v2092 = vsel %vm776, %v2091, 0
      %v2095 = vsel %vm776, %v2021, 0
      %v2098 = vsel %vm776, %v2022, 0
      %2100 = vmatpush.xpose.msra.mxu0 0.0
      %2101 = vmatpush.xpose.msra.mxu0 0.0
      %2102 = vmatpush.xpose.msra.mxu0 0.0
      %2103 = vmatpush.xpose.msra.mxu0 0.0
      %2104 = vmatpush.xpose.msra.mxu0 0.0
      %2105 = vmatpush.xpose.msra.mxu0 0.0
      %2106 = vmatpush.xpose.msra.mxu0 0.0
      %2107 = vmatpush.xpose.msra.mxu0 0.0
      %2108 = vmatpush.xpose.msra.mxu0 0.0
      %2109 = vmatpush.xpose.msra.mxu0 0.0
      %2110 = vmatpush.xpose.msra.mxu0 0.0
      %2111 = vmatpush.xpose.msra.mxu0 0.0
      %2112 = vmatpush.xpose.msra.mxu0 0.0
      %2113 = vmatpush.xpose.msra.mxu0 0.0
      %2114 = vmatpush.xpose.msra.mxu0 %v2098
      %2115 = vmatpush.xpose.msra.mxu0 %v2095
      %2116 = vmatmul.f32.gmra.mxu0 %v2092
      %v2117 = vpop.f32.mrf.mxu0
      %v2118 = vadd.f32 0.0, %v2117
      %2119 = vdwg.mxu0
      %2120 = vst.msk [vmem:[#allocation3 + $0x7] sm:$0x1] %vm978, %v2118
      %s2121 = scalar_lea.vmem %s345, 32
      %v2122 = vld [vmem:[%s2121] sm:$0xf]
      %v2124 = vsel %vm776, %v2122, 0
      %2126 = vmatpush.xpose.msra.mxu0 0.0
      %2127 = vmatpush.xpose.msra.mxu0 0.0
      %2128 = vmatpush.xpose.msra.mxu0 0.0
      %2129 = vmatpush.xpose.msra.mxu0 0.0
      %2130 = vmatpush.xpose.msra.mxu0 0.0
      %2131 = vmatpush.xpose.msra.mxu0 0.0
      %2132 = vmatpush.xpose.msra.mxu0 0.0
      %2133 = vmatpush.xpose.msra.mxu0 0.0
      %2134 = vmatpush.xpose.msra.mxu0 0.0
      %2135 = vmatpush.xpose.msra.mxu0 0.0
      %2136 = vmatpush.xpose.msra.mxu0 0.0
      %2137 = vmatpush.xpose.msra.mxu0 0.0
      %2138 = vmatpush.xpose.msra.mxu0 0.0
      %2139 = vmatpush.xpose.msra.mxu0 0.0
      %2140 = vmatpush.xpose.msra.mxu0 0.0
      %2141 = vmatpush.xpose.msra.mxu0 %v2124
      %2142 = vmatmul.f32.gmra.mxu0 %v2124
      %v2143 = vpop.f32.mrf.mxu0
      %v2144 = vadd.f32 0.0, %v2143
      %2145 = vdwg.mxu0
      %v2146 = vmul.f32 %v2144, 0.17677669
      %v2147 = vsel %vm836, %v2146, -inf
      %2148 = vmax.xlane.f32.xlu0 %v2147
      %v2149 = vpop.xlane.xlu0 %2148
      %v2150 = vsub.f32 %v2146, %v2149
      %v2151 = vmul.f32 %v2150, 1.442695
      %v2152 = vpow.pop %v2151
      %v2153 = vsel %vm836, %v2152, 0.0
      %2154 = vadd.xlane.f32.xlu0 %v2153
      %v2155 = vpop.xlane.xlu0 %2154
      %v2156 = vrcp.pop %v2155
      %v2157 = vmul.f32 %v2152, %v2156
      %v2159 = vsel %vm848, %v2157, 0
      %v2161 = vsel %vm852, %v2122, 0
      %2163 = vmatpush.msra.mxu0 0.0
      %2164 = vmatpush.msra.mxu0 0.0
      %2165 = vmatpush.msra.mxu0 0.0
      %2166 = vmatpush.msra.mxu0 0.0
      %2167 = vmatpush.msra.mxu0 0.0
      %2168 = vmatpush.msra.mxu0 0.0
      %2169 = vmatpush.msra.mxu0 0.0
      %2170 = vmatpush.msra.mxu0 0.0
      %2171 = vmatpush.msra.mxu0 0.0
      %2172 = vmatpush.msra.mxu0 0.0
      %2173 = vmatpush.msra.mxu0 0.0
      %2174 = vmatpush.msra.mxu0 0.0
      %2175 = vmatpush.msra.mxu0 0.0
      %2176 = vmatpush.msra.mxu0 0.0
      %2177 = vmatpush.msra.mxu0 0.0
      %2178 = vmatpush.msra.mxu0 %v2161
      %2179 = vmatmul.f32.gmra.mxu0 %v2159
      %v2180 = vpop.f32.mrf.mxu0
      %v2181 = vadd.f32 0.0, %v2180
      %2182 = vdwg.mxu0
      %v2183 = vadd.f32 %v2122, %v2181
      %v2184 = vld [vmem:[#allocation2 + $0x80] sm:$0xff]
      %v2185 = vld [vmem:[#allocation2 + $0x88] sm:$0xff]
      %v2186 = vadd.f32 %v2184, %v809
      %v2187 = vadd.f32 %v2185, %v810
      %v2189 = vsel %vm776, %v2183, 0
      %v2192 = vsel %vm776, %v2186, 0
      %v2195 = vsel %vm776, %v2187, 0
      %2197 = vmatpush.xpose.msra.mxu0 0.0
      %2198 = vmatpush.xpose.msra.mxu0 0.0
      %2199 = vmatpush.xpose.msra.mxu0 0.0
      %2200 = vmatpush.xpose.msra.mxu0 0.0
      %2201 = vmatpush.xpose.msra.mxu0 0.0
      %2202 = vmatpush.xpose.msra.mxu0 0.0
      %2203 = vmatpush.xpose.msra.mxu0 0.0
      %2204 = vmatpush.xpose.msra.mxu0 0.0
      %2205 = vmatpush.xpose.msra.mxu0 0.0
      %2206 = vmatpush.xpose.msra.mxu0 0.0
      %2207 = vmatpush.xpose.msra.mxu0 0.0
      %2208 = vmatpush.xpose.msra.mxu0 0.0
      %2209 = vmatpush.xpose.msra.mxu0 0.0
      %2210 = vmatpush.xpose.msra.mxu0 0.0
      %2211 = vmatpush.xpose.msra.mxu0 %v2195
      %2212 = vmatpush.xpose.msra.mxu0 %v2192
      %2213 = vmatmul.f32.gmra.mxu0 %v2189
      %v2214 = vpop.f32.mrf.mxu0
      %v2215 = vadd.f32 0.0, %v2214
      %2216 = vdwg.mxu0
      %v2217 = vmul.f32 %v2215, 0.17677669
      %v2218 = vsel %vm910, %v2217, -inf
      %2219 = vmax.xlane.f32.xlu0 %v2218
      %v2220 = vpop.xlane.xlu0 %2219
      %v2221 = vsub.f32 %v2217, %v2220
      %v2222 = vmul.f32 %v2221, 1.442695
      %v2223 = vpow.pop %v2222
      %v2224 = vsel %vm910, %v2223, 0.0
      %2225 = vadd.xlane.f32.xlu0 %v2224
      %v2226 = vpop.xlane.xlu0 %2225
      %v2227 = vrcp.pop %v2226
      %v2228 = vmul.f32 %v2223, %v2227
      %v2230 = vsel %vm922, %v2228, 0
      %2232 = vmatpush.msra.mxu0 0.0
      %2233 = vmatpush.msra.mxu0 0.0
      %2234 = vmatpush.msra.mxu0 0.0
      %2235 = vmatpush.msra.mxu0 0.0
      %2236 = vmatpush.msra.mxu0 0.0
      %2237 = vmatpush.msra.mxu0 0.0
      %2238 = vmatpush.msra.mxu0 0.0
      %2239 = vmatpush.msra.mxu0 0.0
      %2240 = vmatpush.msra.mxu0 0.0
      %2241 = vmatpush.msra.mxu0 0.0
      %2242 = vmatpush.msra.mxu0 0.0
      %2243 = vmatpush.msra.mxu0 0.0
      %2244 = vmatpush.msra.mxu0 0.0
      %2245 = vmatpush.msra.mxu0 0.0
      %2246 = vmatpush.msra.mxu0 %v2185
      %2247 = vmatpush.msra.mxu0 %v2184
      %2248 = vmatmul.f32.gmra.mxu0 %v2230
      %v2249 = vpop.f32.mrf.mxu0
      %v2250 = vadd.f32 0.0, %v2249
      %2251 = vdwg.mxu0
      %2252 = vst.msk [vmem:[#allocation4 + $0x8] sm:$0x1] %vm946, %v2250
      %v2254 = vrot.slane %v2250, 1
      %v2255 = vsel %vm776, %v2254, 0
      %v2258 = vsel %vm776, %v2184, 0
      %v2261 = vsel %vm776, %v2185, 0
      %2263 = vmatpush.xpose.msra.mxu0 0.0
      %2264 = vmatpush.xpose.msra.mxu0 0.0
      %2265 = vmatpush.xpose.msra.mxu0 0.0
      %2266 = vmatpush.xpose.msra.mxu0 0.0
      %2267 = vmatpush.xpose.msra.mxu0 0.0
      %2268 = vmatpush.xpose.msra.mxu0 0.0
      %2269 = vmatpush.xpose.msra.mxu0 0.0
      %2270 = vmatpush.xpose.msra.mxu0 0.0
      %2271 = vmatpush.xpose.msra.mxu0 0.0
      %2272 = vmatpush.xpose.msra.mxu0 0.0
      %2273 = vmatpush.xpose.msra.mxu0 0.0
      %2274 = vmatpush.xpose.msra.mxu0 0.0
      %2275 = vmatpush.xpose.msra.mxu0 0.0
      %2276 = vmatpush.xpose.msra.mxu0 0.0
      %2277 = vmatpush.xpose.msra.mxu0 %v2261
      %2278 = vmatpush.xpose.msra.mxu0 %v2258
      %2279 = vmatmul.f32.gmra.mxu0 %v2255
      %v2280 = vpop.f32.mrf.mxu0
      %v2281 = vadd.f32 0.0, %v2280
      %2282 = vdwg.mxu0
      %2283 = vst.msk [vmem:[#allocation3 + $0x8] sm:$0x1] %vm978, %v2281
      %s2284 = scalar_lea.vmem %s345, 36
      %v2285 = vld [vmem:[%s2284] sm:$0xf]
      %v2287 = vsel %vm776, %v2285, 0
      %2289 = vmatpush.xpose.msra.mxu0 0.0
      %2290 = vmatpush.xpose.msra.mxu0 0.0
      %2291 = vmatpush.xpose.msra.mxu0 0.0
      %2292 = vmatpush.xpose.msra.mxu0 0.0
      %2293 = vmatpush.xpose.msra.mxu0 0.0
      %2294 = vmatpush.xpose.msra.mxu0 0.0
      %2295 = vmatpush.xpose.msra.mxu0 0.0
      %2296 = vmatpush.xpose.msra.mxu0 0.0
      %2297 = vmatpush.xpose.msra.mxu0 0.0
      %2298 = vmatpush.xpose.msra.mxu0 0.0
      %2299 = vmatpush.xpose.msra.mxu0 0.0
      %2300 = vmatpush.xpose.msra.mxu0 0.0
      %2301 = vmatpush.xpose.msra.mxu0 0.0
      %2302 = vmatpush.xpose.msra.mxu0 0.0
      %2303 = vmatpush.xpose.msra.mxu0 0.0
      %2304 = vmatpush.xpose.msra.mxu0 %v2287
      %2305 = vmatmul.f32.gmra.mxu0 %v2287
      %v2306 = vpop.f32.mrf.mxu0
      %v2307 = vadd.f32 0.0, %v2306
      %2308 = vdwg.mxu0
      %v2309 = vmul.f32 %v2307, 0.17677669
      %v2310 = vsel %vm836, %v2309, -inf
      %2311 = vmax.xlane.f32.xlu0 %v2310
      %v2312 = vpop.xlane.xlu0 %2311
      %v2313 = vsub.f32 %v2309, %v2312
      %v2314 = vmul.f32 %v2313, 1.442695
      %v2315 = vpow.pop %v2314
      %v2316 = vsel %vm836, %v2315, 0.0
      %2317 = vadd.xlane.f32.xlu0 %v2316
      %v2318 = vpop.xlane.xlu0 %2317
      %v2319 = vrcp.pop %v2318
      %v2320 = vmul.f32 %v2315, %v2319
      %v2322 = vsel %vm848, %v2320, 0
      %v2324 = vsel %vm852, %v2285, 0
      %2326 = vmatpush.msra.mxu0 0.0
      %2327 = vmatpush.msra.mxu0 0.0
      %2328 = vmatpush.msra.mxu0 0.0
      %2329 = vmatpush.msra.mxu0 0.0
      %2330 = vmatpush.msra.mxu0 0.0
      %2331 = vmatpush.msra.mxu0 0.0
      %2332 = vmatpush.msra.mxu0 0.0
      %2333 = vmatpush.msra.mxu0 0.0
      %2334 = vmatpush.msra.mxu0 0.0
      %2335 = vmatpush.msra.mxu0 0.0
      %2336 = vmatpush.msra.mxu0 0.0
      %2337 = vmatpush.msra.mxu0 0.0
      %2338 = vmatpush.msra.mxu0 0.0
      %2339 = vmatpush.msra.mxu0 0.0
      %2340 = vmatpush.msra.mxu0 0.0
      %2341 = vmatpush.msra.mxu0 %v2324
      %2342 = vmatmul.f32.gmra.mxu0 %v2322
      %v2343 = vpop.f32.mrf.mxu0
      %v2344 = vadd.f32 0.0, %v2343
      %2345 = vdwg.mxu0
      %v2346 = vadd.f32 %v2285, %v2344
      %v2347 = vld [vmem:[#allocation2 + $0x90] sm:$0xff]
      %v2348 = vld [vmem:[#allocation2 + $0x98] sm:$0xff]
      %v2349 = vadd.f32 %v2347, %v809
      %v2350 = vadd.f32 %v2348, %v810
      %v2352 = vsel %vm776, %v2346, 0
      %v2355 = vsel %vm776, %v2349, 0
      %v2358 = vsel %vm776, %v2350, 0
      %2360 = vmatpush.xpose.msra.mxu0 0.0
      %2361 = vmatpush.xpose.msra.mxu0 0.0
      %2362 = vmatpush.xpose.msra.mxu0 0.0
      %2363 = vmatpush.xpose.msra.mxu0 0.0
      %2364 = vmatpush.xpose.msra.mxu0 0.0
      %2365 = vmatpush.xpose.msra.mxu0 0.0
      %2366 = vmatpush.xpose.msra.mxu0 0.0
      %2367 = vmatpush.xpose.msra.mxu0 0.0
      %2368 = vmatpush.xpose.msra.mxu0 0.0
      %2369 = vmatpush.xpose.msra.mxu0 0.0
      %2370 = vmatpush.xpose.msra.mxu0 0.0
      %2371 = vmatpush.xpose.msra.mxu0 0.0
      %2372 = vmatpush.xpose.msra.mxu0 0.0
      %2373 = vmatpush.xpose.msra.mxu0 0.0
      %2374 = vmatpush.xpose.msra.mxu0 %v2358
      %2375 = vmatpush.xpose.msra.mxu0 %v2355
      %2376 = vmatmul.f32.gmra.mxu0 %v2352
      %v2377 = vpop.f32.mrf.mxu0
      %v2378 = vadd.f32 0.0, %v2377
      %2379 = vdwg.mxu0
      %v2380 = vmul.f32 %v2378, 0.17677669
      %v2381 = vsel %vm910, %v2380, -inf
      %2382 = vmax.xlane.f32.xlu0 %v2381
      %v2383 = vpop.xlane.xlu0 %2382
      %v2384 = vsub.f32 %v2380, %v2383
      %v2385 = vmul.f32 %v2384, 1.442695
      %v2386 = vpow.pop %v2385
      %v2387 = vsel %vm910, %v2386, 0.0
      %2388 = vadd.xlane.f32.xlu0 %v2387
      %v2389 = vpop.xlane.xlu0 %2388
      %v2390 = vrcp.pop %v2389
      %v2391 = vmul.f32 %v2386, %v2390
      %v2393 = vsel %vm922, %v2391, 0
      %2395 = vmatpush.msra.mxu0 0.0
      %2396 = vmatpush.msra.mxu0 0.0
      %2397 = vmatpush.msra.mxu0 0.0
      %2398 = vmatpush.msra.mxu0 0.0
      %2399 = vmatpush.msra.mxu0 0.0
      %2400 = vmatpush.msra.mxu0 0.0
      %2401 = vmatpush.msra.mxu0 0.0
      %2402 = vmatpush.msra.mxu0 0.0
      %2403 = vmatpush.msra.mxu0 0.0
      %2404 = vmatpush.msra.mxu0 0.0
      %2405 = vmatpush.msra.mxu0 0.0
      %2406 = vmatpush.msra.mxu0 0.0
      %2407 = vmatpush.msra.mxu0 0.0
      %2408 = vmatpush.msra.mxu0 0.0
      %2409 = vmatpush.msra.mxu0 %v2348
      %2410 = vmatpush.msra.mxu0 %v2347
      %2411 = vmatmul.f32.gmra.mxu0 %v2393
      %v2412 = vpop.f32.mrf.mxu0
      %v2413 = vadd.f32 0.0, %v2412
      %2414 = vdwg.mxu0
      %2415 = vst.msk [vmem:[#allocation4 + $0x9] sm:$0x1] %vm946, %v2413
      %v2417 = vrot.slane %v2413, 1
      %v2418 = vsel %vm776, %v2417, 0
      %v2421 = vsel %vm776, %v2347, 0
      %v2424 = vsel %vm776, %v2348, 0
      %2426 = vmatpush.xpose.msra.mxu0 0.0
      %2427 = vmatpush.xpose.msra.mxu0 0.0
      %2428 = vmatpush.xpose.msra.mxu0 0.0
      %2429 = vmatpush.xpose.msra.mxu0 0.0
      %2430 = vmatpush.xpose.msra.mxu0 0.0
      %2431 = vmatpush.xpose.msra.mxu0 0.0
      %2432 = vmatpush.xpose.msra.mxu0 0.0
      %2433 = vmatpush.xpose.msra.mxu0 0.0
      %2434 = vmatpush.xpose.msra.mxu0 0.0
      %2435 = vmatpush.xpose.msra.mxu0 0.0
      %2436 = vmatpush.xpose.msra.mxu0 0.0
      %2437 = vmatpush.xpose.msra.mxu0 0.0
      %2438 = vmatpush.xpose.msra.mxu0 0.0
      %2439 = vmatpush.xpose.msra.mxu0 0.0
      %2440 = vmatpush.xpose.msra.mxu0 %v2424
      %2441 = vmatpush.xpose.msra.mxu0 %v2421
      %2442 = vmatmul.f32.gmra.mxu0 %v2418
      %v2443 = vpop.f32.mrf.mxu0
      %v2444 = vadd.f32 0.0, %v2443
      %2445 = vdwg.mxu0
      %2446 = vst.msk [vmem:[#allocation3 + $0x9] sm:$0x1] %vm978, %v2444
      %s2447 = scalar_lea.vmem %s345, 40
      %v2448 = vld [vmem:[%s2447] sm:$0xf]
      %v2450 = vsel %vm776, %v2448, 0
      %2452 = vmatpush.xpose.msra.mxu0 0.0
      %2453 = vmatpush.xpose.msra.mxu0 0.0
      %2454 = vmatpush.xpose.msra.mxu0 0.0
      %2455 = vmatpush.xpose.msra.mxu0 0.0
      %2456 = vmatpush.xpose.msra.mxu0 0.0
      %2457 = vmatpush.xpose.msra.mxu0 0.0
      %2458 = vmatpush.xpose.msra.mxu0 0.0
      %2459 = vmatpush.xpose.msra.mxu0 0.0
      %2460 = vmatpush.xpose.msra.mxu0 0.0
      %2461 = vmatpush.xpose.msra.mxu0 0.0
      %2462 = vmatpush.xpose.msra.mxu0 0.0
      %2463 = vmatpush.xpose.msra.mxu0 0.0
      %2464 = vmatpush.xpose.msra.mxu0 0.0
      %2465 = vmatpush.xpose.msra.mxu0 0.0
      %2466 = vmatpush.xpose.msra.mxu0 0.0
      %2467 = vmatpush.xpose.msra.mxu0 %v2450
      %2468 = vmatmul.f32.gmra.mxu0 %v2450
      %v2469 = vpop.f32.mrf.mxu0
      %v2470 = vadd.f32 0.0, %v2469
      %2471 = vdwg.mxu0
      %v2472 = vmul.f32 %v2470, 0.17677669
      %v2473 = vsel %vm836, %v2472, -inf
      %2474 = vmax.xlane.f32.xlu0 %v2473
      %v2475 = vpop.xlane.xlu0 %2474
      %v2476 = vsub.f32 %v2472, %v2475
      %v2477 = vmul.f32 %v2476, 1.442695
      %v2478 = vpow.pop %v2477
      %v2479 = vsel %vm836, %v2478, 0.0
      %2480 = vadd.xlane.f32.xlu0 %v2479
      %v2481 = vpop.xlane.xlu0 %2480
      %v2482 = vrcp.pop %v2481
      %v2483 = vmul.f32 %v2478, %v2482
      %v2485 = vsel %vm848, %v2483, 0
      %v2487 = vsel %vm852, %v2448, 0
      %2489 = vmatpush.msra.mxu0 0.0
      %2490 = vmatpush.msra.mxu0 0.0
      %2491 = vmatpush.msra.mxu0 0.0
      %2492 = vmatpush.msra.mxu0 0.0
      %2493 = vmatpush.msra.mxu0 0.0
      %2494 = vmatpush.msra.mxu0 0.0
      %2495 = vmatpush.msra.mxu0 0.0
      %2496 = vmatpush.msra.mxu0 0.0
      %2497 = vmatpush.msra.mxu0 0.0
      %2498 = vmatpush.msra.mxu0 0.0
      %2499 = vmatpush.msra.mxu0 0.0
      %2500 = vmatpush.msra.mxu0 0.0
      %2501 = vmatpush.msra.mxu0 0.0
      %2502 = vmatpush.msra.mxu0 0.0
      %2503 = vmatpush.msra.mxu0 0.0
      %2504 = vmatpush.msra.mxu0 %v2487
      %2505 = vmatmul.f32.gmra.mxu0 %v2485
      %v2506 = vpop.f32.mrf.mxu0
      %v2507 = vadd.f32 0.0, %v2506
      %2508 = vdwg.mxu0
      %v2509 = vadd.f32 %v2448, %v2507
      %v2510 = vld [vmem:[#allocation2 + $0xa0] sm:$0xff]
      %v2511 = vld [vmem:[#allocation2 + $0xa8] sm:$0xff]
      %v2512 = vadd.f32 %v2510, %v809
      %v2513 = vadd.f32 %v2511, %v810
      %v2515 = vsel %vm776, %v2509, 0
      %v2518 = vsel %vm776, %v2512, 0
      %v2521 = vsel %vm776, %v2513, 0
      %2523 = vmatpush.xpose.msra.mxu0 0.0
      %2524 = vmatpush.xpose.msra.mxu0 0.0
      %2525 = vmatpush.xpose.msra.mxu0 0.0
      %2526 = vmatpush.xpose.msra.mxu0 0.0
      %2527 = vmatpush.xpose.msra.mxu0 0.0
      %2528 = vmatpush.xpose.msra.mxu0 0.0
      %2529 = vmatpush.xpose.msra.mxu0 0.0
      %2530 = vmatpush.xpose.msra.mxu0 0.0
      %2531 = vmatpush.xpose.msra.mxu0 0.0
      %2532 = vmatpush.xpose.msra.mxu0 0.0
      %2533 = vmatpush.xpose.msra.mxu0 0.0
      %2534 = vmatpush.xpose.msra.mxu0 0.0
      %2535 = vmatpush.xpose.msra.mxu0 0.0
      %2536 = vmatpush.xpose.msra.mxu0 0.0
      %2537 = vmatpush.xpose.msra.mxu0 %v2521
      %2538 = vmatpush.xpose.msra.mxu0 %v2518
      %2539 = vmatmul.f32.gmra.mxu0 %v2515
      %v2540 = vpop.f32.mrf.mxu0
      %v2541 = vadd.f32 0.0, %v2540
      %2542 = vdwg.mxu0
      %v2543 = vmul.f32 %v2541, 0.17677669
      %v2544 = vsel %vm910, %v2543, -inf
      %2545 = vmax.xlane.f32.xlu0 %v2544
      %v2546 = vpop.xlane.xlu0 %2545
      %v2547 = vsub.f32 %v2543, %v2546
      %v2548 = vmul.f32 %v2547, 1.442695
      %v2549 = vpow.pop %v2548
      %v2550 = vsel %vm910, %v2549, 0.0
      %2551 = vadd.xlane.f32.xlu0 %v2550
      %v2552 = vpop.xlane.xlu0 %2551
      %v2553 = vrcp.pop %v2552
      %v2554 = vmul.f32 %v2549, %v2553
      %v2556 = vsel %vm922, %v2554, 0
      %2558 = vmatpush.msra.mxu0 0.0
      %2559 = vmatpush.msra.mxu0 0.0
      %2560 = vmatpush.msra.mxu0 0.0
      %2561 = vmatpush.msra.mxu0 0.0
      %2562 = vmatpush.msra.mxu0 0.0
      %2563 = vmatpush.msra.mxu0 0.0
      %2564 = vmatpush.msra.mxu0 0.0
      %2565 = vmatpush.msra.mxu0 0.0
      %2566 = vmatpush.msra.mxu0 0.0
      %2567 = vmatpush.msra.mxu0 0.0
      %2568 = vmatpush.msra.mxu0 0.0
      %2569 = vmatpush.msra.mxu0 0.0
      %2570 = vmatpush.msra.mxu0 0.0
      %2571 = vmatpush.msra.mxu0 0.0
      %2572 = vmatpush.msra.mxu0 %v2511
      %2573 = vmatpush.msra.mxu0 %v2510
      %2574 = vmatmul.f32.gmra.mxu0 %v2556
      %v2575 = vpop.f32.mrf.mxu0
      %v2576 = vadd.f32 0.0, %v2575
      %2577 = vdwg.mxu0
      %2578 = vst.msk [vmem:[#allocation4 + $0xa] sm:$0x1] %vm946, %v2576
      %v2580 = vrot.slane %v2576, 1
      %v2581 = vsel %vm776, %v2580, 0
      %v2584 = vsel %vm776, %v2510, 0
      %v2587 = vsel %vm776, %v2511, 0
      %2589 = vmatpush.xpose.msra.mxu0 0.0
      %2590 = vmatpush.xpose.msra.mxu0 0.0
      %2591 = vmatpush.xpose.msra.mxu0 0.0
      %2592 = vmatpush.xpose.msra.mxu0 0.0
      %2593 = vmatpush.xpose.msra.mxu0 0.0
      %2594 = vmatpush.xpose.msra.mxu0 0.0
      %2595 = vmatpush.xpose.msra.mxu0 0.0
      %2596 = vmatpush.xpose.msra.mxu0 0.0
      %2597 = vmatpush.xpose.msra.mxu0 0.0
      %2598 = vmatpush.xpose.msra.mxu0 0.0
      %2599 = vmatpush.xpose.msra.mxu0 0.0
      %2600 = vmatpush.xpose.msra.mxu0 0.0
      %2601 = vmatpush.xpose.msra.mxu0 0.0
      %2602 = vmatpush.xpose.msra.mxu0 0.0
      %2603 = vmatpush.xpose.msra.mxu0 %v2587
      %2604 = vmatpush.xpose.msra.mxu0 %v2584
      %2605 = vmatmul.f32.gmra.mxu0 %v2581
      %v2606 = vpop.f32.mrf.mxu0
      %v2607 = vadd.f32 0.0, %v2606
      %2608 = vdwg.mxu0
      %2609 = vst.msk [vmem:[#allocation3 + $0xa] sm:$0x1] %vm978, %v2607
      %s2610 = scalar_lea.vmem %s345, 44
      %v2611 = vld [vmem:[%s2610] sm:$0xf]
      %v2613 = vsel %vm776, %v2611, 0
      %2615 = vmatpush.xpose.msra.mxu0 0.0
      %2616 = vmatpush.xpose.msra.mxu0 0.0
      %2617 = vmatpush.xpose.msra.mxu0 0.0
      %2618 = vmatpush.xpose.msra.mxu0 0.0
      %2619 = vmatpush.xpose.msra.mxu0 0.0
      %2620 = vmatpush.xpose.msra.mxu0 0.0
      %2621 = vmatpush.xpose.msra.mxu0 0.0
      %2622 = vmatpush.xpose.msra.mxu0 0.0
      %2623 = vmatpush.xpose.msra.mxu0 0.0
      %2624 = vmatpush.xpose.msra.mxu0 0.0
      %2625 = vmatpush.xpose.msra.mxu0 0.0
      %2626 = vmatpush.xpose.msra.mxu0 0.0
      %2627 = vmatpush.xpose.msra.mxu0 0.0
      %2628 = vmatpush.xpose.msra.mxu0 0.0
      %2629 = vmatpush.xpose.msra.mxu0 0.0
      %2630 = vmatpush.xpose.msra.mxu0 %v2613
      %2631 = vmatmul.f32.gmra.mxu0 %v2613
      %v2632 = vpop.f32.mrf.mxu0
      %v2633 = vadd.f32 0.0, %v2632
      %2634 = vdwg.mxu0
      %v2635 = vmul.f32 %v2633, 0.17677669
      %v2636 = vsel %vm836, %v2635, -inf
      %2637 = vmax.xlane.f32.xlu0 %v2636
      %v2638 = vpop.xlane.xlu0 %2637
      %v2639 = vsub.f32 %v2635, %v2638
      %v2640 = vmul.f32 %v2639, 1.442695
      %v2641 = vpow.pop %v2640
      %v2642 = vsel %vm836, %v2641, 0.0
      %2643 = vadd.xlane.f32.xlu0 %v2642
      %v2644 = vpop.xlane.xlu0 %2643
      %v2645 = vrcp.pop %v2644
      %v2646 = vmul.f32 %v2641, %v2645
      %v2648 = vsel %vm848, %v2646, 0
      %v2650 = vsel %vm852, %v2611, 0
      %2652 = vmatpush.msra.mxu0 0.0
      %2653 = vmatpush.msra.mxu0 0.0
      %2654 = vmatpush.msra.mxu0 0.0
      %2655 = vmatpush.msra.mxu0 0.0
      %2656 = vmatpush.msra.mxu0 0.0
      %2657 = vmatpush.msra.mxu0 0.0
      %2658 = vmatpush.msra.mxu0 0.0
      %2659 = vmatpush.msra.mxu0 0.0
      %2660 = vmatpush.msra.mxu0 0.0
      %2661 = vmatpush.msra.mxu0 0.0
      %2662 = vmatpush.msra.mxu0 0.0
      %2663 = vmatpush.msra.mxu0 0.0
      %2664 = vmatpush.msra.mxu0 0.0
      %2665 = vmatpush.msra.mxu0 0.0
      %2666 = vmatpush.msra.mxu0 0.0
      %2667 = vmatpush.msra.mxu0 %v2650
      %2668 = vmatmul.f32.gmra.mxu0 %v2648
      %v2669 = vpop.f32.mrf.mxu0
      %v2670 = vadd.f32 0.0, %v2669
      %2671 = vdwg.mxu0
      %v2672 = vadd.f32 %v2611, %v2670
      %v2673 = vld [vmem:[#allocation2 + $0xb0] sm:$0xff]
      %v2674 = vld [vmem:[#allocation2 + $0xb8] sm:$0xff]
      %v2675 = vadd.f32 %v2673, %v809
      %v2676 = vadd.f32 %v2674, %v810
      %v2678 = vsel %vm776, %v2672, 0
      %v2681 = vsel %vm776, %v2675, 0
      %v2684 = vsel %vm776, %v2676, 0
      %2686 = vmatpush.xpose.msra.mxu0 0.0
      %2687 = vmatpush.xpose.msra.mxu0 0.0
      %2688 = vmatpush.xpose.msra.mxu0 0.0
      %2689 = vmatpush.xpose.msra.mxu0 0.0
      %2690 = vmatpush.xpose.msra.mxu0 0.0
      %2691 = vmatpush.xpose.msra.mxu0 0.0
      %2692 = vmatpush.xpose.msra.mxu0 0.0
      %2693 = vmatpush.xpose.msra.mxu0 0.0
      %2694 = vmatpush.xpose.msra.mxu0 0.0
      %2695 = vmatpush.xpose.msra.mxu0 0.0
      %2696 = vmatpush.xpose.msra.mxu0 0.0
      %2697 = vmatpush.xpose.msra.mxu0 0.0
      %2698 = vmatpush.xpose.msra.mxu0 0.0
      %2699 = vmatpush.xpose.msra.mxu0 0.0
      %2700 = vmatpush.xpose.msra.mxu0 %v2684
      %2701 = vmatpush.xpose.msra.mxu0 %v2681
      %2702 = vmatmul.f32.gmra.mxu0 %v2678
      %v2703 = vpop.f32.mrf.mxu0
      %v2704 = vadd.f32 0.0, %v2703
      %2705 = vdwg.mxu0
      %v2706 = vmul.f32 %v2704, 0.17677669
      %v2707 = vsel %vm910, %v2706, -inf
      %2708 = vmax.xlane.f32.xlu0 %v2707
      %v2709 = vpop.xlane.xlu0 %2708
      %v2710 = vsub.f32 %v2706, %v2709
      %v2711 = vmul.f32 %v2710, 1.442695
      %v2712 = vpow.pop %v2711
      %v2713 = vsel %vm910, %v2712, 0.0
      %2714 = vadd.xlane.f32.xlu0 %v2713
      %v2715 = vpop.xlane.xlu0 %2714
      %v2716 = vrcp.pop %v2715
      %v2717 = vmul.f32 %v2712, %v2716
      %v2719 = vsel %vm922, %v2717, 0
      %2721 = vmatpush.msra.mxu0 0.0
      %2722 = vmatpush.msra.mxu0 0.0
      %2723 = vmatpush.msra.mxu0 0.0
      %2724 = vmatpush.msra.mxu0 0.0
      %2725 = vmatpush.msra.mxu0 0.0
      %2726 = vmatpush.msra.mxu0 0.0
      %2727 = vmatpush.msra.mxu0 0.0
      %2728 = vmatpush.msra.mxu0 0.0
      %2729 = vmatpush.msra.mxu0 0.0
      %2730 = vmatpush.msra.mxu0 0.0
      %2731 = vmatpush.msra.mxu0 0.0
      %2732 = vmatpush.msra.mxu0 0.0
      %2733 = vmatpush.msra.mxu0 0.0
      %2734 = vmatpush.msra.mxu0 0.0
      %2735 = vmatpush.msra.mxu0 %v2674
      %2736 = vmatpush.msra.mxu0 %v2673
      %2737 = vmatmul.f32.gmra.mxu0 %v2719
      %v2738 = vpop.f32.mrf.mxu0
      %v2739 = vadd.f32 0.0, %v2738
      %2740 = vdwg.mxu0
      %2741 = vst.msk [vmem:[#allocation4 + $0xb] sm:$0x1] %vm946, %v2739
      %v2743 = vrot.slane %v2739, 1
      %v2744 = vsel %vm776, %v2743, 0
      %v2747 = vsel %vm776, %v2673, 0
      %v2750 = vsel %vm776, %v2674, 0
      %2752 = vmatpush.xpose.msra.mxu0 0.0
      %2753 = vmatpush.xpose.msra.mxu0 0.0
      %2754 = vmatpush.xpose.msra.mxu0 0.0
      %2755 = vmatpush.xpose.msra.mxu0 0.0
      %2756 = vmatpush.xpose.msra.mxu0 0.0
      %2757 = vmatpush.xpose.msra.mxu0 0.0
      %2758 = vmatpush.xpose.msra.mxu0 0.0
      %2759 = vmatpush.xpose.msra.mxu0 0.0
      %2760 = vmatpush.xpose.msra.mxu0 0.0
      %2761 = vmatpush.xpose.msra.mxu0 0.0
      %2762 = vmatpush.xpose.msra.mxu0 0.0
      %2763 = vmatpush.xpose.msra.mxu0 0.0
      %2764 = vmatpush.xpose.msra.mxu0 0.0
      %2765 = vmatpush.xpose.msra.mxu0 0.0
      %2766 = vmatpush.xpose.msra.mxu0 %v2750
      %2767 = vmatpush.xpose.msra.mxu0 %v2747
      %2768 = vmatmul.f32.gmra.mxu0 %v2744
      %v2769 = vpop.f32.mrf.mxu0
      %v2770 = vadd.f32 0.0, %v2769
      %2771 = vdwg.mxu0
      %2772 = vst.msk [vmem:[#allocation3 + $0xb] sm:$0x1] %vm978, %v2770
      %s2773 = scalar_lea.vmem %s345, 48
      %v2774 = vld [vmem:[%s2773] sm:$0xf]
      %v2776 = vsel %vm776, %v2774, 0
      %2778 = vmatpush.xpose.msra.mxu0 0.0
      %2779 = vmatpush.xpose.msra.mxu0 0.0
      %2780 = vmatpush.xpose.msra.mxu0 0.0
      %2781 = vmatpush.xpose.msra.mxu0 0.0
      %2782 = vmatpush.xpose.msra.mxu0 0.0
      %2783 = vmatpush.xpose.msra.mxu0 0.0
      %2784 = vmatpush.xpose.msra.mxu0 0.0
      %2785 = vmatpush.xpose.msra.mxu0 0.0
      %2786 = vmatpush.xpose.msra.mxu0 0.0
      %2787 = vmatpush.xpose.msra.mxu0 0.0
      %2788 = vmatpush.xpose.msra.mxu0 0.0
      %2789 = vmatpush.xpose.msra.mxu0 0.0
      %2790 = vmatpush.xpose.msra.mxu0 0.0
      %2791 = vmatpush.xpose.msra.mxu0 0.0
      %2792 = vmatpush.xpose.msra.mxu0 0.0
      %2793 = vmatpush.xpose.msra.mxu0 %v2776
      %2794 = vmatmul.f32.gmra.mxu0 %v2776
      %v2795 = vpop.f32.mrf.mxu0
      %v2796 = vadd.f32 0.0, %v2795
      %2797 = vdwg.mxu0
      %v2798 = vmul.f32 %v2796, 0.17677669
      %v2799 = vsel %vm836, %v2798, -inf
      %2800 = vmax.xlane.f32.xlu0 %v2799
      %v2801 = vpop.xlane.xlu0 %2800
      %v2802 = vsub.f32 %v2798, %v2801
      %v2803 = vmul.f32 %v2802, 1.442695
      %v2804 = vpow.pop %v2803
      %v2805 = vsel %vm836, %v2804, 0.0
      %2806 = vadd.xlane.f32.xlu0 %v2805
      %v2807 = vpop.xlane.xlu0 %2806
      %v2808 = vrcp.pop %v2807
      %v2809 = vmul.f32 %v2804, %v2808
      %v2811 = vsel %vm848, %v2809, 0
      %v2813 = vsel %vm852, %v2774, 0
      %2815 = vmatpush.msra.mxu0 0.0
      %2816 = vmatpush.msra.mxu0 0.0
      %2817 = vmatpush.msra.mxu0 0.0
      %2818 = vmatpush.msra.mxu0 0.0
      %2819 = vmatpush.msra.mxu0 0.0
      %2820 = vmatpush.msra.mxu0 0.0
      %2821 = vmatpush.msra.mxu0 0.0
      %2822 = vmatpush.msra.mxu0 0.0
      %2823 = vmatpush.msra.mxu0 0.0
      %2824 = vmatpush.msra.mxu0 0.0
      %2825 = vmatpush.msra.mxu0 0.0
      %2826 = vmatpush.msra.mxu0 0.0
      %2827 = vmatpush.msra.mxu0 0.0
      %2828 = vmatpush.msra.mxu0 0.0
      %2829 = vmatpush.msra.mxu0 0.0
      %2830 = vmatpush.msra.mxu0 %v2813
      %2831 = vmatmul.f32.gmra.mxu0 %v2811
      %v2832 = vpop.f32.mrf.mxu0
      %v2833 = vadd.f32 0.0, %v2832
      %2834 = vdwg.mxu0
      %v2835 = vadd.f32 %v2774, %v2833
      %v2836 = vld [vmem:[#allocation2 + $0xc0] sm:$0xff]
      %v2837 = vld [vmem:[#allocation2 + $0xc8] sm:$0xff]
      %v2838 = vadd.f32 %v2836, %v809
      %v2839 = vadd.f32 %v2837, %v810
      %v2841 = vsel %vm776, %v2835, 0
      %v2844 = vsel %vm776, %v2838, 0
      %v2847 = vsel %vm776, %v2839, 0
      %2849 = vmatpush.xpose.msra.mxu0 0.0
      %2850 = vmatpush.xpose.msra.mxu0 0.0
      %2851 = vmatpush.xpose.msra.mxu0 0.0
      %2852 = vmatpush.xpose.msra.mxu0 0.0
      %2853 = vmatpush.xpose.msra.mxu0 0.0
      %2854 = vmatpush.xpose.msra.mxu0 0.0
      %2855 = vmatpush.xpose.msra.mxu0 0.0
      %2856 = vmatpush.xpose.msra.mxu0 0.0
      %2857 = vmatpush.xpose.msra.mxu0 0.0
      %2858 = vmatpush.xpose.msra.mxu0 0.0
      %2859 = vmatpush.xpose.msra.mxu0 0.0
      %2860 = vmatpush.xpose.msra.mxu0 0.0
      %2861 = vmatpush.xpose.msra.mxu0 0.0
      %2862 = vmatpush.xpose.msra.mxu0 0.0
      %2863 = vmatpush.xpose.msra.mxu0 %v2847
      %2864 = vmatpush.xpose.msra.mxu0 %v2844
      %2865 = vmatmul.f32.gmra.mxu0 %v2841
      %v2866 = vpop.f32.mrf.mxu0
      %v2867 = vadd.f32 0.0, %v2866
      %2868 = vdwg.mxu0
      %v2869 = vmul.f32 %v2867, 0.17677669
      %v2870 = vsel %vm910, %v2869, -inf
      %2871 = vmax.xlane.f32.xlu0 %v2870
      %v2872 = vpop.xlane.xlu0 %2871
      %v2873 = vsub.f32 %v2869, %v2872
      %v2874 = vmul.f32 %v2873, 1.442695
      %v2875 = vpow.pop %v2874
      %v2876 = vsel %vm910, %v2875, 0.0
      %2877 = vadd.xlane.f32.xlu0 %v2876
      %v2878 = vpop.xlane.xlu0 %2877
      %v2879 = vrcp.pop %v2878
      %v2880 = vmul.f32 %v2875, %v2879
      %v2882 = vsel %vm922, %v2880, 0
      %2884 = vmatpush.msra.mxu0 0.0
      %2885 = vmatpush.msra.mxu0 0.0
      %2886 = vmatpush.msra.mxu0 0.0
      %2887 = vmatpush.msra.mxu0 0.0
      %2888 = vmatpush.msra.mxu0 0.0
      %2889 = vmatpush.msra.mxu0 0.0
      %2890 = vmatpush.msra.mxu0 0.0
      %2891 = vmatpush.msra.mxu0 0.0
      %2892 = vmatpush.msra.mxu0 0.0
      %2893 = vmatpush.msra.mxu0 0.0
      %2894 = vmatpush.msra.mxu0 0.0
      %2895 = vmatpush.msra.mxu0 0.0
      %2896 = vmatpush.msra.mxu0 0.0
      %2897 = vmatpush.msra.mxu0 0.0
      %2898 = vmatpush.msra.mxu0 %v2837
      %2899 = vmatpush.msra.mxu0 %v2836
      %2900 = vmatmul.f32.gmra.mxu0 %v2882
      %v2901 = vpop.f32.mrf.mxu0
      %v2902 = vadd.f32 0.0, %v2901
      %2903 = vdwg.mxu0
      %2904 = vst.msk [vmem:[#allocation4 + $0xc] sm:$0x1] %vm946, %v2902
      %v2906 = vrot.slane %v2902, 1
      %v2907 = vsel %vm776, %v2906, 0
      %v2910 = vsel %vm776, %v2836, 0
      %v2913 = vsel %vm776, %v2837, 0
      %2915 = vmatpush.xpose.msra.mxu0 0.0
      %2916 = vmatpush.xpose.msra.mxu0 0.0
      %2917 = vmatpush.xpose.msra.mxu0 0.0
      %2918 = vmatpush.xpose.msra.mxu0 0.0
      %2919 = vmatpush.xpose.msra.mxu0 0.0
      %2920 = vmatpush.xpose.msra.mxu0 0.0
      %2921 = vmatpush.xpose.msra.mxu0 0.0
      %2922 = vmatpush.xpose.msra.mxu0 0.0
      %2923 = vmatpush.xpose.msra.mxu0 0.0
      %2924 = vmatpush.xpose.msra.mxu0 0.0
      %2925 = vmatpush.xpose.msra.mxu0 0.0
      %2926 = vmatpush.xpose.msra.mxu0 0.0
      %2927 = vmatpush.xpose.msra.mxu0 0.0
      %2928 = vmatpush.xpose.msra.mxu0 0.0
      %2929 = vmatpush.xpose.msra.mxu0 %v2913
      %2930 = vmatpush.xpose.msra.mxu0 %v2910
      %2931 = vmatmul.f32.gmra.mxu0 %v2907
      %v2932 = vpop.f32.mrf.mxu0
      %v2933 = vadd.f32 0.0, %v2932
      %2934 = vdwg.mxu0
      %2935 = vst.msk [vmem:[#allocation3 + $0xc] sm:$0x1] %vm978, %v2933
      %s2936 = scalar_lea.vmem %s345, 52
      %v2937 = vld [vmem:[%s2936] sm:$0xf]
      %v2939 = vsel %vm776, %v2937, 0
      %2941 = vmatpush.xpose.msra.mxu0 0.0
      %2942 = vmatpush.xpose.msra.mxu0 0.0
      %2943 = vmatpush.xpose.msra.mxu0 0.0
      %2944 = vmatpush.xpose.msra.mxu0 0.0
      %2945 = vmatpush.xpose.msra.mxu0 0.0
      %2946 = vmatpush.xpose.msra.mxu0 0.0
      %2947 = vmatpush.xpose.msra.mxu0 0.0
      %2948 = vmatpush.xpose.msra.mxu0 0.0
      %2949 = vmatpush.xpose.msra.mxu0 0.0
      %2950 = vmatpush.xpose.msra.mxu0 0.0
      %2951 = vmatpush.xpose.msra.mxu0 0.0
      %2952 = vmatpush.xpose.msra.mxu0 0.0
      %2953 = vmatpush.xpose.msra.mxu0 0.0
      %2954 = vmatpush.xpose.msra.mxu0 0.0
      %2955 = vmatpush.xpose.msra.mxu0 0.0
      %2956 = vmatpush.xpose.msra.mxu0 %v2939
      %2957 = vmatmul.f32.gmra.mxu0 %v2939
      %v2958 = vpop.f32.mrf.mxu0
      %v2959 = vadd.f32 0.0, %v2958
      %2960 = vdwg.mxu0
      %v2961 = vmul.f32 %v2959, 0.17677669
      %v2962 = vsel %vm836, %v2961, -inf
      %2963 = vmax.xlane.f32.xlu0 %v2962
      %v2964 = vpop.xlane.xlu0 %2963
      %v2965 = vsub.f32 %v2961, %v2964
      %v2966 = vmul.f32 %v2965, 1.442695
      %v2967 = vpow.pop %v2966
      %v2968 = vsel %vm836, %v2967, 0.0
      %2969 = vadd.xlane.f32.xlu0 %v2968
      %v2970 = vpop.xlane.xlu0 %2969
      %v2971 = vrcp.pop %v2970
      %v2972 = vmul.f32 %v2967, %v2971
      %v2974 = vsel %vm848, %v2972, 0
      %v2976 = vsel %vm852, %v2937, 0
      %2978 = vmatpush.msra.mxu0 0.0
      %2979 = vmatpush.msra.mxu0 0.0
      %2980 = vmatpush.msra.mxu0 0.0
      %2981 = vmatpush.msra.mxu0 0.0
      %2982 = vmatpush.msra.mxu0 0.0
      %2983 = vmatpush.msra.mxu0 0.0
      %2984 = vmatpush.msra.mxu0 0.0
      %2985 = vmatpush.msra.mxu0 0.0
      %2986 = vmatpush.msra.mxu0 0.0
      %2987 = vmatpush.msra.mxu0 0.0
      %2988 = vmatpush.msra.mxu0 0.0
      %2989 = vmatpush.msra.mxu0 0.0
      %2990 = vmatpush.msra.mxu0 0.0
      %2991 = vmatpush.msra.mxu0 0.0
      %2992 = vmatpush.msra.mxu0 0.0
      %2993 = vmatpush.msra.mxu0 %v2976
      %2994 = vmatmul.f32.gmra.mxu0 %v2974
      %v2995 = vpop.f32.mrf.mxu0
      %v2996 = vadd.f32 0.0, %v2995
      %2997 = vdwg.mxu0
      %v2998 = vadd.f32 %v2937, %v2996
      %v2999 = vld [vmem:[#allocation2 + $0xd0] sm:$0xff]
      %v3000 = vld [vmem:[#allocation2 + $0xd8] sm:$0xff]
      %v3001 = vadd.f32 %v2999, %v809
      %v3002 = vadd.f32 %v3000, %v810
      %v3004 = vsel %vm776, %v2998, 0
      %v3007 = vsel %vm776, %v3001, 0
      %v3010 = vsel %vm776, %v3002, 0
      %3012 = vmatpush.xpose.msra.mxu0 0.0
      %3013 = vmatpush.xpose.msra.mxu0 0.0
      %3014 = vmatpush.xpose.msra.mxu0 0.0
      %3015 = vmatpush.xpose.msra.mxu0 0.0
      %3016 = vmatpush.xpose.msra.mxu0 0.0
      %3017 = vmatpush.xpose.msra.mxu0 0.0
      %3018 = vmatpush.xpose.msra.mxu0 0.0
      %3019 = vmatpush.xpose.msra.mxu0 0.0
      %3020 = vmatpush.xpose.msra.mxu0 0.0
      %3021 = vmatpush.xpose.msra.mxu0 0.0
      %3022 = vmatpush.xpose.msra.mxu0 0.0
      %3023 = vmatpush.xpose.msra.mxu0 0.0
      %3024 = vmatpush.xpose.msra.mxu0 0.0
      %3025 = vmatpush.xpose.msra.mxu0 0.0
      %3026 = vmatpush.xpose.msra.mxu0 %v3010
      %3027 = vmatpush.xpose.msra.mxu0 %v3007
      %3028 = vmatmul.f32.gmra.mxu0 %v3004
      %v3029 = vpop.f32.mrf.mxu0
      %v3030 = vadd.f32 0.0, %v3029
      %3031 = vdwg.mxu0
      %v3032 = vmul.f32 %v3030, 0.17677669
      %v3033 = vsel %vm910, %v3032, -inf
      %3034 = vmax.xlane.f32.xlu0 %v3033
      %v3035 = vpop.xlane.xlu0 %3034
      %v3036 = vsub.f32 %v3032, %v3035
      %v3037 = vmul.f32 %v3036, 1.442695
      %v3038 = vpow.pop %v3037
      %v3039 = vsel %vm910, %v3038, 0.0
      %3040 = vadd.xlane.f32.xlu0 %v3039
      %v3041 = vpop.xlane.xlu0 %3040
      %v3042 = vrcp.pop %v3041
      %v3043 = vmul.f32 %v3038, %v3042
      %v3045 = vsel %vm922, %v3043, 0
      %3047 = vmatpush.msra.mxu0 0.0
      %3048 = vmatpush.msra.mxu0 0.0
      %3049 = vmatpush.msra.mxu0 0.0
      %3050 = vmatpush.msra.mxu0 0.0
      %3051 = vmatpush.msra.mxu0 0.0
      %3052 = vmatpush.msra.mxu0 0.0
      %3053 = vmatpush.msra.mxu0 0.0
      %3054 = vmatpush.msra.mxu0 0.0
      %3055 = vmatpush.msra.mxu0 0.0
      %3056 = vmatpush.msra.mxu0 0.0
      %3057 = vmatpush.msra.mxu0 0.0
      %3058 = vmatpush.msra.mxu0 0.0
      %3059 = vmatpush.msra.mxu0 0.0
      %3060 = vmatpush.msra.mxu0 0.0
      %3061 = vmatpush.msra.mxu0 %v3000
      %3062 = vmatpush.msra.mxu0 %v2999
      %3063 = vmatmul.f32.gmra.mxu0 %v3045
      %v3064 = vpop.f32.mrf.mxu0
      %v3065 = vadd.f32 0.0, %v3064
      %3066 = vdwg.mxu0
      %3067 = vst.msk [vmem:[#allocation4 + $0xd] sm:$0x1] %vm946, %v3065
      %v3069 = vrot.slane %v3065, 1
      %v3070 = vsel %vm776, %v3069, 0
      %v3073 = vsel %vm776, %v2999, 0
      %v3076 = vsel %vm776, %v3000, 0
      %3078 = vmatpush.xpose.msra.mxu0 0.0
      %3079 = vmatpush.xpose.msra.mxu0 0.0
      %3080 = vmatpush.xpose.msra.mxu0 0.0
      %3081 = vmatpush.xpose.msra.mxu0 0.0
      %3082 = vmatpush.xpose.msra.mxu0 0.0
      %3083 = vmatpush.xpose.msra.mxu0 0.0
      %3084 = vmatpush.xpose.msra.mxu0 0.0
      %3085 = vmatpush.xpose.msra.mxu0 0.0
      %3086 = vmatpush.xpose.msra.mxu0 0.0
      %3087 = vmatpush.xpose.msra.mxu0 0.0
      %3088 = vmatpush.xpose.msra.mxu0 0.0
      %3089 = vmatpush.xpose.msra.mxu0 0.0
      %3090 = vmatpush.xpose.msra.mxu0 0.0
      %3091 = vmatpush.xpose.msra.mxu0 0.0
      %3092 = vmatpush.xpose.msra.mxu0 %v3076
      %3093 = vmatpush.xpose.msra.mxu0 %v3073
      %3094 = vmatmul.f32.gmra.mxu0 %v3070
      %v3095 = vpop.f32.mrf.mxu0
      %v3096 = vadd.f32 0.0, %v3095
      %3097 = vdwg.mxu0
      %3098 = vst.msk [vmem:[#allocation3 + $0xd] sm:$0x1] %vm978, %v3096
      %s3099 = scalar_lea.vmem %s345, 56
      %v3100 = vld [vmem:[%s3099] sm:$0xf]
      %v3102 = vsel %vm776, %v3100, 0
      %3104 = vmatpush.xpose.msra.mxu0 0.0
      %3105 = vmatpush.xpose.msra.mxu0 0.0
      %3106 = vmatpush.xpose.msra.mxu0 0.0
      %3107 = vmatpush.xpose.msra.mxu0 0.0
      %3108 = vmatpush.xpose.msra.mxu0 0.0
      %3109 = vmatpush.xpose.msra.mxu0 0.0
      %3110 = vmatpush.xpose.msra.mxu0 0.0
      %3111 = vmatpush.xpose.msra.mxu0 0.0
      %3112 = vmatpush.xpose.msra.mxu0 0.0
      %3113 = vmatpush.xpose.msra.mxu0 0.0
      %3114 = vmatpush.xpose.msra.mxu0 0.0
      %3115 = vmatpush.xpose.msra.mxu0 0.0
      %3116 = vmatpush.xpose.msra.mxu0 0.0
      %3117 = vmatpush.xpose.msra.mxu0 0.0
      %3118 = vmatpush.xpose.msra.mxu0 0.0
      %3119 = vmatpush.xpose.msra.mxu0 %v3102
      %3120 = vmatmul.f32.gmra.mxu0 %v3102
      %v3121 = vpop.f32.mrf.mxu0
      %v3122 = vadd.f32 0.0, %v3121
      %3123 = vdwg.mxu0
      %v3124 = vmul.f32 %v3122, 0.17677669
      %v3125 = vsel %vm836, %v3124, -inf
      %3126 = vmax.xlane.f32.xlu0 %v3125
      %v3127 = vpop.xlane.xlu0 %3126
      %v3128 = vsub.f32 %v3124, %v3127
      %v3129 = vmul.f32 %v3128, 1.442695
      %v3130 = vpow.pop %v3129
      %v3131 = vsel %vm836, %v3130, 0.0
      %3132 = vadd.xlane.f32.xlu0 %v3131
      %v3133 = vpop.xlane.xlu0 %3132
      %v3134 = vrcp.pop %v3133
      %v3135 = vmul.f32 %v3130, %v3134
      %v3137 = vsel %vm848, %v3135, 0
      %v3139 = vsel %vm852, %v3100, 0
      %3141 = vmatpush.msra.mxu0 0.0
      %3142 = vmatpush.msra.mxu0 0.0
      %3143 = vmatpush.msra.mxu0 0.0
      %3144 = vmatpush.msra.mxu0 0.0
      %3145 = vmatpush.msra.mxu0 0.0
      %3146 = vmatpush.msra.mxu0 0.0
      %3147 = vmatpush.msra.mxu0 0.0
      %3148 = vmatpush.msra.mxu0 0.0
      %3149 = vmatpush.msra.mxu0 0.0
      %3150 = vmatpush.msra.mxu0 0.0
      %3151 = vmatpush.msra.mxu0 0.0
      %3152 = vmatpush.msra.mxu0 0.0
      %3153 = vmatpush.msra.mxu0 0.0
      %3154 = vmatpush.msra.mxu0 0.0
      %3155 = vmatpush.msra.mxu0 0.0
      %3156 = vmatpush.msra.mxu0 %v3139
      %3157 = vmatmul.f32.gmra.mxu0 %v3137
      %v3158 = vpop.f32.mrf.mxu0
      %v3159 = vadd.f32 0.0, %v3158
      %3160 = vdwg.mxu0
      %v3161 = vadd.f32 %v3100, %v3159
      %v3162 = vld [vmem:[#allocation2 + $0xe0] sm:$0xff]
      %v3163 = vld [vmem:[#allocation2 + $0xe8] sm:$0xff]
      %v3164 = vadd.f32 %v3162, %v809
      %v3165 = vadd.f32 %v3163, %v810
      %v3167 = vsel %vm776, %v3161, 0
      %v3170 = vsel %vm776, %v3164, 0
      %v3173 = vsel %vm776, %v3165, 0
      %3175 = vmatpush.xpose.msra.mxu0 0.0
      %3176 = vmatpush.xpose.msra.mxu0 0.0
      %3177 = vmatpush.xpose.msra.mxu0 0.0
      %3178 = vmatpush.xpose.msra.mxu0 0.0
      %3179 = vmatpush.xpose.msra.mxu0 0.0
      %3180 = vmatpush.xpose.msra.mxu0 0.0
      %3181 = vmatpush.xpose.msra.mxu0 0.0
      %3182 = vmatpush.xpose.msra.mxu0 0.0
      %3183 = vmatpush.xpose.msra.mxu0 0.0
      %3184 = vmatpush.xpose.msra.mxu0 0.0
      %3185 = vmatpush.xpose.msra.mxu0 0.0
      %3186 = vmatpush.xpose.msra.mxu0 0.0
      %3187 = vmatpush.xpose.msra.mxu0 0.0
      %3188 = vmatpush.xpose.msra.mxu0 0.0
      %3189 = vmatpush.xpose.msra.mxu0 %v3173
      %3190 = vmatpush.xpose.msra.mxu0 %v3170
      %3191 = vmatmul.f32.gmra.mxu0 %v3167
      %v3192 = vpop.f32.mrf.mxu0
      %v3193 = vadd.f32 0.0, %v3192
      %3194 = vdwg.mxu0
      %v3195 = vmul.f32 %v3193, 0.17677669
      %v3196 = vsel %vm910, %v3195, -inf
      %3197 = vmax.xlane.f32.xlu0 %v3196
      %v3198 = vpop.xlane.xlu0 %3197
      %v3199 = vsub.f32 %v3195, %v3198
      %v3200 = vmul.f32 %v3199, 1.442695
      %v3201 = vpow.pop %v3200
      %v3202 = vsel %vm910, %v3201, 0.0
      %3203 = vadd.xlane.f32.xlu0 %v3202
      %v3204 = vpop.xlane.xlu0 %3203
      %v3205 = vrcp.pop %v3204
      %v3206 = vmul.f32 %v3201, %v3205
      %v3208 = vsel %vm922, %v3206, 0
      %3210 = vmatpush.msra.mxu0 0.0
      %3211 = vmatpush.msra.mxu0 0.0
      %3212 = vmatpush.msra.mxu0 0.0
      %3213 = vmatpush.msra.mxu0 0.0
      %3214 = vmatpush.msra.mxu0 0.0
      %3215 = vmatpush.msra.mxu0 0.0
      %3216 = vmatpush.msra.mxu0 0.0
      %3217 = vmatpush.msra.mxu0 0.0
      %3218 = vmatpush.msra.mxu0 0.0
      %3219 = vmatpush.msra.mxu0 0.0
      %3220 = vmatpush.msra.mxu0 0.0
      %3221 = vmatpush.msra.mxu0 0.0
      %3222 = vmatpush.msra.mxu0 0.0
      %3223 = vmatpush.msra.mxu0 0.0
      %3224 = vmatpush.msra.mxu0 %v3163
      %3225 = vmatpush.msra.mxu0 %v3162
      %3226 = vmatmul.f32.gmra.mxu0 %v3208
      %v3227 = vpop.f32.mrf.mxu0
      %v3228 = vadd.f32 0.0, %v3227
      %3229 = vdwg.mxu0
      %3230 = vst.msk [vmem:[#allocation4 + $0xe] sm:$0x1] %vm946, %v3228
      %v3232 = vrot.slane %v3228, 1
      %v3233 = vsel %vm776, %v3232, 0
      %v3236 = vsel %vm776, %v3162, 0
      %v3239 = vsel %vm776, %v3163, 0
      %3241 = vmatpush.xpose.msra.mxu0 0.0
      %3242 = vmatpush.xpose.msra.mxu0 0.0
      %3243 = vmatpush.xpose.msra.mxu0 0.0
      %3244 = vmatpush.xpose.msra.mxu0 0.0
      %3245 = vmatpush.xpose.msra.mxu0 0.0
      %3246 = vmatpush.xpose.msra.mxu0 0.0
      %3247 = vmatpush.xpose.msra.mxu0 0.0
      %3248 = vmatpush.xpose.msra.mxu0 0.0
      %3249 = vmatpush.xpose.msra.mxu0 0.0
      %3250 = vmatpush.xpose.msra.mxu0 0.0
      %3251 = vmatpush.xpose.msra.mxu0 0.0
      %3252 = vmatpush.xpose.msra.mxu0 0.0
      %3253 = vmatpush.xpose.msra.mxu0 0.0
      %3254 = vmatpush.xpose.msra.mxu0 0.0
      %3255 = vmatpush.xpose.msra.mxu0 %v3239
      %3256 = vmatpush.xpose.msra.mxu0 %v3236
      %3257 = vmatmul.f32.gmra.mxu0 %v3233
      %v3258 = vpop.f32.mrf.mxu0
      %v3259 = vadd.f32 0.0, %v3258
      %3260 = vdwg.mxu0
      %3261 = vst.msk [vmem:[#allocation3 + $0xe] sm:$0x1] %vm978, %v3259
      %s3262 = scalar_lea.vmem %s345, 60
      %v3263 = vld [vmem:[%s3262] sm:$0xf]
      %v3265 = vsel %vm776, %v3263, 0
      %3267 = vmatpush.xpose.msra.mxu0 0.0
      %3268 = vmatpush.xpose.msra.mxu0 0.0
      %3269 = vmatpush.xpose.msra.mxu0 0.0
      %3270 = vmatpush.xpose.msra.mxu0 0.0
      %3271 = vmatpush.xpose.msra.mxu0 0.0
      %3272 = vmatpush.xpose.msra.mxu0 0.0
      %3273 = vmatpush.xpose.msra.mxu0 0.0
      %3274 = vmatpush.xpose.msra.mxu0 0.0
      %3275 = vmatpush.xpose.msra.mxu0 0.0
      %3276 = vmatpush.xpose.msra.mxu0 0.0
      %3277 = vmatpush.xpose.msra.mxu0 0.0
      %3278 = vmatpush.xpose.msra.mxu0 0.0
      %3279 = vmatpush.xpose.msra.mxu0 0.0
      %3280 = vmatpush.xpose.msra.mxu0 0.0
      %3281 = vmatpush.xpose.msra.mxu0 0.0
      %3282 = vmatpush.xpose.msra.mxu0 %v3265
      %3283 = vmatmul.f32.gmra.mxu0 %v3265
      %v3284 = vpop.f32.mrf.mxu0
      %v3285 = vadd.f32 0.0, %v3284
      %3286 = vdwg.mxu0
      %v3287 = vmul.f32 %v3285, 0.17677669
      %v3288 = vsel %vm836, %v3287, -inf
      %3289 = vmax.xlane.f32.xlu0 %v3288
      %v3290 = vpop.xlane.xlu0 %3289
      %v3291 = vsub.f32 %v3287, %v3290
      %v3292 = vmul.f32 %v3291, 1.442695
      %v3293 = vpow.pop %v3292
      %v3294 = vsel %vm836, %v3293, 0.0
      %3295 = vadd.xlane.f32.xlu0 %v3294
      %v3296 = vpop.xlane.xlu0 %3295
      %v3297 = vrcp.pop %v3296
      %v3298 = vmul.f32 %v3293, %v3297
      %v3300 = vsel %vm848, %v3298, 0
      %v3302 = vsel %vm852, %v3263, 0
      %3304 = vmatpush.msra.mxu0 0.0
      %3305 = vmatpush.msra.mxu0 0.0
      %3306 = vmatpush.msra.mxu0 0.0
      %3307 = vmatpush.msra.mxu0 0.0
      %3308 = vmatpush.msra.mxu0 0.0
      %3309 = vmatpush.msra.mxu0 0.0
      %3310 = vmatpush.msra.mxu0 0.0
      %3311 = vmatpush.msra.mxu0 0.0
      %3312 = vmatpush.msra.mxu0 0.0
      %3313 = vmatpush.msra.mxu0 0.0
      %3314 = vmatpush.msra.mxu0 0.0
      %3315 = vmatpush.msra.mxu0 0.0
      %3316 = vmatpush.msra.mxu0 0.0
      %3317 = vmatpush.msra.mxu0 0.0
      %3318 = vmatpush.msra.mxu0 0.0
      %3319 = vmatpush.msra.mxu0 %v3302
      %3320 = vmatmul.f32.gmra.mxu0 %v3300
      %v3321 = vpop.f32.mrf.mxu0
      %v3322 = vadd.f32 0.0, %v3321
      %3323 = vdwg.mxu0
      %v3324 = vadd.f32 %v3263, %v3322
      %v3325 = vld [vmem:[#allocation2 + $0xf0] sm:$0xff]
      %v3326 = vld [vmem:[#allocation2 + $0xf8] sm:$0xff]
      %v3327 = vadd.f32 %v3325, %v809
      %v3328 = vadd.f32 %v3326, %v810
      %v3330 = vsel %vm776, %v3324, 0
      %v3333 = vsel %vm776, %v3327, 0
      %v3336 = vsel %vm776, %v3328, 0
      %3338 = vmatpush.xpose.msra.mxu0 0.0
      %3339 = vmatpush.xpose.msra.mxu0 0.0
      %3340 = vmatpush.xpose.msra.mxu0 0.0
      %3341 = vmatpush.xpose.msra.mxu0 0.0
      %3342 = vmatpush.xpose.msra.mxu0 0.0
      %3343 = vmatpush.xpose.msra.mxu0 0.0
      %3344 = vmatpush.xpose.msra.mxu0 0.0
      %3345 = vmatpush.xpose.msra.mxu0 0.0
      %3346 = vmatpush.xpose.msra.mxu0 0.0
      %3347 = vmatpush.xpose.msra.mxu0 0.0
      %3348 = vmatpush.xpose.msra.mxu0 0.0
      %3349 = vmatpush.xpose.msra.mxu0 0.0
      %3350 = vmatpush.xpose.msra.mxu0 0.0
      %3351 = vmatpush.xpose.msra.mxu0 0.0
      %3352 = vmatpush.xpose.msra.mxu0 %v3336
      %3353 = vmatpush.xpose.msra.mxu0 %v3333
      %3354 = vmatmul.f32.gmra.mxu0 %v3330
      %v3355 = vpop.f32.mrf.mxu0
      %v3356 = vadd.f32 0.0, %v3355
      %3357 = vdwg.mxu0
      %v3358 = vmul.f32 %v3356, 0.17677669
      %v3359 = vsel %vm910, %v3358, -inf
      %3360 = vmax.xlane.f32.xlu0 %v3359
      %v3361 = vpop.xlane.xlu0 %3360
      %v3362 = vsub.f32 %v3358, %v3361
      %v3363 = vmul.f32 %v3362, 1.442695
      %v3364 = vpow.pop %v3363
      %v3365 = vsel %vm910, %v3364, 0.0
      %3366 = vadd.xlane.f32.xlu0 %v3365
      %v3367 = vpop.xlane.xlu0 %3366
      %v3368 = vrcp.pop %v3367
      %v3369 = vmul.f32 %v3364, %v3368
      %v3371 = vsel %vm922, %v3369, 0
      %3373 = vmatpush.msra.mxu0 0.0
      %3374 = vmatpush.msra.mxu0 0.0
      %3375 = vmatpush.msra.mxu0 0.0
      %3376 = vmatpush.msra.mxu0 0.0
      %3377 = vmatpush.msra.mxu0 0.0
      %3378 = vmatpush.msra.mxu0 0.0
      %3379 = vmatpush.msra.mxu0 0.0
      %3380 = vmatpush.msra.mxu0 0.0
      %3381 = vmatpush.msra.mxu0 0.0
      %3382 = vmatpush.msra.mxu0 0.0
      %3383 = vmatpush.msra.mxu0 0.0
      %3384 = vmatpush.msra.mxu0 0.0
      %3385 = vmatpush.msra.mxu0 0.0
      %3386 = vmatpush.msra.mxu0 0.0
      %3387 = vmatpush.msra.mxu0 %v3326
      %3388 = vmatpush.msra.mxu0 %v3325
      %3389 = vmatmul.f32.gmra.mxu0 %v3371
      %v3390 = vpop.f32.mrf.mxu0
      %v3391 = vadd.f32 0.0, %v3390
      %3392 = vdwg.mxu0
      %3393 = vst.msk [vmem:[#allocation4 + $0xf] sm:$0x1] %vm946, %v3391
      %v3395 = vrot.slane %v3391, 1
      %v3396 = vsel %vm776, %v3395, 0
      %v3399 = vsel %vm776, %v3325, 0
      %v3402 = vsel %vm776, %v3326, 0
      %3404 = vmatpush.xpose.msra.mxu0 0.0
      %3405 = vmatpush.xpose.msra.mxu0 0.0
      %3406 = vmatpush.xpose.msra.mxu0 0.0
      %3407 = vmatpush.xpose.msra.mxu0 0.0
      %3408 = vmatpush.xpose.msra.mxu0 0.0
      %3409 = vmatpush.xpose.msra.mxu0 0.0
      %3410 = vmatpush.xpose.msra.mxu0 0.0
      %3411 = vmatpush.xpose.msra.mxu0 0.0
      %3412 = vmatpush.xpose.msra.mxu0 0.0
      %3413 = vmatpush.xpose.msra.mxu0 0.0
      %3414 = vmatpush.xpose.msra.mxu0 0.0
      %3415 = vmatpush.xpose.msra.mxu0 0.0
      %3416 = vmatpush.xpose.msra.mxu0 0.0
      %3417 = vmatpush.xpose.msra.mxu0 0.0
      %3418 = vmatpush.xpose.msra.mxu0 %v3402
      %3419 = vmatpush.xpose.msra.mxu0 %v3399
      %3420 = vmatmul.f32.gmra.mxu0 %v3396
      %v3421 = vpop.f32.mrf.mxu0
      %v3422 = vadd.f32 0.0, %v3421
      %3423 = vdwg.mxu0
      %3424 = vst.msk [vmem:[#allocation3 + $0xf] sm:$0x1] %vm978, %v3422
      %v3425 = vld [vmem:[#allocation3] sm:$0xff]
      %v3426 = vld [vmem:[#allocation3 + $0x8] sm:$0xff]
      %v3427 = vld [vmem:[%s7] sm:$0xff]
      %v3428 = vld [vmem:[%s7 + $0x8] sm:$0xff]
      %v3429 = vld [vmem:[%s7 + $0x10] sm:$0xff]
      %v3430 = vld [vmem:[%s7 + $0x18] sm:$0xff]
      %v3432 = vsel %vm922, %v3425, 0
      %v3435 = vsel %vm922, %v3426, 0
      %3437 = vmatpush.msra.mxu0 0.0
      %3438 = vmatpush.msra.mxu0 0.0
      %3439 = vmatpush.msra.mxu0 0.0
      %3440 = vmatpush.msra.mxu0 0.0
      %3441 = vmatpush.msra.mxu0 0.0
      %3442 = vmatpush.msra.mxu0 0.0
      %3443 = vmatpush.msra.mxu0 0.0
      %3444 = vmatpush.msra.mxu0 0.0
      %3445 = vmatpush.msra.mxu0 0.0
      %3446 = vmatpush.msra.mxu0 0.0
      %3447 = vmatpush.msra.mxu0 0.0
      %3448 = vmatpush.msra.mxu0 0.0
      %3449 = vmatpush.msra.mxu0 0.0
      %3450 = vmatpush.msra.mxu0 0.0
      %3451 = vmatpush.msra.mxu0 %v3429
      %3452 = vmatpush.msra.mxu0 %v3427
      %3453 = vmatmul.f32.gmra.mxu0 %v3432
      %v3454 = vpop.f32.mrf.mxu0
      %v3455 = vadd.f32 0.0, %v3454
      %3456 = vmatmul.f32.gmra.mxu0 %v3435
      %v3457 = vpop.f32.mrf.mxu0
      %v3458 = vadd.f32 0.0, %v3457
      %3459 = vdwg.mxu0
      %3460 = vmatpush.msra.mxu0 0.0
      %3461 = vmatpush.msra.mxu0 0.0
      %3462 = vmatpush.msra.mxu0 0.0
      %3463 = vmatpush.msra.mxu0 0.0
      %3464 = vmatpush.msra.mxu0 0.0
      %3465 = vmatpush.msra.mxu0 0.0
      %3466 = vmatpush.msra.mxu0 0.0
      %3467 = vmatpush.msra.mxu0 0.0
      %3468 = vmatpush.msra.mxu0 0.0
      %3469 = vmatpush.msra.mxu0 0.0
      %3470 = vmatpush.msra.mxu0 0.0
      %3471 = vmatpush.msra.mxu0 0.0
      %3472 = vmatpush.msra.mxu0 0.0
      %3473 = vmatpush.msra.mxu0 0.0
      %3474 = vmatpush.msra.mxu0 %v3430
      %3475 = vmatpush.msra.mxu0 %v3428
      %3476 = vmatmul.f32.gmra.mxu0 %v3432
      %v3477 = vpop.f32.mrf.mxu0
      %v3478 = vadd.f32 0.0, %v3477
      %3479 = vmatmul.f32.gmra.mxu0 %v3435
      %v3480 = vpop.f32.mrf.mxu0
      %v3481 = vadd.f32 0.0, %v3480
      %3482 = vdwg.mxu0
      %v3483 = vld [vmem:[#allocation4] sm:$0xff]
      %v3484 = vld [vmem:[#allocation4 + $0x8] sm:$0xff]
      %v3485 = vld [vmem:[%s6] sm:$0x1]
      %v3487 = vperm.slane %v3485, 0
      %v3489 = vmul.f32 %v3483, %v3487
      %v3490 = vmul.f32 %v3484, %v3487
      %v3491 = vsel %vm776, %v3489, 0.0
      %3492 = vadd.xlane.f32.xlu0 %v3491
      %v3493 = vpop.xlane.xlu0 %3492
      %v3494 = vsel %vm776, %v3490, 0.0
      %3495 = vadd.xlane.f32.xlu0 %v3494
      %v3496 = vpop.xlane.xlu0 %3495
      %v3497 = vld [vmem:[%s352] sm:$0xff]
      %v3498 = vld [vmem:[%s352 + $0x8] sm:$0xff]
      %v3499 = vld [vmem:[%s352 + $0x10] sm:$0xff]
      %v3500 = vld [vmem:[%s352 + $0x18] sm:$0xff]
      %v3501 = vmax.f32 %v3455, 0.0
      %v3502 = vmax.f32 %v3478, 0.0
      %v3503 = vmax.f32 %v3458, 0.0
      %v3504 = vmax.f32 %v3481, 0.0
      %v3505 = vmul.f32 %v3455, %v3497
      %v3506 = vmul.f32 %v3478, %v3498
      %v3507 = vmul.f32 %v3458, %v3499
      %v3508 = vmul.f32 %v3481, %v3500
      %v3509 = vsub.f32 %v3501, %v3505
      %v3510 = vsub.f32 %v3502, %v3506
      %v3511 = vsub.f32 %v3503, %v3507
      %v3512 = vsub.f32 %v3504, %v3508
      %v3513 = vand.u32 2147483647, %v3455
      %v3514 = vand.u32 2147483647, %v3478
      %v3515 = vand.u32 2147483647, %v3458
      %v3516 = vand.u32 2147483647, %v3481
      %v3517 = vsub.f32 0.0, %v3513
      %v3518 = vsub.f32 0.0, %v3514
      %v3519 = vsub.f32 0.0, %v3515
      %v3520 = vsub.f32 0.0, %v3516
      %v3521 = vmul.f32 %v3517, 1.442695
      %v3522 = vpow.pop %v3521
      %v3523 = vmul.f32 %v3518, 1.442695
      %v3524 = vpow.pop %v3523
      %v3525 = vmul.f32 %v3519, 1.442695
      %v3526 = vpow.pop %v3525
      %v3527 = vmul.f32 %v3520, 1.442695
      %v3528 = vpow.pop %v3527
      %v3529 = vadd.f32 %v3522, 1.0
      %v3530 = vadd.f32 %v3524, 1.0
      %v3531 = vadd.f32 %v3526, 1.0
      %v3532 = vadd.f32 %v3528, 1.0
      %v3533 = vlog2.pop %v3529
      %v3534 = vmul.f32 %v3533, 0.6931472
      %v3535 = vlog2.pop %v3530
      %v3536 = vmul.f32 %v3535, 0.6931472
      %v3537 = vlog2.pop %v3531
      %v3538 = vmul.f32 %v3537, 0.6931472
      %v3539 = vlog2.pop %v3532
      %v3540 = vmul.f32 %v3539, 0.6931472
      %v3541 = vadd.f32 %v3509, %v3534
      %v3542 = vadd.f32 %v3510, %v3536
      %v3543 = vadd.f32 %v3511, %v3538
      %v3544 = vadd.f32 %v3512, %v3540
      %v3545 = vadd.f32 %v3541, %v3542
      %3546 = vadd.xlane.f32.xlu0 %v3545
      %v3547 = vpop.xlane.xlu0 %3546
      %v3548 = vadd.f32 %v3543, %v3544
      %3549 = vadd.xlane.f32.xlu0 %v3548
      %v3550 = vpop.xlane.xlu0 %3549
      %v3551 = vrcp.pop 256.0
      %v3552 = vmul.f32 256.0, %v3551
      %v3553 = vsub.f32 1.0, %v3552
      %v3554 = vmul.f32 %v3551, %v3553
      %v3555 = vadd.f32 %v3551, %v3554
      %vm3556 = vweird.f32 %v3551
      %v3557 = vsel %vm3556, %v3551, %v3555
      %v3558 = vmul.f32 %v3547, %v3557
      %v3559 = vmul.f32 %v3550, %v3557
      %v3560 = vlaneseq
      %v3561 = vand.u32 %v3560, 127
      %vm3562 = vcmp.eq.s32.totalorder %v3561, 0
      %v3563 = vsel %vm3562, 1, 0
      %v3564 = vcvt.s32.f32 %v3563
      %v3565 = vmul.f32 %v3493, %v3564
      %v3566 = vmul.f32 %v3496, %v3564
      %vm3567 = vcmp.eq.s32.totalorder %v3561, 1
      %v3568 = vsel %vm3567, 1, 0
      %v3569 = vcvt.s32.f32 %v3568
      %v3570 = vmul.f32 %v3558, %v3569
      %v3571 = vmul.f32 %v3559, %v3569
      %v3572 = vadd.f32 %v3565, %v3570
      %v3573 = vadd.f32 %v3566, %v3571
      %3574 = vst [vmem:[%s359] sm:$0xff] %v3455
      %3575 = vst [vmem:[%s359 + $0x8] sm:$0xff] %v3478
      %3576 = vst [vmem:[%s359 + $0x10] sm:$0xff] %v3572
      %3577 = vst [vmem:[%s359 + $0x18] sm:$0xff] %v3458
      %3578 = vst [vmem:[%s359 + $0x20] sm:$0xff] %v3481
      %3579 = vst [vmem:[%s359 + $0x28] sm:$0xff] %v3573
      %s3580 = smul.u32 2, %s19
      %p3581 = scmp.lt.s32.totalorder %s3580, 3
      %s3582 = scalar_select %p3581, %s3580, 3
      %s3583 = smul.addr %s3582, 3
      %s3584 = smul.addr %s3583, 8
      %s3585 = scalar_lea.vmem %s8, %s3584
      // Predicated region
      $region53: #{_avsm_batched_impl.1} parent=51 // pred_check
        %p3586 = pneg %p220
      $region54: #{_avsm_batched_impl.1} parent=51 // pred_check_branch
        %3588 = sbr.rel (%p3586) target = $region56
      $region55: #{_avsm_batched_impl.1} parent=51 // pred_region
        %s3589 = smul.u32 2, %s19
      $region56: #{_avsm_batched_impl.1} parent=51 // pred_fallthru
        _
    $region52: #{_avsm_batched_impl.1} parent=5 // pred_fallthru
      _
    %p3590 = scmp.le.s32.totalorder 2, %s14
    // Predicated region
    $region57: #{_avsm_batched_impl.1} parent=5 // pred_check
      %p3591 = pneg %p3590
    $region58: #{_avsm_batched_impl.1} parent=5 // pred_check_branch
      %3593 = sbr.rel (%p3591) target = $region60
    $region59: #{_avsm_batched_impl.1} parent=5 // pred_region
      %s3594 = ssub.s32 %s14, 2
      // Predicated region
      $region61: #{_avsm_batched_impl.1} parent=59 // pred_check
        %p3595 = pneg %p226
      $region62: #{_avsm_batched_impl.1} parent=59 // pred_check_branch
        %3597 = sbr.rel (%p3595) target = $region64
      $region63: #{_avsm_batched_impl.1} parent=59 // pred_region
        %s3598 = smul.u32 2, %s20
        %p3599 = scmp.lt.s32.totalorder %s3598, 3
        %s3600 = scalar_select %p3599, %s3598, 3
        %s3601 = smul.addr %s3600, 3
        %s3602 = smul.addr %s3601, 8
        %s3603 = scalar_lea.vmem %s8, %s3602
      $region64: #{_avsm_batched_impl.1} parent=59 // pred_fallthru
        _
    $region60: #{_avsm_batched_impl.1} parent=5 // pred_fallthru
      _
  $region6: #{_avsm_batched_impl.1} parent=0 // loop_footer
    %s18 = sadd.s32 1, %s14
  $region7: #{_avsm_batched_impl.1} parent=0 // loop_footer_branch
    %13 = sbr.rel target = $region3
  $region8: #{_avsm_batched_impl.1} parent=0 // loop_exit
    _

</llo_original>
